<compile_context>
chip_gen: v7x
topology: tpu7x:2x2x1
jax: 0.10.0
libtpu: 0.0.40
codegen_flags: <defaults>
</compile_context>

<pallas_src>
import jax
import jax.numpy as jnp
from jax.experimental import pallas as pl
from jax.experimental.pallas import tpu as pltpu


_WEIGHT_ORDER = (
    "w_mem", "w_query", "w_v", "w_loc_prev", "w_loc_cum",
    "w_att_ih_h", "w_att_ih_c", "w_att_hh", "b_att",
    "w_pre1", "w_pre2",
    "w_dec_ih_p", "w_dec_ih_c", "w_dec_hh", "b_dec",
    "w_proj_h", "w_proj_c", "b_proj",
    "w_gate_h", "w_gate_c", "b_gate",
)


def _decoder_kernel(
    # per-step streamed inputs
    dec_in_ref,      # (1, B, M)      teacher-forced previous frame
    drop_ref,        # (1, 2, B, P)   prenet dropout masks (scaled by 1/(1-p))
    # step-invariant inputs
    memory_ref,      # (B, T_enc, E)
    mask_ref,        # (B, T_enc, 1)  1.0 valid / 0.0 padded
    w_mem_ref,       # (E, A)
    w_query_ref,     # (Datt, A)
    w_v_ref,         # (A, 1)
    w_loc_prev_ref,  # (K, 1, A)  folded location conv+dense, prev-weights chan
    w_loc_cum_ref,   # (K, 1, A)  folded location conv+dense, cum-weights chan
    w_att_ih_h_ref,  # (Ddec, 4*Datt)
    w_att_ih_c_ref,  # (E, 4*Datt)
    w_att_hh_ref,    # (Datt, 4*Datt)
    b_att_ref,       # (1, 4*Datt)
    w_pre1_ref,      # (M, P)
    w_pre2_ref,      # (P, P)
    w_dec_ih_p_ref,  # (P, 4*Ddec)
    w_dec_ih_c_ref,  # (E, 4*Ddec)
    w_dec_hh_ref,    # (Ddec, 4*Ddec)
    b_dec_ref,       # (1, 4*Ddec)
    w_proj_h_ref,    # (Ddec, M)
    w_proj_c_ref,    # (E, M)
    b_proj_ref,      # (1, M)
    w_gate_h_ref,    # (Ddec, 1)
    w_gate_c_ref,    # (E, 1)
    b_gate_ref,      # (1, 1)
    # per-step outputs
    mel_ref,         # (1, B, M)
    gate_ref,        # (1, B, 1)
    align_ref,       # (1, B, T_enc, 1)
    # VMEM-resident recurrent state (persists across grid steps)
    att_h_ref, att_c_ref,      # (B, Datt)
    dec_h_ref, dec_c_ref,      # (B, Ddec)
    ctx_ref,                   # (B, E)
    aw_prev_ref, aw_cum_ref,   # (B, T_enc + 2*halo, 1) with zero conv halo
    pmem_ref,                  # (B, T_enc, A)
):
    f32 = jnp.float32
    t = pl.program_id(0)
    B, T_enc, _ = memory_ref.shape
    A = w_mem_ref.shape[1]
    Datt = w_att_hh_ref.shape[0]
    Ddec = w_dec_hh_ref.shape[0]
    K_loc = w_loc_prev_ref.shape[0]
    pad = (K_loc - 1) // 2
    halo = (aw_prev_ref.shape[1] - T_enc) // 2   # >= pad, sublane-aligned window

    @pl.when(t == 0)
    def _init():
        att_h_ref[...] = jnp.zeros_like(att_h_ref)
        att_c_ref[...] = jnp.zeros_like(att_c_ref)
        dec_h_ref[...] = jnp.zeros_like(dec_h_ref)
        dec_c_ref[...] = jnp.zeros_like(dec_c_ref)
        ctx_ref[...] = jnp.zeros_like(ctx_ref)
        aw_prev_ref[...] = jnp.zeros_like(aw_prev_ref)
        aw_cum_ref[...] = jnp.zeros_like(aw_cum_ref)
        # processed_memory = memory_layer(memory): computed once, kept in VMEM
        pmem_ref[...] = jax.lax.dot_general(
            memory_ref[...], w_mem_ref[...],
            dimension_numbers=(((2,), (0,)), ((), ())),
            preferred_element_type=f32)

    dec_h = dec_h_ref[...]
    dec_c = dec_c_ref[...]
    att_h = att_h_ref[...]
    att_c = att_c_ref[...]
    ctx = ctx_ref[...]

    # ---- attention LSTM cell: input = [decoder_hidden, attention_context] ----
    gates = (jnp.dot(dec_h, w_att_ih_h_ref[...], preferred_element_type=f32)
             + jnp.dot(ctx, w_att_ih_c_ref[...], preferred_element_type=f32)
             + jnp.dot(att_h, w_att_hh_ref[...], preferred_element_type=f32)
             + b_att_ref[...])
    i_g = jax.nn.sigmoid(gates[:, 0:Datt])
    f_g = jax.nn.sigmoid(gates[:, Datt:2 * Datt])
    g_g = jnp.tanh(gates[:, 2 * Datt:3 * Datt])
    o_g = jax.nn.sigmoid(gates[:, 3 * Datt:4 * Datt])
    att_c_new = f_g * att_c + i_g * g_g
    att_h_new = o_g * jnp.tanh(att_c_new)
    att_h_ref[...] = att_h_new
    att_c_ref[...] = att_c_new

    # ---- location-sensitive attention ----
    pq = jnp.dot(att_h_new, w_query_ref[...], preferred_element_type=f32)  # (B, A)
    ploc = jnp.zeros((B, T_enc, A), dtype=f32)
    for k in range(K_loc):  # folded conv(2 -> A); zero halo lives in scratch
        k0 = halo - pad + k
        ploc = (ploc
                + aw_prev_ref[:, k0:k0 + T_enc, :] * w_loc_prev_ref[k]
                + aw_cum_ref[:, k0:k0 + T_enc, :] * w_loc_cum_ref[k])
    e_pre = jnp.tanh(pq[:, None, :] + ploc + pmem_ref[...])                # (B,T,A)
    energies = jax.lax.dot_general(
        e_pre, w_v_ref[...],
        dimension_numbers=(((2,), (0,)), ((), ())),
        preferred_element_type=f32)                                        # (B,T,1)
    energies = jnp.where(mask_ref[...] > 0.5, energies, -1e30)
    e_max = jnp.max(energies, axis=1, keepdims=True)
    e_exp = jnp.exp(energies - e_max)
    attw = e_exp / jnp.sum(e_exp, axis=1, keepdims=True)                   # (B,T,1)
    ctx_new = jnp.sum(attw * memory_ref[...], axis=1)                      # (B,E)
    ctx_ref[...] = ctx_new

    # state update feeding the NEXT step's attention_weights_cat
    aw_prev_ref[:, halo:halo + T_enc, :] = attw
    aw_cum_ref[:, halo:halo + T_enc, :] = (
        aw_cum_ref[:, halo:halo + T_enc, :] + attw)

    # ---- prenet (dropout p=0.5 is always on in the reference module;
    #      masks are precomputed and already include the 1/(1-p) scale) ----
    x_in = dec_in_ref[0]
    h1 = jnp.maximum(
        jnp.dot(x_in, w_pre1_ref[...], preferred_element_type=f32), 0.0)
    h1 = h1 * drop_ref[0, 0]
    h2 = jnp.maximum(
        jnp.dot(h1, w_pre2_ref[...], preferred_element_type=f32), 0.0)
    h2 = h2 * drop_ref[0, 1]

    # ---- decoder LSTM cell: input = [prenet_out, attention_context] ----
    gates2 = (jnp.dot(h2, w_dec_ih_p_ref[...], preferred_element_type=f32)
              + jnp.dot(ctx_new, w_dec_ih_c_ref[...], preferred_element_type=f32)
              + jnp.dot(dec_h, w_dec_hh_ref[...], preferred_element_type=f32)
              + b_dec_ref[...])
    i2 = jax.nn.sigmoid(gates2[:, 0:Ddec])
    f2 = jax.nn.sigmoid(gates2[:, Ddec:2 * Ddec])
    g2 = jnp.tanh(gates2[:, 2 * Ddec:3 * Ddec])
    o2 = jax.nn.sigmoid(gates2[:, 3 * Ddec:4 * Ddec])
    dec_c_new = f2 * dec_c + i2 * g2
    dec_h_new = o2 * jnp.tanh(dec_c_new)
    dec_h_ref[...] = dec_h_new
    dec_c_ref[...] = dec_c_new

    # ---- projections on [decoder_hidden, attention_context] ----
    mel = (jnp.dot(dec_h_new, w_proj_h_ref[...], preferred_element_type=f32)
           + jnp.dot(ctx_new, w_proj_c_ref[...], preferred_element_type=f32)
           + b_proj_ref[...])
    gate = (jnp.dot(dec_h_new, w_gate_h_ref[...], preferred_element_type=f32)
            + jnp.dot(ctx_new, w_gate_c_ref[...], preferred_element_type=f32)
            + b_gate_ref[...])

    mel_ref[0] = mel.astype(mel_ref.dtype)
    gate_ref[0] = gate.astype(gate_ref.dtype)
    align_ref[0] = attw.astype(align_ref.dtype)


def decoder_forward(params, memory, decoder_inputs, memory_lengths, dropout_key,
                    n_frames_per_step=1):
    """Teacher-forced Decoder.forward.

    memory:         (B, T_enc, E)   encoder outputs
    decoder_inputs: (B, n_mel, T_mel) ground-truth mel frames
    memory_lengths: (B,) int
    Returns (mel_outputs (B, n_mel, T_mel), gate_outputs (B, T_out),
             alignments (B, T_out, T_enc)), matching parse_decoder_outputs.
    """
    f32 = jnp.float32
    B, T_enc, E = memory.shape
    n_mel, T_mel = decoder_inputs.shape[1], decoder_inputs.shape[2]
    assert T_mel % n_frames_per_step == 0
    T_out = T_mel // n_frames_per_step
    M = n_mel * n_frames_per_step
    P = params["w_pre1"].shape[1]
    A = params["w_mem"].shape[1]
    Datt = params["w_att_hh"].shape[0]
    Ddec = params["w_dec_hh"].shape[0]
    K_loc = params["w_loc_prev"].shape[0]
    halo = max(8, (K_loc - 1) // 2)     # sublane-aligned active window in scratch

    # parse_decoder_inputs: (B, n_mel, T_mel) -> (T_out, B, M)
    di = jnp.transpose(decoder_inputs, (0, 2, 1)).reshape(B, T_out, M)
    di = jnp.transpose(di, (1, 0, 2)).astype(f32)
    # step 0 consumes the all-zeros go frame; step t consumes frame t-1
    dec_in = jnp.concatenate([jnp.zeros((1, B, M), f32), di[:-1]], axis=0)

    # always-on prenet dropout (p=0.5); masks include the 1/(1-p)=2 scale
    drop = (jax.random.bernoulli(dropout_key, 0.5, (T_out, 2, B, P))
            .astype(f32) * 2.0)

    # attention mask from memory_lengths (1.0 = valid, 0.0 = padded)
    valid = (jnp.arange(T_enc)[None, :] < memory_lengths[:, None]).astype(f32)
    valid = valid[:, :, None]                                   # (B, T_enc, 1)

    def full_spec(shape):
        return pl.BlockSpec(shape, lambda *_: (0,) * len(shape))

    in_specs = [
        pl.BlockSpec((1, B, M), lambda t: (t, 0, 0)),
        pl.BlockSpec((1, 2, B, P), lambda t: (t, 0, 0, 0)),
        full_spec(memory.shape),
        full_spec(valid.shape),
    ] + [full_spec(tuple(params[name].shape)) for name in _WEIGHT_ORDER]

    out_shape = (
        jax.ShapeDtypeStruct((T_out, B, M), f32),
        jax.ShapeDtypeStruct((T_out, B, 1), f32),
        jax.ShapeDtypeStruct((T_out, B, T_enc, 1), f32),
    )
    out_specs = (
        pl.BlockSpec((1, B, M), lambda t: (t, 0, 0)),
        pl.BlockSpec((1, B, 1), lambda t: (t, 0, 0)),
        pl.BlockSpec((1, B, T_enc, 1), lambda t: (t, 0, 0, 0)),
    )
    scratch_shapes = [
        pltpu.VMEM((B, Datt), f32), pltpu.VMEM((B, Datt), f32),
        pltpu.VMEM((B, Ddec), f32), pltpu.VMEM((B, Ddec), f32),
        pltpu.VMEM((B, E), f32),
        pltpu.VMEM((B, T_enc + 2 * halo, 1), f32),
        pltpu.VMEM((B, T_enc + 2 * halo, 1), f32),
        pltpu.VMEM((B, T_enc, A), f32),
    ]

    mel, gate, align = pl.pallas_call(
        _decoder_kernel,
        out_shape=out_shape,
        grid=(T_out,),
        in_specs=in_specs,
        out_specs=out_specs,
        scratch_shapes=scratch_shapes,
        compiler_params=pltpu.CompilerParams(
            dimension_semantics=("arbitrary",)),   # sequential RNN over steps
    )(dec_in, drop, memory.astype(f32), valid,
      *[params[name] for name in _WEIGHT_ORDER])

    # parse_decoder_outputs
    mel_outputs = jnp.transpose(mel, (1, 0, 2)).reshape(
        B, T_out * n_frames_per_step, n_mel)
    mel_outputs = jnp.transpose(mel_outputs, (0, 2, 1))        # (B, n_mel, T_mel)
    gate_outputs = jnp.transpose(gate[:, :, 0], (1, 0))        # (B, T_out)
    alignments = jnp.transpose(align[:, :, :, 0], (1, 0, 2))   # (B, T_out, T_enc)
    return mel_outputs, gate_outputs, alignments


def init_decoder_params(key, *, n_mel, n_frames, enc_dim, att_rnn_dim,
                        dec_rnn_dim, prenet_dim, att_dim,
                        loc_n_filters, loc_kernel, dtype=jnp.float32):
    """Deterministic synthetic parameters (shapes match the PyTorch module)."""
    M = n_mel * n_frames
    keys = iter(jax.random.split(key, 24))

    def nrm(shape, scale=0.1):
        return scale * jax.random.normal(next(keys), shape, dtype)

    p = {}
    p["w_mem"] = nrm((enc_dim, att_dim))           # memory_layer (no bias)
    p["w_query"] = nrm((att_rnn_dim, att_dim))     # query_layer (no bias)
    p["w_v"] = nrm((att_dim, 1))                   # v (no bias)
    # location layer: fold conv(2 -> n_filters, k, no bias) with
    # dense(n_filters -> att_dim, no bias) into one (k, 2, att_dim) weight.
    w_conv = nrm((loc_n_filters, 2, loc_kernel))   # torch layout (out, in, k)
    w_dense = nrm((att_dim, loc_n_filters))        # torch layout (out, in)
    w_fold = jnp.einsum("fck,af->kca", w_conv, w_dense)
    p["w_loc_prev"] = w_fold[:, 0:1, :]
    p["w_loc_cum"] = w_fold[:, 1:2, :]
    # attention LSTMCell (input = [decoder_hidden, attention_context])
    p["w_att_ih_h"] = nrm((dec_rnn_dim, 4 * att_rnn_dim))
    p["w_att_ih_c"] = nrm((enc_dim, 4 * att_rnn_dim))
    p["w_att_hh"] = nrm((att_rnn_dim, 4 * att_rnn_dim))
    p["b_att"] = nrm((1, 4 * att_rnn_dim))         # b_ih + b_hh combined
    # prenet (no bias)
    p["w_pre1"] = nrm((M, prenet_dim))
    p["w_pre2"] = nrm((prenet_dim, prenet_dim))
    # decoder LSTMCell (input = [prenet_out, attention_context])
    p["w_dec_ih_p"] = nrm((prenet_dim, 4 * dec_rnn_dim))
    p["w_dec_ih_c"] = nrm((enc_dim, 4 * dec_rnn_dim))
    p["w_dec_hh"] = nrm((dec_rnn_dim, 4 * dec_rnn_dim))
    p["b_dec"] = nrm((1, 4 * dec_rnn_dim))
    # linear projection + gate on [decoder_hidden, attention_context]
    p["w_proj_h"] = nrm((dec_rnn_dim, M))
    p["w_proj_c"] = nrm((enc_dim, M))
    p["b_proj"] = nrm((1, M))
    p["w_gate_h"] = nrm((dec_rnn_dim, 1))
    p["w_gate_c"] = nrm((enc_dim, 1))
    p["b_gate"] = nrm((1, 1))
    return p


if __name__ == "__main__":
    # Small hparams consistent with the module structure.
    B = 2
    n_mel_channels = 16
    n_frames_per_step = 1
    encoder_embedding_dim = 32
    attention_rnn_dim = 32
    decoder_rnn_dim = 32
    prenet_dim = 32
    attention_dim = 32
    attention_location_n_filters = 8
    attention_location_kernel_size = 5
    T_enc = 16       # encoder (memory) length
    T_mel = 8        # decoder output frames

    key = jax.random.PRNGKey(0)
    k_par, k_mem, k_dec, k_drop = jax.random.split(key, 4)

    params = init_decoder_params(
        k_par,
        n_mel=n_mel_channels, n_frames=n_frames_per_step,
        enc_dim=encoder_embedding_dim, att_rnn_dim=attention_rnn_dim,
        dec_rnn_dim=decoder_rnn_dim, prenet_dim=prenet_dim,
        att_dim=attention_dim,
        loc_n_filters=attention_location_n_filters,
        loc_kernel=attention_location_kernel_size)

    memory = jax.random.normal(k_mem, (B, T_enc, encoder_embedding_dim),
                               jnp.float32)
    decoder_inputs = jax.random.normal(k_dec, (B, n_mel_channels, T_mel),
                                       jnp.float32)
    memory_lengths = jnp.array([T_enc, T_enc - 3], dtype=jnp.int32)

    mel_out, gate_out, alignments = decoder_forward(
        params, memory, decoder_inputs, memory_lengths, k_drop,
        n_frames_per_step=n_frames_per_step)
    mel_out = jax.block_until_ready(mel_out)

    T_out = T_mel // n_frames_per_step
    assert mel_out.shape == (B, n_mel_channels, T_mel), mel_out.shape
    assert gate_out.shape == (B, T_out), gate_out.shape
    assert alignments.shape == (B, T_out, T_enc), alignments.shape
    assert bool(jnp.all(jnp.isfinite(mel_out)))
    assert bool(jnp.all(jnp.isfinite(gate_out)))
    assert bool(jnp.all(jnp.isfinite(alignments)))
    # softmax attention rows must sum to 1 over (valid) encoder positions
    assert bool(jnp.all(jnp.abs(jnp.sum(alignments, axis=-1) - 1.0) < 1e-3))
    print("KERNEL_OK")
</pallas_src>

<mosaic_0001>
module attributes {stable_mosaic.version = 11 : i64} {
  func.func @_decoder_kernel(%arg0: i32, %arg1: memref<1x2x16xf32, #tpu.memory_space<vmem>>, %arg2: memref<1x2x2x32xf32, #tpu.memory_space<vmem>>, %arg3: memref<2x16x32xf32, #tpu.memory_space<vmem>>, %arg4: memref<2x16x1xf32, #tpu.memory_space<vmem>>, %arg5: memref<32x32xf32, #tpu.memory_space<vmem>>, %arg6: memref<32x32xf32, #tpu.memory_space<vmem>>, %arg7: memref<32x1xf32, #tpu.memory_space<vmem>>, %arg8: memref<5x1x32xf32, #tpu.memory_space<vmem>>, %arg9: memref<5x1x32xf32, #tpu.memory_space<vmem>>, %arg10: memref<32x128xf32, #tpu.memory_space<vmem>>, %arg11: memref<32x128xf32, #tpu.memory_space<vmem>>, %arg12: memref<32x128xf32, #tpu.memory_space<vmem>>, %arg13: memref<1x128xf32, #tpu.memory_space<vmem>>, %arg14: memref<16x32xf32, #tpu.memory_space<vmem>>, %arg15: memref<32x32xf32, #tpu.memory_space<vmem>>, %arg16: memref<32x128xf32, #tpu.memory_space<vmem>>, %arg17: memref<32x128xf32, #tpu.memory_space<vmem>>, %arg18: memref<32x128xf32, #tpu.memory_space<vmem>>, %arg19: memref<1x128xf32, #tpu.memory_space<vmem>>, %arg20: memref<32x16xf32, #tpu.memory_space<vmem>>, %arg21: memref<32x16xf32, #tpu.memory_space<vmem>>, %arg22: memref<1x16xf32, #tpu.memory_space<vmem>>, %arg23: memref<32x1xf32, #tpu.memory_space<vmem>>, %arg24: memref<32x1xf32, #tpu.memory_space<vmem>>, %arg25: memref<1x1xf32, #tpu.memory_space<vmem>>, %arg26: memref<1x2x16xf32, #tpu.memory_space<vmem>>, %arg27: memref<1x2x1xf32, #tpu.memory_space<vmem>>, %arg28: memref<1x2x16x1xf32, #tpu.memory_space<vmem>>, %arg29: memref<2x32xf32, #tpu.memory_space<vmem>>, %arg30: memref<2x32xf32, #tpu.memory_space<vmem>>, %arg31: memref<2x32xf32, #tpu.memory_space<vmem>>, %arg32: memref<2x32xf32, #tpu.memory_space<vmem>>, %arg33: memref<2x32xf32, #tpu.memory_space<vmem>>, %arg34: memref<2x32x1xf32, #tpu.memory_space<vmem>>, %arg35: memref<2x32x1xf32, #tpu.memory_space<vmem>>, %arg36: memref<2x16x32xf32, #tpu.memory_space<vmem>>) attributes {dimension_semantics = [#tpu.dimension_semantics<arbitrary>], iteration_bounds = array<i64: 8>, scalar_prefetch = 0 : i64, scratch_operands = 8 : i64, tpu.core_type = #tpu.core_type<tc>, window_params = [{transform_indices = @transform_0, window_bounds = array<i64: 1, 2, 16>}, {transform_indices = @transform_1, window_bounds = array<i64: 1, 2, 2, 32>}, {pipeline_mode = #tpu.pipeline_mode<synchronous>, transform_indices = @transform_2, window_bounds = array<i64: 2, 16, 32>}, {pipeline_mode = #tpu.pipeline_mode<synchronous>, transform_indices = @transform_3, window_bounds = array<i64: 2, 16, 1>}, {pipeline_mode = #tpu.pipeline_mode<synchronous>, transform_indices = @transform_4, window_bounds = array<i64: 32, 32>}, {pipeline_mode = #tpu.pipeline_mode<synchronous>, transform_indices = @transform_5, window_bounds = array<i64: 32, 32>}, {pipeline_mode = #tpu.pipeline_mode<synchronous>, transform_indices = @transform_6, window_bounds = array<i64: 32, 1>}, {pipeline_mode = #tpu.pipeline_mode<synchronous>, transform_indices = @transform_7, window_bounds = array<i64: 5, 1, 32>}, {pipeline_mode = #tpu.pipeline_mode<synchronous>, transform_indices = @transform_8, window_bounds = array<i64: 5, 1, 32>}, {pipeline_mode = #tpu.pipeline_mode<synchronous>, transform_indices = @transform_9, window_bounds = array<i64: 32, 128>}, {pipeline_mode = #tpu.pipeline_mode<synchronous>, transform_indices = @transform_10, window_bounds = array<i64: 32, 128>}, {pipeline_mode = #tpu.pipeline_mode<synchronous>, transform_indices = @transform_11, window_bounds = array<i64: 32, 128>}, {pipeline_mode = #tpu.pipeline_mode<synchronous>, transform_indices = @transform_12, window_bounds = array<i64: 1, 128>}, {pipeline_mode = #tpu.pipeline_mode<synchronous>, transform_indices = @transform_13, window_bounds = array<i64: 16, 32>}, {pipeline_mode = #tpu.pipeline_mode<synchronous>, transform_indices = @transform_14, window_bounds = array<i64: 32, 32>}, {pipeline_mode = #tpu.pipeline_mode<synchronous>, transform_indices = @transform_15, window_bounds = array<i64: 32, 128>}, {pipeline_mode = #tpu.pipeline_mode<synchronous>, transform_indices = @transform_16, window_bounds = array<i64: 32, 128>}, {pipeline_mode = #tpu.pipeline_mode<synchronous>, transform_indices = @transform_17, window_bounds = array<i64: 32, 128>}, {pipeline_mode = #tpu.pipeline_mode<synchronous>, transform_indices = @transform_18, window_bounds = array<i64: 1, 128>}, {pipeline_mode = #tpu.pipeline_mode<synchronous>, transform_indices = @transform_19, window_bounds = array<i64: 32, 16>}, {pipeline_mode = #tpu.pipeline_mode<synchronous>, transform_indices = @transform_20, window_bounds = array<i64: 32, 16>}, {pipeline_mode = #tpu.pipeline_mode<synchronous>, transform_indices = @transform_21, window_bounds = array<i64: 1, 16>}, {pipeline_mode = #tpu.pipeline_mode<synchronous>, transform_indices = @transform_22, window_bounds = array<i64: 32, 1>}, {pipeline_mode = #tpu.pipeline_mode<synchronous>, transform_indices = @transform_23, window_bounds = array<i64: 32, 1>}, {pipeline_mode = #tpu.pipeline_mode<synchronous>, transform_indices = @transform_24, window_bounds = array<i64: 1, 1>}, {transform_indices = @transform_25, window_bounds = array<i64: 1, 2, 16>}, {transform_indices = @transform_26, window_bounds = array<i64: 1, 2, 1>}, {transform_indices = @transform_27, window_bounds = array<i64: 1, 2, 16, 1>}]} {
    %c0_i32 = arith.constant 0 : i32
    %0 = arith.cmpi eq, %arg0, %c0_i32 : i32
    %1 = arith.extui %0 : i1 to i32
    %c0_i32_0 = arith.constant 0 : i32
    %2 = arith.cmpi ne, %1, %c0_i32_0 : i32
    scf.if %2 {
      %cst_173 = arith.constant 0.000000e+00 : f32
      %239 = vector.broadcast %cst_173 : f32 to vector<2x32xf32>
      %c0_174 = arith.constant 0 : index
      %c0_175 = arith.constant 0 : index
      %240 = vector.load %arg29[%c0_174, %c0_175] : memref<2x32xf32, #tpu.memory_space<vmem>>, vector<2x32xf32>
      tpu.vector_store %arg29[%c0_174, %c0_175], %239 {strides = array<i32>} : memref<2x32xf32, #tpu.memory_space<vmem>>, vector<2x32xf32>,
      %cst_176 = arith.constant 0.000000e+00 : f32
      %241 = vector.broadcast %cst_176 : f32 to vector<2x32xf32>
      %c0_177 = arith.constant 0 : index
      %c0_178 = arith.constant 0 : index
      %242 = vector.load %arg30[%c0_177, %c0_178] : memref<2x32xf32, #tpu.memory_space<vmem>>, vector<2x32xf32>
      tpu.vector_store %arg30[%c0_177, %c0_178], %241 {strides = array<i32>} : memref<2x32xf32, #tpu.memory_space<vmem>>, vector<2x32xf32>,
      %cst_179 = arith.constant 0.000000e+00 : f32
      %243 = vector.broadcast %cst_179 : f32 to vector<2x32xf32>
      %c0_180 = arith.constant 0 : index
      %c0_181 = arith.constant 0 : index
      %244 = vector.load %arg31[%c0_180, %c0_181] : memref<2x32xf32, #tpu.memory_space<vmem>>, vector<2x32xf32>
      tpu.vector_store %arg31[%c0_180, %c0_181], %243 {strides = array<i32>} : memref<2x32xf32, #tpu.memory_space<vmem>>, vector<2x32xf32>,
      %cst_182 = arith.constant 0.000000e+00 : f32
      %245 = vector.broadcast %cst_182 : f32 to vector<2x32xf32>
      %c0_183 = arith.constant 0 : index
      %c0_184 = arith.constant 0 : index
      %246 = vector.load %arg32[%c0_183, %c0_184] : memref<2x32xf32, #tpu.memory_space<vmem>>, vector<2x32xf32>
      tpu.vector_store %arg32[%c0_183, %c0_184], %245 {strides = array<i32>} : memref<2x32xf32, #tpu.memory_space<vmem>>, vector<2x32xf32>,
      %cst_185 = arith.constant 0.000000e+00 : f32
      %247 = vector.broadcast %cst_185 : f32 to vector<2x32xf32>
      %c0_186 = arith.constant 0 : index
      %c0_187 = arith.constant 0 : index
      %248 = vector.load %arg33[%c0_186, %c0_187] : memref<2x32xf32, #tpu.memory_space<vmem>>, vector<2x32xf32>
      tpu.vector_store %arg33[%c0_186, %c0_187], %247 {strides = array<i32>} : memref<2x32xf32, #tpu.memory_space<vmem>>, vector<2x32xf32>,
      %cst_188 = arith.constant 0.000000e+00 : f32
      %249 = vector.broadcast %cst_188 : f32 to vector<2x32x1xf32>
      %c0_189 = arith.constant 0 : index
      %c0_190 = arith.constant 0 : index
      %c0_191 = arith.constant 0 : index
      %250 = vector.load %arg34[%c0_189, %c0_190, %c0_191] : memref<2x32x1xf32, #tpu.memory_space<vmem>>, vector<2x32x1xf32>
      tpu.vector_store %arg34[%c0_189, %c0_190, %c0_191], %249 {strides = array<i32>} : memref<2x32x1xf32, #tpu.memory_space<vmem>>, vector<2x32x1xf32>,
      %cst_192 = arith.constant 0.000000e+00 : f32
      %251 = vector.broadcast %cst_192 : f32 to vector<2x32x1xf32>
      %c0_193 = arith.constant 0 : index
      %c0_194 = arith.constant 0 : index
      %c0_195 = arith.constant 0 : index
      %252 = vector.load %arg35[%c0_193, %c0_194, %c0_195] : memref<2x32x1xf32, #tpu.memory_space<vmem>>, vector<2x32x1xf32>
      tpu.vector_store %arg35[%c0_193, %c0_194, %c0_195], %251 {strides = array<i32>} : memref<2x32x1xf32, #tpu.memory_space<vmem>>, vector<2x32x1xf32>,
      %c0_196 = arith.constant 0 : index
      %c0_197 = arith.constant 0 : index
      %c0_198 = arith.constant 0 : index
      %253 = vector.load %arg3[%c0_196, %c0_197, %c0_198] : memref<2x16x32xf32, #tpu.memory_space<vmem>>, vector<2x16x32xf32>
      %c0_199 = arith.constant 0 : index
      %c0_200 = arith.constant 0 : index
      %254 = vector.load %arg5[%c0_199, %c0_200] : memref<32x32xf32, #tpu.memory_space<vmem>>, vector<32x32xf32>
      %cst_201 = arith.constant dense<0.000000e+00> : vector<2x16x32xf32>
      %255 = tpu.matmul %253, %254, %cst_201 {dimension_numbers = #tpu.dot_dimension_numbers<[2], [0], [0, 1], [1], [0, 0, 0, 1, 1, 1], [], []>} : vector<2x16x32xf32>, vector<32x32xf32>, vector<2x16x32xf32> -> vector<2x16x32xf32>
      %c0_202 = arith.constant 0 : index
      %c0_203 = arith.constant 0 : index
      %c0_204 = arith.constant 0 : index
      %256 = vector.load %arg36[%c0_202, %c0_203, %c0_204] : memref<2x16x32xf32, #tpu.memory_space<vmem>>, vector<2x16x32xf32>
      tpu.vector_store %arg36[%c0_202, %c0_203, %c0_204], %255 {strides = array<i32>} : memref<2x16x32xf32, #tpu.memory_space<vmem>>, vector<2x16x32xf32>,
    } else {
    }
    %c0 = arith.constant 0 : index
    %c0_1 = arith.constant 0 : index
    %3 = vector.load %arg31[%c0, %c0_1] : memref<2x32xf32, #tpu.memory_space<vmem>>, vector<2x32xf32>
    %c0_2 = arith.constant 0 : index
    %c0_3 = arith.constant 0 : index
    %4 = vector.load %arg32[%c0_2, %c0_3] : memref<2x32xf32, #tpu.memory_space<vmem>>, vector<2x32xf32>
    %c0_4 = arith.constant 0 : index
    %c0_5 = arith.constant 0 : index
    %5 = vector.load %arg29[%c0_4, %c0_5] : memref<2x32xf32, #tpu.memory_space<vmem>>, vector<2x32xf32>
    %c0_6 = arith.constant 0 : index
    %c0_7 = arith.constant 0 : index
    %6 = vector.load %arg30[%c0_6, %c0_7] : memref<2x32xf32, #tpu.memory_space<vmem>>, vector<2x32xf32>
    %c0_8 = arith.constant 0 : index
    %c0_9 = arith.constant 0 : index
    %7 = vector.load %arg33[%c0_8, %c0_9] : memref<2x32xf32, #tpu.memory_space<vmem>>, vector<2x32xf32>
    %c0_10 = arith.constant 0 : index
    %c0_11 = arith.constant 0 : index
    %8 = vector.load %arg10[%c0_10, %c0_11] : memref<32x128xf32, #tpu.memory_space<vmem>>, vector<32x128xf32>
    %cst = arith.constant dense<0.000000e+00> : vector<2x128xf32>
    %9 = tpu.matmul %3, %8, %cst {dimension_numbers = #tpu.dot_dimension_numbers<[1], [0], [0], [1], [0, 0, 1, 1], [], []>} : vector<2x32xf32>, vector<32x128xf32>, vector<2x128xf32> -> vector<2x128xf32>
    %c0_12 = arith.constant 0 : index
    %c0_13 = arith.constant 0 : index
    %10 = vector.load %arg11[%c0_12, %c0_13] : memref<32x128xf32, #tpu.memory_space<vmem>>, vector<32x128xf32>
    %cst_14 = arith.constant dense<0.000000e+00> : vector<2x128xf32>
    %11 = tpu.matmul %7, %10, %cst_14 {dimension_numbers = #tpu.dot_dimension_numbers<[1], [0], [0], [1], [0, 0, 1, 1], [], []>} : vector<2x32xf32>, vector<32x128xf32>, vector<2x128xf32> -> vector<2x128xf32>
    %12 = arith.addf %9, %11 : vector<2x128xf32>
    %c0_15 = arith.constant 0 : index
    %c0_16 = arith.constant 0 : index
    %13 = vector.load %arg12[%c0_15, %c0_16] : memref<32x128xf32, #tpu.memory_space<vmem>>, vector<32x128xf32>
    %cst_17 = arith.constant dense<0.000000e+00> : vector<2x128xf32>
    %14 = tpu.matmul %5, %13, %cst_17 {dimension_numbers = #tpu.dot_dimension_numbers<[1], [0], [0], [1], [0, 0, 1, 1], [], []>} : vector<2x32xf32>, vector<32x128xf32>, vector<2x128xf32> -> vector<2x128xf32>
    %15 = arith.addf %12, %14 : vector<2x128xf32>
    %c0_18 = arith.constant 0 : index
    %c0_19 = arith.constant 0 : index
    %16 = vector.load %arg13[%c0_18, %c0_19] : memref<1x128xf32, #tpu.memory_space<vmem>>, vector<1x128xf32>
    %17 = vector.broadcast %16 : vector<1x128xf32> to vector<2x128xf32>
    %18 = arith.addf %15, %17 : vector<2x128xf32>
    %19 = vector.extract_strided_slice %18 {offsets = [0, 0], sizes = [2, 32], strides = [1, 1]} : vector<2x128xf32> to vector<2x32xf32>
    %20 = arith.negf %19 : vector<2x32xf32>
    %21 = math.exp %20 : vector<2x32xf32>
    %cst_20 = arith.constant 1.000000e+00 : f32
    %22 = vector.broadcast %cst_20 : f32 to vector<2x32xf32>
    %23 = arith.addf %22, %21 : vector<2x32xf32>
    %24 = arith.divf %22, %23 : vector<2x32xf32>
    %25 = vector.extract_strided_slice %18 {offsets = [0, 32], sizes = [2, 32], strides = [1, 1]} : vector<2x128xf32> to vector<2x32xf32>
    %26 = arith.negf %25 : vector<2x32xf32>
    %27 = math.exp %26 : vector<2x32xf32>
    %cst_21 = arith.constant 1.000000e+00 : f32
    %28 = vector.broadcast %cst_21 : f32 to vector<2x32xf32>
    %29 = arith.addf %28, %27 : vector<2x32xf32>
    %30 = arith.divf %28, %29 : vector<2x32xf32>
    %31 = vector.extract_strided_slice %18 {offsets = [0, 64], sizes = [2, 32], strides = [1, 1]} : vector<2x128xf32> to vector<2x32xf32>
    %32 = math.tanh %31 : vector<2x32xf32>
    %33 = vector.extract_strided_slice %18 {offsets = [0, 96], sizes = [2, 32], strides = [1, 1]} : vector<2x128xf32> to vector<2x32xf32>
    %34 = arith.negf %33 : vector<2x32xf32>
    %35 = math.exp %34 : vector<2x32xf32>
    %cst_22 = arith.constant 1.000000e+00 : f32
    %36 = vector.broadcast %cst_22 : f32 to vector<2x32xf32>
    %37 = arith.addf %36, %35 : vector<2x32xf32>
    %38 = arith.divf %36, %37 : vector<2x32xf32>
    %39 = arith.mulf %30, %6 : vector<2x32xf32>
    %40 = arith.mulf %24, %32 : vector<2x32xf32>
    %41 = arith.addf %39, %40 : vector<2x32xf32>
    %42 = math.tanh %41 : vector<2x32xf32>
    %43 = arith.mulf %38, %42 : vector<2x32xf32>
    %c0_23 = arith.constant 0 : index
    %c0_24 = arith.constant 0 : index
    %44 = vector.load %arg29[%c0_23, %c0_24] : memref<2x32xf32, #tpu.memory_space<vmem>>, vector<2x32xf32>
    tpu.vector_store %arg29[%c0_23, %c0_24], %43 {strides = array<i32>} : memref<2x32xf32, #tpu.memory_space<vmem>>, vector<2x32xf32>,
    %c0_25 = arith.constant 0 : index
    %c0_26 = arith.constant 0 : index
    %45 = vector.load %arg30[%c0_25, %c0_26] : memref<2x32xf32, #tpu.memory_space<vmem>>, vector<2x32xf32>
    tpu.vector_store %arg30[%c0_25, %c0_26], %41 {strides = array<i32>} : memref<2x32xf32, #tpu.memory_space<vmem>>, vector<2x32xf32>,
    %c0_27 = arith.constant 0 : index
    %c0_28 = arith.constant 0 : index
    %46 = vector.load %arg6[%c0_27, %c0_28] : memref<32x32xf32, #tpu.memory_space<vmem>>, vector<32x32xf32>
    %cst_29 = arith.constant dense<0.000000e+00> : vector<2x32xf32>
    %47 = tpu.matmul %43, %46, %cst_29 {dimension_numbers = #tpu.dot_dimension_numbers<[1], [0], [0], [1], [0, 0, 1, 1], [], []>} : vector<2x32xf32>, vector<32x32xf32>, vector<2x32xf32> -> vector<2x32xf32>
    %cst_30 = arith.constant 0.000000e+00 : f32
    %48 = vector.broadcast %cst_30 : f32 to vector<2x16x32xf32>
    %c0_31 = arith.constant 0 : index
    %c6 = arith.constant 6 : index
    %c0_32 = arith.constant 0 : index
    %49 = vector.load %arg34[%c0_31, %c6, %c0_32] : memref<2x32x1xf32, #tpu.memory_space<vmem>>, vector<2x16x1xf32>
    %c0_33 = arith.constant 0 : index
    %c0_34 = arith.constant 0 : index
    %c0_35 = arith.constant 0 : index
    %50 = vector.load %arg8[%c0_33, %c0_34, %c0_35] : memref<5x1x32xf32, #tpu.memory_space<vmem>>, vector<1x1x32xf32>
    %51 = vector.shape_cast %50 : vector<1x1x32xf32> to vector<1x32xf32>
    %52 = vector.shape_cast %51 : vector<1x32xf32> to vector<1x1x32xf32>
    %53 = vector.broadcast %49 : vector<2x16x1xf32> to vector<2x16x32xf32>
    %54 = vector.broadcast %52 : vector<1x1x32xf32> to vector<2x16x32xf32>
    %55 = arith.mulf %53, %54 : vector<2x16x32xf32>
    %56 = arith.addf %48, %55 : vector<2x16x32xf32>
    %c0_36 = arith.constant 0 : index
    %c6_37 = arith.constant 6 : index
    %c0_38 = arith.constant 0 : index
    %57 = vector.load %arg35[%c0_36, %c6_37, %c0_38] : memref<2x32x1xf32, #tpu.memory_space<vmem>>, vector<2x16x1xf32>
    %c0_39 = arith.constant 0 : index
    %c0_40 = arith.constant 0 : index
    %c0_41 = arith.constant 0 : index
    %58 = vector.load %arg9[%c0_39, %c0_40, %c0_41] : memref<5x1x32xf32, #tpu.memory_space<vmem>>, vector<1x1x32xf32>
    %59 = vector.shape_cast %58 : vector<1x1x32xf32> to vector<1x32xf32>
    %60 = vector.shape_cast %59 : vector<1x32xf32> to vector<1x1x32xf32>
    %61 = vector.broadcast %57 : vector<2x16x1xf32> to vector<2x16x32xf32>
    %62 = vector.broadcast %60 : vector<1x1x32xf32> to vector<2x16x32xf32>
    %63 = arith.mulf %61, %62 : vector<2x16x32xf32>
    %64 = arith.addf %56, %63 : vector<2x16x32xf32>
    %c0_42 = arith.constant 0 : index
    %c7 = arith.constant 7 : index
    %c0_43 = arith.constant 0 : index
    %65 = vector.load %arg34[%c0_42, %c7, %c0_43] : memref<2x32x1xf32, #tpu.memory_space<vmem>>, vector<2x16x1xf32>
    %c1 = arith.constant 1 : index
    %c0_44 = arith.constant 0 : index
    %c0_45 = arith.constant 0 : index
    %66 = vector.load %arg8[%c1, %c0_44, %c0_45] : memref<5x1x32xf32, #tpu.memory_space<vmem>>, vector<1x1x32xf32>
    %67 = vector.shape_cast %66 : vector<1x1x32xf32> to vector<1x32xf32>
    %68 = vector.shape_cast %67 : vector<1x32xf32> to vector<1x1x32xf32>
    %69 = vector.broadcast %65 : vector<2x16x1xf32> to vector<2x16x32xf32>
    %70 = vector.broadcast %68 : vector<1x1x32xf32> to vector<2x16x32xf32>
    %71 = arith.mulf %69, %70 : vector<2x16x32xf32>
    %72 = arith.addf %64, %71 : vector<2x16x32xf32>
    %c0_46 = arith.constant 0 : index
    %c7_47 = arith.constant 7 : index
    %c0_48 = arith.constant 0 : index
    %73 = vector.load %arg35[%c0_46, %c7_47, %c0_48] : memref<2x32x1xf32, #tpu.memory_space<vmem>>, vector<2x16x1xf32>
    %c1_49 = arith.constant 1 : index
    %c0_50 = arith.constant 0 : index
    %c0_51 = arith.constant 0 : index
    %74 = vector.load %arg9[%c1_49, %c0_50, %c0_51] : memref<5x1x32xf32, #tpu.memory_space<vmem>>, vector<1x1x32xf32>
    %75 = vector.shape_cast %74 : vector<1x1x32xf32> to vector<1x32xf32>
    %76 = vector.shape_cast %75 : vector<1x32xf32> to vector<1x1x32xf32>
    %77 = vector.broadcast %73 : vector<2x16x1xf32> to vector<2x16x32xf32>
    %78 = vector.broadcast %76 : vector<1x1x32xf32> to vector<2x16x32xf32>
    %79 = arith.mulf %77, %78 : vector<2x16x32xf32>
    %80 = arith.addf %72, %79 : vector<2x16x32xf32>
    %c0_52 = arith.constant 0 : index
    %c8 = arith.constant 8 : index
    %c0_53 = arith.constant 0 : index
    %81 = vector.load %arg34[%c0_52, %c8, %c0_53] : memref<2x32x1xf32, #tpu.memory_space<vmem>>, vector<2x16x1xf32>
    %c2 = arith.constant 2 : index
    %c0_54 = arith.constant 0 : index
    %c0_55 = arith.constant 0 : index
    %82 = vector.load %arg8[%c2, %c0_54, %c0_55] : memref<5x1x32xf32, #tpu.memory_space<vmem>>, vector<1x1x32xf32>
    %83 = vector.shape_cast %82 : vector<1x1x32xf32> to vector<1x32xf32>
    %84 = vector.shape_cast %83 : vector<1x32xf32> to vector<1x1x32xf32>
    %85 = vector.broadcast %81 : vector<2x16x1xf32> to vector<2x16x32xf32>
    %86 = vector.broadcast %84 : vector<1x1x32xf32> to vector<2x16x32xf32>
    %87 = arith.mulf %85, %86 : vector<2x16x32xf32>
    %88 = arith.addf %80, %87 : vector<2x16x32xf32>
    %c0_56 = arith.constant 0 : index
    %c8_57 = arith.constant 8 : index
    %c0_58 = arith.constant 0 : index
    %89 = vector.load %arg35[%c0_56, %c8_57, %c0_58] : memref<2x32x1xf32, #tpu.memory_space<vmem>>, vector<2x16x1xf32>
    %c2_59 = arith.constant 2 : index
    %c0_60 = arith.constant 0 : index
    %c0_61 = arith.constant 0 : index
    %90 = vector.load %arg9[%c2_59, %c0_60, %c0_61] : memref<5x1x32xf32, #tpu.memory_space<vmem>>, vector<1x1x32xf32>
    %91 = vector.shape_cast %90 : vector<1x1x32xf32> to vector<1x32xf32>
    %92 = vector.shape_cast %91 : vector<1x32xf32> to vector<1x1x32xf32>
    %93 = vector.broadcast %89 : vector<2x16x1xf32> to vector<2x16x32xf32>
    %94 = vector.broadcast %92 : vector<1x1x32xf32> to vector<2x16x32xf32>
    %95 = arith.mulf %93, %94 : vector<2x16x32xf32>
    %96 = arith.addf %88, %95 : vector<2x16x32xf32>
    %c0_62 = arith.constant 0 : index
    %c9 = arith.constant 9 : index
    %c0_63 = arith.constant 0 : index
    %97 = vector.load %arg34[%c0_62, %c9, %c0_63] : memref<2x32x1xf32, #tpu.memory_space<vmem>>, vector<2x16x1xf32>
    %c3 = arith.constant 3 : index
    %c0_64 = arith.constant 0 : index
    %c0_65 = arith.constant 0 : index
    %98 = vector.load %arg8[%c3, %c0_64, %c0_65] : memref<5x1x32xf32, #tpu.memory_space<vmem>>, vector<1x1x32xf32>
    %99 = vector.shape_cast %98 : vector<1x1x32xf32> to vector<1x32xf32>
    %100 = vector.shape_cast %99 : vector<1x32xf32> to vector<1x1x32xf32>
    %101 = vector.broadcast %97 : vector<2x16x1xf32> to vector<2x16x32xf32>
    %102 = vector.broadcast %100 : vector<1x1x32xf32> to vector<2x16x32xf32>
    %103 = arith.mulf %101, %102 : vector<2x16x32xf32>
    %104 = arith.addf %96, %103 : vector<2x16x32xf32>
    %c0_66 = arith.constant 0 : index
    %c9_67 = arith.constant 9 : index
    %c0_68 = arith.constant 0 : index
    %105 = vector.load %arg35[%c0_66, %c9_67, %c0_68] : memref<2x32x1xf32, #tpu.memory_space<vmem>>, vector<2x16x1xf32>
    %c3_69 = arith.constant 3 : index
    %c0_70 = arith.constant 0 : index
    %c0_71 = arith.constant 0 : index
    %106 = vector.load %arg9[%c3_69, %c0_70, %c0_71] : memref<5x1x32xf32, #tpu.memory_space<vmem>>, vector<1x1x32xf32>
    %107 = vector.shape_cast %106 : vector<1x1x32xf32> to vector<1x32xf32>
    %108 = vector.shape_cast %107 : vector<1x32xf32> to vector<1x1x32xf32>
    %109 = vector.broadcast %105 : vector<2x16x1xf32> to vector<2x16x32xf32>
    %110 = vector.broadcast %108 : vector<1x1x32xf32> to vector<2x16x32xf32>
    %111 = arith.mulf %109, %110 : vector<2x16x32xf32>
    %112 = arith.addf %104, %111 : vector<2x16x32xf32>
    %c0_72 = arith.constant 0 : index
    %c10 = arith.constant 10 : index
    %c0_73 = arith.constant 0 : index
    %113 = vector.load %arg34[%c0_72, %c10, %c0_73] : memref<2x32x1xf32, #tpu.memory_space<vmem>>, vector<2x16x1xf32>
    %c4 = arith.constant 4 : index
    %c0_74 = arith.constant 0 : index
    %c0_75 = arith.constant 0 : index
    %114 = vector.load %arg8[%c4, %c0_74, %c0_75] : memref<5x1x32xf32, #tpu.memory_space<vmem>>, vector<1x1x32xf32>
    %115 = vector.shape_cast %114 : vector<1x1x32xf32> to vector<1x32xf32>
    %116 = vector.shape_cast %115 : vector<1x32xf32> to vector<1x1x32xf32>
    %117 = vector.broadcast %113 : vector<2x16x1xf32> to vector<2x16x32xf32>
    %118 = vector.broadcast %116 : vector<1x1x32xf32> to vector<2x16x32xf32>
    %119 = arith.mulf %117, %118 : vector<2x16x32xf32>
    %120 = arith.addf %112, %119 : vector<2x16x32xf32>
    %c0_76 = arith.constant 0 : index
    %c10_77 = arith.constant 10 : index
    %c0_78 = arith.constant 0 : index
    %121 = vector.load %arg35[%c0_76, %c10_77, %c0_78] : memref<2x32x1xf32, #tpu.memory_space<vmem>>, vector<2x16x1xf32>
    %c4_79 = arith.constant 4 : index
    %c0_80 = arith.constant 0 : index
    %c0_81 = arith.constant 0 : index
    %122 = vector.load %arg9[%c4_79, %c0_80, %c0_81] : memref<5x1x32xf32, #tpu.memory_space<vmem>>, vector<1x1x32xf32>
    %123 = vector.shape_cast %122 : vector<1x1x32xf32> to vector<1x32xf32>
    %124 = vector.shape_cast %123 : vector<1x32xf32> to vector<1x1x32xf32>
    %125 = vector.broadcast %121 : vector<2x16x1xf32> to vector<2x16x32xf32>
    %126 = vector.broadcast %124 : vector<1x1x32xf32> to vector<2x16x32xf32>
    %127 = arith.mulf %125, %126 : vector<2x16x32xf32>
    %128 = arith.addf %120, %127 : vector<2x16x32xf32>
    %129 = vector.shape_cast %47 : vector<2x32xf32> to vector<2x1x32xf32>
    %130 = vector.broadcast %129 : vector<2x1x32xf32> to vector<2x16x32xf32>
    %131 = arith.addf %130, %128 : vector<2x16x32xf32>
    %c0_82 = arith.constant 0 : index
    %c0_83 = arith.constant 0 : index
    %c0_84 = arith.constant 0 : index
    %132 = vector.load %arg36[%c0_82, %c0_83, %c0_84] : memref<2x16x32xf32, #tpu.memory_space<vmem>>, vector<2x16x32xf32>
    %133 = arith.addf %131, %132 : vector<2x16x32xf32>
    %134 = math.tanh %133 : vector<2x16x32xf32>
    %c0_85 = arith.constant 0 : index
    %c0_86 = arith.constant 0 : index
    %135 = vector.load %arg7[%c0_85, %c0_86] : memref<32x1xf32, #tpu.memory_space<vmem>>, vector<32x1xf32>
    %cst_87 = arith.constant dense<0.000000e+00> : vector<2x16x1xf32>
    %136 = tpu.matmul %134, %135, %cst_87 {dimension_numbers = #tpu.dot_dimension_numbers<[2], [0], [0, 1], [1], [0, 0, 0, 1, 1, 1], [], []>} : vector<2x16x32xf32>, vector<32x1xf32>, vector<2x16x1xf32> -> vector<2x16x1xf32>
    %c0_88 = arith.constant 0 : index
    %c0_89 = arith.constant 0 : index
    %c0_90 = arith.constant 0 : index
    %137 = vector.load %arg4[%c0_88, %c0_89, %c0_90] : memref<2x16x1xf32, #tpu.memory_space<vmem>>, vector<2x16x1xf32>
    %cst_91 = arith.constant 5.000000e-01 : f32
    %138 = vector.broadcast %cst_91 : f32 to vector<2x16x1xf32>
    %139 = arith.cmpf ogt, %137, %138 : vector<2x16x1xf32>
    %cst_92 = arith.constant -1.000000e+30 : f32
    %140 = vector.broadcast %cst_92 : f32 to vector<2x16x1xf32>
    %141 = arith.select %139, %136, %140 : vector<2x16x1xi1>, vector<2x16x1xf32>
    %cst_93 = arith.constant dense<0xFF800000> : vector<2x1xf32>
    %142 = vector.multi_reduction <maximumf>, %141, %cst_93 [1] : vector<2x16x1xf32> to vector<2x1xf32>
    %143 = vector.shape_cast %142 : vector<2x1xf32> to vector<2x1x1xf32>
    %144 = vector.broadcast %143 : vector<2x1x1xf32> to vector<2x16x1xf32>
    %145 = arith.subf %141, %144 : vector<2x16x1xf32>
    %146 = math.exp %145 : vector<2x16x1xf32>
    %cst_94 = arith.constant dense<0.000000e+00> : vector<2x1xf32>
    %147 = vector.multi_reduction <add>, %146, %cst_94 [1] : vector<2x16x1xf32> to vector<2x1xf32>
    %148 = vector.shape_cast %147 : vector<2x1xf32> to vector<2x1x1xf32>
    %149 = vector.broadcast %148 : vector<2x1x1xf32> to vector<2x16x1xf32>
    %150 = arith.divf %146, %149 : vector<2x16x1xf32>
    %c0_95 = arith.constant 0 : index
    %c0_96 = arith.constant 0 : index
    %c0_97 = arith.constant 0 : index
    %151 = vector.load %arg3[%c0_95, %c0_96, %c0_97] : memref<2x16x32xf32, #tpu.memory_space<vmem>>, vector<2x16x32xf32>
    %152 = vector.broadcast %150 : vector<2x16x1xf32> to vector<2x16x32xf32>
    %153 = arith.mulf %152, %151 : vector<2x16x32xf32>
    %cst_98 = arith.constant dense<0.000000e+00> : vector<2x32xf32>
    %154 = vector.multi_reduction <add>, %153, %cst_98 [1] : vector<2x16x32xf32> to vector<2x32xf32>
    %c0_99 = arith.constant 0 : index
    %c0_100 = arith.constant 0 : index
    %155 = vector.load %arg33[%c0_99, %c0_100] : memref<2x32xf32, #tpu.memory_space<vmem>>, vector<2x32xf32>
    tpu.vector_store %arg33[%c0_99, %c0_100], %154 {strides = array<i32>} : memref<2x32xf32, #tpu.memory_space<vmem>>, vector<2x32xf32>,
    %c0_101 = arith.constant 0 : index
    %c8_102 = arith.constant 8 : index
    %c0_103 = arith.constant 0 : index
    %156 = vector.load %arg34[%c0_101, %c8_102, %c0_103] : memref<2x32x1xf32, #tpu.memory_space<vmem>>, vector<2x16x1xf32>
    tpu.vector_store %arg34[%c0_101, %c8_102, %c0_103], %150 {strides = array<i32>} : memref<2x32x1xf32, #tpu.memory_space<vmem>>, vector<2x16x1xf32>,
    %c0_104 = arith.constant 0 : index
    %c8_105 = arith.constant 8 : index
    %c0_106 = arith.constant 0 : index
    %157 = vector.load %arg35[%c0_104, %c8_105, %c0_106] : memref<2x32x1xf32, #tpu.memory_space<vmem>>, vector<2x16x1xf32>
    %158 = arith.addf %157, %150 : vector<2x16x1xf32>
    %c0_107 = arith.constant 0 : index
    %c8_108 = arith.constant 8 : index
    %c0_109 = arith.constant 0 : index
    %159 = vector.load %arg35[%c0_107, %c8_108, %c0_109] : memref<2x32x1xf32, #tpu.memory_space<vmem>>, vector<2x16x1xf32>
    tpu.vector_store %arg35[%c0_107, %c8_108, %c0_109], %158 {strides = array<i32>} : memref<2x32x1xf32, #tpu.memory_space<vmem>>, vector<2x16x1xf32>,
    %c0_110 = arith.constant 0 : index
    %c0_111 = arith.constant 0 : index
    %c0_112 = arith.constant 0 : index
    %160 = vector.load %arg1[%c0_110, %c0_111, %c0_112] : memref<1x2x16xf32, #tpu.memory_space<vmem>>, vector<1x2x16xf32>
    %161 = vector.shape_cast %160 : vector<1x2x16xf32> to vector<2x16xf32>
    %c0_113 = arith.constant 0 : index
    %c0_114 = arith.constant 0 : index
    %162 = vector.load %arg14[%c0_113, %c0_114] : memref<16x32xf32, #tpu.memory_space<vmem>>, vector<16x32xf32>
    %cst_115 = arith.constant dense<0.000000e+00> : vector<2x32xf32>
    %163 = tpu.matmul %161, %162, %cst_115 {dimension_numbers = #tpu.dot_dimension_numbers<[1], [0], [0], [1], [0, 0, 1, 1], [], []>} : vector<2x16xf32>, vector<16x32xf32>, vector<2x32xf32> -> vector<2x32xf32>
    %cst_116 = arith.constant 0.000000e+00 : f32
    %164 = vector.broadcast %cst_116 : f32 to vector<2x32xf32>
    %165 = arith.maximumf %163, %164 : vector<2x32xf32>
    %c0_117 = arith.constant 0 : index
    %c0_118 = arith.constant 0 : index
    %c0_119 = arith.constant 0 : index
    %c0_120 = arith.constant 0 : index
    %166 = vector.load %arg2[%c0_117, %c0_118, %c0_119, %c0_120] : memref<1x2x2x32xf32, #tpu.memory_space<vmem>>, vector<1x1x2x32xf32>
    %167 = vector.shape_cast %166 : vector<1x1x2x32xf32> to vector<2x32xf32>
    %168 = arith.mulf %165, %167 : vector<2x32xf32>
    %c0_121 = arith.constant 0 : index
    %c0_122 = arith.constant 0 : index
    %169 = vector.load %arg15[%c0_121, %c0_122] : memref<32x32xf32, #tpu.memory_space<vmem>>, vector<32x32xf32>
    %cst_123 = arith.constant dense<0.000000e+00> : vector<2x32xf32>
    %170 = tpu.matmul %168, %169, %cst_123 {dimension_numbers = #tpu.dot_dimension_numbers<[1], [0], [0], [1], [0, 0, 1, 1], [], []>} : vector<2x32xf32>, vector<32x32xf32>, vector<2x32xf32> -> vector<2x32xf32>
    %cst_124 = arith.constant 0.000000e+00 : f32
    %171 = vector.broadcast %cst_124 : f32 to vector<2x32xf32>
    %172 = arith.maximumf %170, %171 : vector<2x32xf32>
    %c0_125 = arith.constant 0 : index
    %c1_126 = arith.constant 1 : index
    %c0_127 = arith.constant 0 : index
    %c0_128 = arith.constant 0 : index
    %173 = vector.load %arg2[%c0_125, %c1_126, %c0_127, %c0_128] : memref<1x2x2x32xf32, #tpu.memory_space<vmem>>, vector<1x1x2x32xf32>
    %174 = vector.shape_cast %173 : vector<1x1x2x32xf32> to vector<2x32xf32>
    %175 = arith.mulf %172, %174 : vector<2x32xf32>
    %c0_129 = arith.constant 0 : index
    %c0_130 = arith.constant 0 : index
    %176 = vector.load %arg16[%c0_129, %c0_130] : memref<32x128xf32, #tpu.memory_space<vmem>>, vector<32x128xf32>
    %cst_131 = arith.constant dense<0.000000e+00> : vector<2x128xf32>
    %177 = tpu.matmul %175, %176, %cst_131 {dimension_numbers = #tpu.dot_dimension_numbers<[1], [0], [0], [1], [0, 0, 1, 1], [], []>} : vector<2x32xf32>, vector<32x128xf32>, vector<2x128xf32> -> vector<2x128xf32>
    %c0_132 = arith.constant 0 : index
    %c0_133 = arith.constant 0 : index
    %178 = vector.load %arg17[%c0_132, %c0_133] : memref<32x128xf32, #tpu.memory_space<vmem>>, vector<32x128xf32>
    %cst_134 = arith.constant dense<0.000000e+00> : vector<2x128xf32>
    %179 = tpu.matmul %154, %178, %cst_134 {dimension_numbers = #tpu.dot_dimension_numbers<[1], [0], [0], [1], [0, 0, 1, 1], [], []>} : vector<2x32xf32>, vector<32x128xf32>, vector<2x128xf32> -> vector<2x128xf32>
    %180 = arith.addf %177, %179 : vector<2x128xf32>
    %c0_135 = arith.constant 0 : index
    %c0_136 = arith.constant 0 : index
    %181 = vector.load %arg18[%c0_135, %c0_136] : memref<32x128xf32, #tpu.memory_space<vmem>>, vector<32x128xf32>
    %cst_137 = arith.constant dense<0.000000e+00> : vector<2x128xf32>
    %182 = tpu.matmul %3, %181, %cst_137 {dimension_numbers = #tpu.dot_dimension_numbers<[1], [0], [0], [1], [0, 0, 1, 1], [], []>} : vector<2x32xf32>, vector<32x128xf32>, vector<2x128xf32> -> vector<2x128xf32>
    %183 = arith.addf %180, %182 : vector<2x128xf32>
    %c0_138 = arith.constant 0 : index
    %c0_139 = arith.constant 0 : index
    %184 = vector.load %arg19[%c0_138, %c0_139] : memref<1x128xf32, #tpu.memory_space<vmem>>, vector<1x128xf32>
    %185 = vector.broadcast %184 : vector<1x128xf32> to vector<2x128xf32>
    %186 = arith.addf %183, %185 : vector<2x128xf32>
    %187 = vector.extract_strided_slice %186 {offsets = [0, 0], sizes = [2, 32], strides = [1, 1]} : vector<2x128xf32> to vector<2x32xf32>
    %188 = arith.negf %187 : vector<2x32xf32>
    %189 = math.exp %188 : vector<2x32xf32>
    %cst_140 = arith.constant 1.000000e+00 : f32
    %190 = vector.broadcast %cst_140 : f32 to vector<2x32xf32>
    %191 = arith.addf %190, %189 : vector<2x32xf32>
    %192 = arith.divf %190, %191 : vector<2x32xf32>
    %193 = vector.extract_strided_slice %186 {offsets = [0, 32], sizes = [2, 32], strides = [1, 1]} : vector<2x128xf32> to vector<2x32xf32>
    %194 = arith.negf %193 : vector<2x32xf32>
    %195 = math.exp %194 : vector<2x32xf32>
    %cst_141 = arith.constant 1.000000e+00 : f32
    %196 = vector.broadcast %cst_141 : f32 to vector<2x32xf32>
    %197 = arith.addf %196, %195 : vector<2x32xf32>
    %198 = arith.divf %196, %197 : vector<2x32xf32>
    %199 = vector.extract_strided_slice %186 {offsets = [0, 64], sizes = [2, 32], strides = [1, 1]} : vector<2x128xf32> to vector<2x32xf32>
    %200 = math.tanh %199 : vector<2x32xf32>
    %201 = vector.extract_strided_slice %186 {offsets = [0, 96], sizes = [2, 32], strides = [1, 1]} : vector<2x128xf32> to vector<2x32xf32>
    %202 = arith.negf %201 : vector<2x32xf32>
    %203 = math.exp %202 : vector<2x32xf32>
    %cst_142 = arith.constant 1.000000e+00 : f32
    %204 = vector.broadcast %cst_142 : f32 to vector<2x32xf32>
    %205 = arith.addf %204, %203 : vector<2x32xf32>
    %206 = arith.divf %204, %205 : vector<2x32xf32>
    %207 = arith.mulf %198, %4 : vector<2x32xf32>
    %208 = arith.mulf %192, %200 : vector<2x32xf32>
    %209 = arith.addf %207, %208 : vector<2x32xf32>
    %210 = math.tanh %209 : vector<2x32xf32>
    %211 = arith.mulf %206, %210 : vector<2x32xf32>
    %c0_143 = arith.constant 0 : index
    %c0_144 = arith.constant 0 : index
    %212 = vector.load %arg31[%c0_143, %c0_144] : memref<2x32xf32, #tpu.memory_space<vmem>>, vector<2x32xf32>
    tpu.vector_store %arg31[%c0_143, %c0_144], %211 {strides = array<i32>} : memref<2x32xf32, #tpu.memory_space<vmem>>, vector<2x32xf32>,
    %c0_145 = arith.constant 0 : index
    %c0_146 = arith.constant 0 : index
    %213 = vector.load %arg32[%c0_145, %c0_146] : memref<2x32xf32, #tpu.memory_space<vmem>>, vector<2x32xf32>
    tpu.vector_store %arg32[%c0_145, %c0_146], %209 {strides = array<i32>} : memref<2x32xf32, #tpu.memory_space<vmem>>, vector<2x32xf32>,
    %c0_147 = arith.constant 0 : index
    %c0_148 = arith.constant 0 : index
    %214 = vector.load %arg20[%c0_147, %c0_148] : memref<32x16xf32, #tpu.memory_space<vmem>>, vector<32x16xf32>
    %cst_149 = arith.constant dense<0.000000e+00> : vector<2x16xf32>
    %215 = tpu.matmul %211, %214, %cst_149 {dimension_numbers = #tpu.dot_dimension_numbers<[1], [0], [0], [1], [0, 0, 1, 1], [], []>} : vector<2x32xf32>, vector<32x16xf32>, vector<2x16xf32> -> vector<2x16xf32>
    %c0_150 = arith.constant 0 : index
    %c0_151 = arith.constant 0 : index
    %216 = vector.load %arg21[%c0_150, %c0_151] : memref<32x16xf32, #tpu.memory_space<vmem>>, vector<32x16xf32>
    %cst_152 = arith.constant dense<0.000000e+00> : vector<2x16xf32>
    %217 = tpu.matmul %154, %216, %cst_152 {dimension_numbers = #tpu.dot_dimension_numbers<[1], [0], [0], [1], [0, 0, 1, 1], [], []>} : vector<2x32xf32>, vector<32x16xf32>, vector<2x16xf32> -> vector<2x16xf32>
    %218 = arith.addf %215, %217 : vector<2x16xf32>
    %c0_153 = arith.constant 0 : index
    %c0_154 = arith.constant 0 : index
    %219 = vector.load %arg22[%c0_153, %c0_154] : memref<1x16xf32, #tpu.memory_space<vmem>>, vector<1x16xf32>
    %220 = vector.broadcast %219 : vector<1x16xf32> to vector<2x16xf32>
    %221 = arith.addf %218, %220 : vector<2x16xf32>
    %c0_155 = arith.constant 0 : index
    %c0_156 = arith.constant 0 : index
    %222 = vector.load %arg23[%c0_155, %c0_156] : memref<32x1xf32, #tpu.memory_space<vmem>>, vector<32x1xf32>
    %cst_157 = arith.constant dense<0.000000e+00> : vector<2x1xf32>
    %223 = tpu.matmul %211, %222, %cst_157 {dimension_numbers = #tpu.dot_dimension_numbers<[1], [0], [0], [1], [0, 0, 1, 1], [], []>} : vector<2x32xf32>, vector<32x1xf32>, vector<2x1xf32> -> vector<2x1xf32>
    %c0_158 = arith.constant 0 : index
    %c0_159 = arith.constant 0 : index
    %224 = vector.load %arg24[%c0_158, %c0_159] : memref<32x1xf32, #tpu.memory_space<vmem>>, vector<32x1xf32>
    %cst_160 = arith.constant dense<0.000000e+00> : vector<2x1xf32>
    %225 = tpu.matmul %154, %224, %cst_160 {dimension_numbers = #tpu.dot_dimension_numbers<[1], [0], [0], [1], [0, 0, 1, 1], [], []>} : vector<2x32xf32>, vector<32x1xf32>, vector<2x1xf32> -> vector<2x1xf32>
    %226 = arith.addf %223, %225 : vector<2x1xf32>
    %c0_161 = arith.constant 0 : index
    %c0_162 = arith.constant 0 : index
    %227 = vector.load %arg25[%c0_161, %c0_162] : memref<1x1xf32, #tpu.memory_space<vmem>>, vector<1x1xf32>
    %228 = vector.broadcast %227 : vector<1x1xf32> to vector<2x1xf32>
    %229 = arith.addf %226, %228 : vector<2x1xf32>
    %c0_163 = arith.constant 0 : index
    %c0_164 = arith.constant 0 : index
    %c0_165 = arith.constant 0 : index
    %230 = vector.load %arg26[%c0_163, %c0_164, %c0_165] : memref<1x2x16xf32, #tpu.memory_space<vmem>>, vector<1x2x16xf32>
    %231 = vector.shape_cast %230 : vector<1x2x16xf32> to vector<2x16xf32>
    %232 = vector.shape_cast %221 : vector<2x16xf32> to vector<1x2x16xf32>
    tpu.vector_store %arg26[%c0_163, %c0_164, %c0_165], %232 {strides = array<i32>} : memref<1x2x16xf32, #tpu.memory_space<vmem>>, vector<1x2x16xf32>,
    %c0_166 = arith.constant 0 : index
    %c0_167 = arith.constant 0 : index
    %c0_168 = arith.constant 0 : index
    %233 = vector.load %arg27[%c0_166, %c0_167, %c0_168] : memref<1x2x1xf32, #tpu.memory_space<vmem>>, vector<1x2x1xf32>
    %234 = vector.shape_cast %233 : vector<1x2x1xf32> to vector<2x1xf32>
    %235 = vector.shape_cast %229 : vector<2x1xf32> to vector<1x2x1xf32>
    tpu.vector_store %arg27[%c0_166, %c0_167, %c0_168], %235 {strides = array<i32>} : memref<1x2x1xf32, #tpu.memory_space<vmem>>, vector<1x2x1xf32>,
    %c0_169 = arith.constant 0 : index
    %c0_170 = arith.constant 0 : index
    %c0_171 = arith.constant 0 : index
    %c0_172 = arith.constant 0 : index
    %236 = vector.load %arg28[%c0_169, %c0_170, %c0_171, %c0_172] : memref<1x2x16x1xf32, #tpu.memory_space<vmem>>, vector<1x2x16x1xf32>
    %237 = vector.shape_cast %236 : vector<1x2x16x1xf32> to vector<2x16x1xf32>
    %238 = vector.shape_cast %150 : vector<2x16x1xf32> to vector<1x2x16x1xf32>
    tpu.vector_store %arg28[%c0_169, %c0_170, %c0_171, %c0_172], %238 {strides = array<i32>} : memref<1x2x16x1xf32, #tpu.memory_space<vmem>>, vector<1x2x16x1xf32>,
    return
  }
  func.func @transform_0(%arg0: i32) -> (i32, i32, i32) {
    %c0_i32 = arith.constant 0 : i32
    %c0_i32_0 = arith.constant 0 : i32
    %c0_i32_1 = arith.constant 0 : i32
    return %arg0, %c0_i32, %c0_i32_0 : i32, i32, i32
  }
  func.func @transform_1(%arg0: i32) -> (i32, i32, i32, i32) {
    %c0_i32 = arith.constant 0 : i32
    %c0_i32_0 = arith.constant 0 : i32
    %c0_i32_1 = arith.constant 0 : i32
    %c0_i32_2 = arith.constant 0 : i32
    return %arg0, %c0_i32, %c0_i32_0, %c0_i32_1 : i32, i32, i32, i32
  }
  func.func @transform_2(%arg0: i32) -> (i32, i32, i32) {
    %c0_i32 = arith.constant 0 : i32
    %c0_i32_0 = arith.constant 0 : i32
    %c0_i32_1 = arith.constant 0 : i32
    %c0_i32_2 = arith.constant 0 : i32
    return %c0_i32, %c0_i32_0, %c0_i32_1 : i32, i32, i32
  }
  func.func @transform_3(%arg0: i32) -> (i32, i32, i32) {
    %c0_i32 = arith.constant 0 : i32
    %c0_i32_0 = arith.constant 0 : i32
    %c0_i32_1 = arith.constant 0 : i32
    %c0_i32_2 = arith.constant 0 : i32
    return %c0_i32, %c0_i32_0, %c0_i32_1 : i32, i32, i32
  }
  func.func @transform_4(%arg0: i32) -> (i32, i32) {
    %c0_i32 = arith.constant 0 : i32
    %c0_i32_0 = arith.constant 0 : i32
    %c0_i32_1 = arith.constant 0 : i32
    return %c0_i32, %c0_i32_0 : i32, i32
  }
  func.func @transform_5(%arg0: i32) -> (i32, i32) {
    %c0_i32 = arith.constant 0 : i32
    %c0_i32_0 = arith.constant 0 : i32
    %c0_i32_1 = arith.constant 0 : i32
    return %c0_i32, %c0_i32_0 : i32, i32
  }
  func.func @transform_6(%arg0: i32) -> (i32, i32) {
    %c0_i32 = arith.constant 0 : i32
    %c0_i32_0 = arith.constant 0 : i32
    %c0_i32_1 = arith.constant 0 : i32
    return %c0_i32, %c0_i32_0 : i32, i32
  }
  func.func @transform_7(%arg0: i32) -> (i32, i32, i32) {
    %c0_i32 = arith.constant 0 : i32
    %c0_i32_0 = arith.constant 0 : i32
    %c0_i32_1 = arith.constant 0 : i32
    %c0_i32_2 = arith.constant 0 : i32
    return %c0_i32, %c0_i32_0, %c0_i32_1 : i32, i32, i32
  }
  func.func @transform_8(%arg0: i32) -> (i32, i32, i32) {
    %c0_i32 = arith.constant 0 : i32
    %c0_i32_0 = arith.constant 0 : i32
    %c0_i32_1 = arith.constant 0 : i32
    %c0_i32_2 = arith.constant 0 : i32
    return %c0_i32, %c0_i32_0, %c0_i32_1 : i32, i32, i32
  }
  func.func @transform_9(%arg0: i32) -> (i32, i32) {
    %c0_i32 = arith.constant 0 : i32
    %c0_i32_0 = arith.constant 0 : i32
    %c0_i32_1 = arith.constant 0 : i32
    return %c0_i32, %c0_i32_0 : i32, i32
  }
  func.func @transform_10(%arg0: i32) -> (i32, i32) {
    %c0_i32 = arith.constant 0 : i32
    %c0_i32_0 = arith.constant 0 : i32
    %c0_i32_1 = arith.constant 0 : i32
    return %c0_i32, %c0_i32_0 : i32, i32
  }
  func.func @transform_11(%arg0: i32) -> (i32, i32) {
    %c0_i32 = arith.constant 0 : i32
    %c0_i32_0 = arith.constant 0 : i32
    %c0_i32_1 = arith.constant 0 : i32
    return %c0_i32, %c0_i32_0 : i32, i32
  }
  func.func @transform_12(%arg0: i32) -> (i32, i32) {
    %c0_i32 = arith.constant 0 : i32
    %c0_i32_0 = arith.constant 0 : i32
    %c0_i32_1 = arith.constant 0 : i32
    return %c0_i32, %c0_i32_0 : i32, i32
  }
  func.func @transform_13(%arg0: i32) -> (i32, i32) {
    %c0_i32 = arith.constant 0 : i32
    %c0_i32_0 = arith.constant 0 : i32
    %c0_i32_1 = arith.constant 0 : i32
    return %c0_i32, %c0_i32_0 : i32, i32
  }
  func.func @transform_14(%arg0: i32) -> (i32, i32) {
    %c0_i32 = arith.constant 0 : i32
    %c0_i32_0 = arith.constant 0 : i32
    %c0_i32_1 = arith.constant 0 : i32
    return %c0_i32, %c0_i32_0 : i32, i32
  }
  func.func @transform_15(%arg0: i32) -> (i32, i32) {
    %c0_i32 = arith.constant 0 : i32
    %c0_i32_0 = arith.constant 0 : i32
    %c0_i32_1 = arith.constant 0 : i32
    return %c0_i32, %c0_i32_0 : i32, i32
  }
  func.func @transform_16(%arg0: i32) -> (i32, i32) {
    %c0_i32 = arith.constant 0 : i32
    %c0_i32_0 = arith.constant 0 : i32
    %c0_i32_1 = arith.constant 0 : i32
    return %c0_i32, %c0_i32_0 : i32, i32
  }
  func.func @transform_17(%arg0: i32) -> (i32, i32) {
    %c0_i32 = arith.constant 0 : i32
    %c0_i32_0 = arith.constant 0 : i32
    %c0_i32_1 = arith.constant 0 : i32
    return %c0_i32, %c0_i32_0 : i32, i32
  }
  func.func @transform_18(%arg0: i32) -> (i32, i32) {
    %c0_i32 = arith.constant 0 : i32
    %c0_i32_0 = arith.constant 0 : i32
    %c0_i32_1 = arith.constant 0 : i32
    return %c0_i32, %c0_i32_0 : i32, i32
  }
  func.func @transform_19(%arg0: i32) -> (i32, i32) {
    %c0_i32 = arith.constant 0 : i32
    %c0_i32_0 = arith.constant 0 : i32
    %c0_i32_1 = arith.constant 0 : i32
    return %c0_i32, %c0_i32_0 : i32, i32
  }
  func.func @transform_20(%arg0: i32) -> (i32, i32) {
    %c0_i32 = arith.constant 0 : i32
    %c0_i32_0 = arith.constant 0 : i32
    %c0_i32_1 = arith.constant 0 : i32
    return %c0_i32, %c0_i32_0 : i32, i32
  }
  func.func @transform_21(%arg0: i32) -> (i32, i32) {
    %c0_i32 = arith.constant 0 : i32
    %c0_i32_0 = arith.constant 0 : i32
    %c0_i32_1 = arith.constant 0 : i32
    return %c0_i32, %c0_i32_0 : i32, i32
  }
  func.func @transform_22(%arg0: i32) -> (i32, i32) {
    %c0_i32 = arith.constant 0 : i32
    %c0_i32_0 = arith.constant 0 : i32
    %c0_i32_1 = arith.constant 0 : i32
    return %c0_i32, %c0_i32_0 : i32, i32
  }
  func.func @transform_23(%arg0: i32) -> (i32, i32) {
    %c0_i32 = arith.constant 0 : i32
    %c0_i32_0 = arith.constant 0 : i32
    %c0_i32_1 = arith.constant 0 : i32
    return %c0_i32, %c0_i32_0 : i32, i32
  }
  func.func @transform_24(%arg0: i32) -> (i32, i32) {
    %c0_i32 = arith.constant 0 : i32
    %c0_i32_0 = arith.constant 0 : i32
    %c0_i32_1 = arith.constant 0 : i32
    return %c0_i32, %c0_i32_0 : i32, i32
  }
  func.func @transform_25(%arg0: i32) -> (i32, i32, i32) {
    %c0_i32 = arith.constant 0 : i32
    %c0_i32_0 = arith.constant 0 : i32
    %c0_i32_1 = arith.constant 0 : i32
    return %arg0, %c0_i32, %c0_i32_0 : i32, i32, i32
  }
  func.func @transform_26(%arg0: i32) -> (i32, i32, i32) {
    %c0_i32 = arith.constant 0 : i32
    %c0_i32_0 = arith.constant 0 : i32
    %c0_i32_1 = arith.constant 0 : i32
    return %arg0, %c0_i32, %c0_i32_0 : i32, i32, i32
  }
  func.func @transform_27(%arg0: i32) -> (i32, i32, i32, i32) {
    %c0_i32 = arith.constant 0 : i32
    %c0_i32_0 = arith.constant 0 : i32
    %c0_i32_1 = arith.constant 0 : i32
    %c0_i32_2 = arith.constant 0 : i32
    return %arg0, %c0_i32, %c0_i32_0, %c0_i32_1 : i32, i32, i32, i32
  }
}

</mosaic_0001>

<llo_original>
// kernel: tpu_custom_call.1
$region0: #{tpu_custom_call.1}
  #allocation0 [shape = 'u32[]', space=smem, size = 0x4, offset = 0x4, fixed_abs, tag = 'smem constant byte address 0x4 - core index']
  #allocation1 [shape = 'u32[144,128]{1,0:T(1,128)}', space=vmem, size = 0x12000, scoped, tag = 'internal scratch']
  #allocation2 [shape = 'f32[2,32]{1,0:T(2,128)}', space=vmem, size = 0x400, scoped, tag = 'scratch operand']
  #allocation3 [shape = 'f32[2,32]{1,0:T(2,128)}', space=vmem, size = 0x400, scoped, tag = 'scratch operand']
  #allocation4 [shape = 'f32[2,32]{1,0:T(2,128)}', space=vmem, size = 0x400, scoped, tag = 'scratch operand']
  #allocation5 [shape = 'f32[2,32]{1,0:T(2,128)}', space=vmem, size = 0x400, scoped, tag = 'scratch operand']
  #allocation6 [shape = 'f32[2,32]{1,0:T(2,128)}', space=vmem, size = 0x400, scoped, tag = 'scratch operand']
  #allocation7 [shape = 'f32[2,32,1]{2,1,0:T(8,128)}', space=vmem, size = 0x8000, scoped, tag = 'scratch operand']
  #allocation8 [shape = 'f32[2,32,1]{2,1,0:T(8,128)}', space=vmem, size = 0x8000, scoped, tag = 'scratch operand']
  #allocation9 [shape = 'f32[2,16,32]{2,1,0:T(8,128)}', space=vmem, size = 0x4000, scoped, tag = 'scratch operand']
  #allocation10 [shape = 'f32[1,1]{1,0:T(1,128)S(1)}', space=vmem, size = 0x200, scoped, tag = 'scoped memory for tpu_custom_call.1']
  %s0 = inlined_call_operand.hbm [shape: f32[8,2,16], index: 0, kind: input, shape index: {}]
  %s1 = inlined_call_operand.vmem [shape: f32[8,2,2,32], index: 1, kind: input, shape index: {}]
  %s2 = inlined_call_operand.vmem [shape: f32[2,16,32], index: 2, kind: input, shape index: {}]
  %s3 = inlined_call_operand.vmem [shape: f32[2,16,1], index: 3, kind: input, shape index: {}]
  %s4 = inlined_call_operand.vmem [shape: f32[32,32], index: 4, kind: input, shape index: {}]
  %s5 = inlined_call_operand.vmem [shape: f32[32,32], index: 5, kind: input, shape index: {}]
  %s6 = inlined_call_operand.vmem [shape: f32[32,1], index: 6, kind: input, shape index: {}]
  %s7 = inlined_call_operand.hbm [shape: f32[5,1,32], index: 7, kind: input, shape index: {}]
  %s8 = inlined_call_operand.hbm [shape: f32[5,1,32], index: 8, kind: input, shape index: {}]
  %s9 = inlined_call_operand.vmem [shape: f32[32,128], index: 9, kind: input, shape index: {}]
  %s10 = inlined_call_operand.vmem [shape: f32[32,128], index: 10, kind: input, shape index: {}]
  %s11 = inlined_call_operand.vmem [shape: f32[32,128], index: 11, kind: input, shape index: {}]
  %s12 = inlined_call_operand.hbm [shape: f32[1,128], index: 12, kind: input, shape index: {}]
  %s13 = inlined_call_operand.hbm [shape: f32[16,32], index: 13, kind: input, shape index: {}]
  %s14 = inlined_call_operand.vmem [shape: f32[32,32], index: 14, kind: input, shape index: {}]
  %s15 = inlined_call_operand.vmem [shape: f32[32,128], index: 15, kind: input, shape index: {}]
  %s16 = inlined_call_operand.hbm [shape: f32[32,128], index: 16, kind: input, shape index: {}]
  %s17 = inlined_call_operand.hbm [shape: f32[32,128], index: 17, kind: input, shape index: {}]
  %s18 = inlined_call_operand.hbm [shape: f32[1,128], index: 18, kind: input, shape index: {}]
  %s19 = inlined_call_operand.vmem [shape: f32[32,16], index: 19, kind: input, shape index: {}]
  %s20 = inlined_call_operand.vmem [shape: f32[32,16], index: 20, kind: input, shape index: {}]
  %s21 = inlined_call_operand.vmem [shape: f32[1,16], index: 21, kind: input, shape index: {}]
  %s22 = inlined_call_operand.vmem [shape: f32[32,1], index: 22, kind: input, shape index: {}]
  %s23 = inlined_call_operand.vmem [shape: f32[32,1], index: 23, kind: input, shape index: {}]
  %s24 = inlined_call_operand.<no memory space> [shape: f32[1,1], index: 24, kind: input, shape index: {}]
  %s25 = inlined_call_operand.hbm [shape: f32[8,2,16], index: 25, kind: output, shape index: {0}]
  %s26 = inlined_call_operand.vmem [shape: f32[8,2,1], index: 26, kind: output, shape index: {1}]
  %s27 = inlined_call_operand.vmem [shape: f32[8,2,16,1], index: 27, kind: output, shape index: {2}]
  %28 = xla_tuple %s25, %s26, %s27
  %s29 = sld [smem:[#allocation0]]
  $region185: #{tpu_custom_call.1} parent=0
    _
  %s31 = ssub.s32 1, %s29
  %s32 = scalar_select 0, %s31, %s29
  %v33 = vstv %s24
  %34 = vst [vmem:[#allocation10] sm:$0x1] %v33
  $region1: #{tpu_custom_call.1} parent=0
    #allocation11 [shape = 'u8[2048]{0}', space=vmem, size = 0x800, scoped, tag = 'input window, operand 0']
    #allocation12 [shape = 's32[2]{0}', space=sflag, size = 0x8, scoped, tag = 'scoped memory for tpu_custom_call.1']
    #allocation13 [shape = 's32[2]{0}', space=sflag, size = 0x8, scoped, tag = 'scoped memory for tpu_custom_call.1']
    #allocation14 [shape = 'u8[2560]{0}', space=vmem, size = 0xc00, scoped, tag = 'input window, operand 7, single buffered']
    #allocation15 [shape = 's32[1]{0}', space=sflag, size = 0x4, scoped, tag = 'scoped memory for tpu_custom_call.1']
    #allocation16 [shape = 'u8[2560]{0}', space=vmem, size = 0xc00, scoped, tag = 'input window, operand 8, single buffered']
    #allocation17 [shape = 'u8[512]{0}', space=vmem, size = 0x400, scoped, tag = 'input window, operand 12, single buffered']
    #allocation18 [shape = 's32[1]{0}', space=sflag, size = 0x4, scoped, tag = 'scoped memory for tpu_custom_call.1']
    #allocation19 [shape = 'u8[8192]{0}', space=vmem, size = 0x2000, scoped, tag = 'input window, operand 13, single buffered']
    #allocation20 [shape = 'u8[16384]{0}', space=vmem, size = 0x4000, scoped, tag = 'input window, operand 16, single buffered']
    #allocation21 [shape = 's32[1]{0}', space=sflag, size = 0x4, scoped, tag = 'scoped memory for tpu_custom_call.1']
    #allocation22 [shape = 'u8[16384]{0}', space=vmem, size = 0x4000, scoped, tag = 'input window, operand 17, single buffered']
    #allocation23 [shape = 'u8[512]{0}', space=vmem, size = 0x400, scoped, tag = 'input window, operand 18, single buffered']
    #allocation24 [shape = 's32[1]{0}', space=sflag, size = 0x4, scoped, tag = 'scoped memory for tpu_custom_call.1']
    #allocation25 [shape = 'u8[2048]{0}', space=vmem, size = 0x800, scoped, tag = 'output window, operand 0']
    %35 = vsyncpa [#allocation12], 0
    %s36 = scalar_lea.sflag [#allocation12], 1
    %37 = vsyncpa %s36, 0
    %38 = vsyncpa [#allocation15], 0
    %39 = vsyncpa [#allocation18], 0
    %40 = vsyncpa [#allocation21], 0
    %41 = vsyncpa [#allocation24], 0
    %42 = vsyncpa [#allocation13], 0
    %s43 = scalar_lea.sflag [#allocation13], 1
    %44 = vsyncpa %s43, 0
    loop: start=0, step=1, limit=10
    $region2: #{tpu_custom_call.1} parent=1 // loop_pre_header
      _
    $region3: #{tpu_custom_call.1} parent=1 // loop_header
      %s46 = sphi 0, %s50
      %p47 = scmp.ge.s32.totalorder %s46, 10
      %s56 = sphi 0, %s58
      %s59 = sphi 0, %s56
      %s60 = sphi 0, %s59
      %s76 = sphi 0, %s60
      %s82 = sphi 0, %s84
      %s85 = sphi 0, %s82
      %s86 = sphi 0, %s85
      %s102 = sphi 0, %s86
      %s106 = sphi 0, %s106
      %s108 = sphi 0, %s106
      %s109 = sphi 0, %s108
      %s123 = sphi 0, %s109
      %s127 = sphi 0, %s127
      %s129 = sphi 0, %s127
      %s130 = sphi 0, %s129
      %s144 = sphi 0, %s130
      %s148 = sphi 0, %s148
      %s150 = sphi 0, %s148
      %s151 = sphi 0, %s150
      %s165 = sphi 0, %s151
      %s169 = sphi 0, %s169
      %s171 = sphi 0, %s169
      %s172 = sphi 0, %s171
      %s186 = sphi 0, %s172
      %s190 = sphi 0, %s190
      %s192 = sphi 0, %s190
      %s193 = sphi 0, %s192
      %s207 = sphi 0, %s193
      %s211 = sphi 0, %s211
      %s213 = sphi 0, %s211
      %s214 = sphi 0, %s213
      %s228 = sphi 0, %s214
      %s232 = sphi 0, %s232
      %s234 = sphi 0, %s232
      %s235 = sphi 0, %s234
      %s249 = sphi 0, %s235
      %s253 = sphi 0, %s253
      %s255 = sphi 0, %s253
      %s256 = sphi 0, %s255
      %s270 = sphi 0, %s256
      %s274 = sphi 0, %s274
      %s276 = sphi 0, %s274
      %s277 = sphi 0, %s276
      %s291 = sphi 0, %s277
      %s295 = sphi 0, %s295
      %s297 = sphi 0, %s295
      %s298 = sphi 0, %s297
      %s312 = sphi 0, %s298
      %s316 = sphi 0, %s316
      %s318 = sphi 0, %s316
      %s319 = sphi 0, %s318
      %s333 = sphi 0, %s319
      %s337 = sphi 0, %s337
      %s339 = sphi 0, %s337
      %s340 = sphi 0, %s339
      %s354 = sphi 0, %s340
      %s358 = sphi 0, %s358
      %s360 = sphi 0, %s358
      %s361 = sphi 0, %s360
      %s375 = sphi 0, %s361
      %s379 = sphi 0, %s379
      %s381 = sphi 0, %s379
      %s382 = sphi 0, %s381
      %s396 = sphi 0, %s382
      %s400 = sphi 0, %s400
      %s402 = sphi 0, %s400
      %s403 = sphi 0, %s402
      %s417 = sphi 0, %s403
      %s421 = sphi 0, %s421
      %s423 = sphi 0, %s421
      %s424 = sphi 0, %s423
      %s438 = sphi 0, %s424
      %s442 = sphi 0, %s442
      %s444 = sphi 0, %s442
      %s445 = sphi 0, %s444
      %s459 = sphi 0, %s445
      %s463 = sphi 0, %s463
      %s465 = sphi 0, %s463
      %s466 = sphi 0, %s465
      %s480 = sphi 0, %s466
      %s484 = sphi 0, %s484
      %s486 = sphi 0, %s484
      %s487 = sphi 0, %s486
      %s501 = sphi 0, %s487
      %s505 = sphi 0, %s505
      %s507 = sphi 0, %s505
      %s508 = sphi 0, %s507
      %s522 = sphi 0, %s508
      %s526 = sphi 0, %s526
      %s528 = sphi 0, %s526
      %s529 = sphi 0, %s528
      %s543 = sphi 0, %s529
      %s547 = sphi 0, %s547
      %s549 = sphi 0, %s547
      %s550 = sphi 0, %s549
      %s564 = sphi 0, %s550
      %s568 = sphi 0, %s568
      %s570 = sphi 0, %s568
      %s571 = sphi 0, %s570
      %s585 = sphi 0, %s571
      %s591 = sphi 0, %s593
      %s594 = sphi 0, %s591
      %s595 = sphi 0, %s594
      %s611 = sphi 0, %s595
      %s617 = sphi 0, %s619
      %s620 = sphi 0, %s617
      %s621 = sphi 0, %s620
      %s637 = sphi 0, %s621
      %s643 = sphi 0, %s645
      %s646 = sphi 0, %s643
      %s647 = sphi 0, %s646
      %s663 = sphi 0, %s647
    $region4: #{tpu_custom_call.1} parent=1 // loop_header_branch
      %49 = sbr.rel (%p47) target = $region8
    $region5: #{tpu_custom_call.1} parent=1 // loop_body
      %s51 = ssub.s32 %s46, 1
      %s52 = ssub.s32 %s46, 2
      %s53 = sadd.s32 %s46, 1
      %s54 = ssub.s32 %s46, %s53
      %p55 = scmp.eq.s32.totalorder %s54, 0
      %s57 = sadd.s32 %s56, 1
      %s58 = scalar_select %p55, %s56, %s57
      %p61 = pneg %p55
      %p62 = scmp.eq.s32.totalorder %s46, 7
      %p63 = por %p61, %p62
      %p64 = scmp.ne.s32.totalorder %s56, %s59
      %p65 = scmp.eq.s32.totalorder %s46, 0
      %p66 = por %p64, %p65
      %p67 = scmp.ne.s32.totalorder %s56, %s59
      %p68 = scmp.eq.s32.totalorder %s51, 7
      %p69 = por %p67, %p68
      %p70 = scmp.ne.s32.totalorder %s59, %s60
      %p71 = scmp.eq.s32.totalorder %s51, 0
      %p72 = por %p70, %p71
      %p73 = scmp.ne.s32.totalorder %s59, %s60
      %p74 = scmp.eq.s32.totalorder %s52, 7
      %p75 = por %p73, %p74
      %p77 = scmp.ne.s32.totalorder %s60, %s76
      %p78 = scmp.eq.s32.totalorder %s52, 0
      %p79 = por %p77, %p78
      %s80 = ssub.s32 %s46, %s53
      %p81 = scmp.eq.s32.totalorder %s80, 0
      %s83 = sadd.s32 %s82, 1
      %s84 = scalar_select %p81, %s82, %s83
      %p87 = pneg %p81
      %p88 = scmp.eq.s32.totalorder %s46, 7
      %p89 = por %p87, %p88
      %p90 = scmp.ne.s32.totalorder %s82, %s85
      %p91 = scmp.eq.s32.totalorder %s46, 0
      %p92 = por %p90, %p91
      %p93 = scmp.ne.s32.totalorder %s82, %s85
      %p94 = scmp.eq.s32.totalorder %s51, 7
      %p95 = por %p93, %p94
      %p96 = scmp.ne.s32.totalorder %s85, %s86
      %p97 = scmp.eq.s32.totalorder %s51, 0
      %p98 = por %p96, %p97
      %p99 = scmp.ne.s32.totalorder %s85, %s86
      %p100 = scmp.eq.s32.totalorder %s52, 7
      %p101 = por %p99, %p100
      %p103 = scmp.ne.s32.totalorder %s86, %s102
      %p104 = scmp.eq.s32.totalorder %s52, 0
      %p105 = por %p103, %p104
      %s107 = sadd.s32 %s106, 1
      %p110 = scmp.eq.s32.totalorder %s46, 7
      %p111 = scmp.ne.s32.totalorder %s106, %s108
      %p112 = scmp.eq.s32.totalorder %s46, 0
      %p113 = por %p111, %p112
      %p114 = scmp.ne.s32.totalorder %s106, %s108
      %p115 = scmp.eq.s32.totalorder %s51, 7
      %p116 = por %p114, %p115
      %p117 = scmp.ne.s32.totalorder %s108, %s109
      %p118 = scmp.eq.s32.totalorder %s51, 0
      %p119 = por %p117, %p118
      %p120 = scmp.ne.s32.totalorder %s108, %s109
      %p121 = scmp.eq.s32.totalorder %s52, 7
      %p122 = por %p120, %p121
      %p124 = scmp.ne.s32.totalorder %s109, %s123
      %p125 = scmp.eq.s32.totalorder %s52, 0
      %p126 = por %p124, %p125
      %s128 = sadd.s32 %s127, 1
      %p131 = scmp.eq.s32.totalorder %s46, 7
      %p132 = scmp.ne.s32.totalorder %s127, %s129
      %p133 = scmp.eq.s32.totalorder %s46, 0
      %p134 = por %p132, %p133
      %p135 = scmp.ne.s32.totalorder %s127, %s129
      %p136 = scmp.eq.s32.totalorder %s51, 7
      %p137 = por %p135, %p136
      %p138 = scmp.ne.s32.totalorder %s129, %s130
      %p139 = scmp.eq.s32.totalorder %s51, 0
      %p140 = por %p138, %p139
      %p141 = scmp.ne.s32.totalorder %s129, %s130
      %p142 = scmp.eq.s32.totalorder %s52, 7
      %p143 = por %p141, %p142
      %p145 = scmp.ne.s32.totalorder %s130, %s144
      %p146 = scmp.eq.s32.totalorder %s52, 0
      %p147 = por %p145, %p146
      %s149 = sadd.s32 %s148, 1
      %p152 = scmp.eq.s32.totalorder %s46, 7
      %p153 = scmp.ne.s32.totalorder %s148, %s150
      %p154 = scmp.eq.s32.totalorder %s46, 0
      %p155 = por %p153, %p154
      %p156 = scmp.ne.s32.totalorder %s148, %s150
      %p157 = scmp.eq.s32.totalorder %s51, 7
      %p158 = por %p156, %p157
      %p159 = scmp.ne.s32.totalorder %s150, %s151
      %p160 = scmp.eq.s32.totalorder %s51, 0
      %p161 = por %p159, %p160
      %p162 = scmp.ne.s32.totalorder %s150, %s151
      %p163 = scmp.eq.s32.totalorder %s52, 7
      %p164 = por %p162, %p163
      %p166 = scmp.ne.s32.totalorder %s151, %s165
      %p167 = scmp.eq.s32.totalorder %s52, 0
      %p168 = por %p166, %p167
      %s170 = sadd.s32 %s169, 1
      %p173 = scmp.eq.s32.totalorder %s46, 7
      %p174 = scmp.ne.s32.totalorder %s169, %s171
      %p175 = scmp.eq.s32.totalorder %s46, 0
      %p176 = por %p174, %p175
      %p177 = scmp.ne.s32.totalorder %s169, %s171
      %p178 = scmp.eq.s32.totalorder %s51, 7
      %p179 = por %p177, %p178
      %p180 = scmp.ne.s32.totalorder %s171, %s172
      %p181 = scmp.eq.s32.totalorder %s51, 0
      %p182 = por %p180, %p181
      %p183 = scmp.ne.s32.totalorder %s171, %s172
      %p184 = scmp.eq.s32.totalorder %s52, 7
      %p185 = por %p183, %p184
      %p187 = scmp.ne.s32.totalorder %s172, %s186
      %p188 = scmp.eq.s32.totalorder %s52, 0
      %p189 = por %p187, %p188
      %s191 = sadd.s32 %s190, 1
      %p194 = scmp.eq.s32.totalorder %s46, 7
      %p195 = scmp.ne.s32.totalorder %s190, %s192
      %p196 = scmp.eq.s32.totalorder %s46, 0
      %p197 = por %p195, %p196
      %p198 = scmp.ne.s32.totalorder %s190, %s192
      %p199 = scmp.eq.s32.totalorder %s51, 7
      %p200 = por %p198, %p199
      %p201 = scmp.ne.s32.totalorder %s192, %s193
      %p202 = scmp.eq.s32.totalorder %s51, 0
      %p203 = por %p201, %p202
      %p204 = scmp.ne.s32.totalorder %s192, %s193
      %p205 = scmp.eq.s32.totalorder %s52, 7
      %p206 = por %p204, %p205
      %p208 = scmp.ne.s32.totalorder %s193, %s207
      %p209 = scmp.eq.s32.totalorder %s52, 0
      %p210 = por %p208, %p209
      %s212 = sadd.s32 %s211, 1
      %p215 = scmp.eq.s32.totalorder %s46, 7
      %p216 = scmp.ne.s32.totalorder %s211, %s213
      %p217 = scmp.eq.s32.totalorder %s46, 0
      %p218 = por %p216, %p217
      %p219 = scmp.ne.s32.totalorder %s211, %s213
      %p220 = scmp.eq.s32.totalorder %s51, 7
      %p221 = por %p219, %p220
      %p222 = scmp.ne.s32.totalorder %s213, %s214
      %p223 = scmp.eq.s32.totalorder %s51, 0
      %p224 = por %p222, %p223
      %p225 = scmp.ne.s32.totalorder %s213, %s214
      %p226 = scmp.eq.s32.totalorder %s52, 7
      %p227 = por %p225, %p226
      %p229 = scmp.ne.s32.totalorder %s214, %s228
      %p230 = scmp.eq.s32.totalorder %s52, 0
      %p231 = por %p229, %p230
      %s233 = sadd.s32 %s232, 1
      %p236 = scmp.eq.s32.totalorder %s46, 7
      %p237 = scmp.ne.s32.totalorder %s232, %s234
      %p238 = scmp.eq.s32.totalorder %s46, 0
      %p239 = por %p237, %p238
      %p240 = scmp.ne.s32.totalorder %s232, %s234
      %p241 = scmp.eq.s32.totalorder %s51, 7
      %p242 = por %p240, %p241
      %p243 = scmp.ne.s32.totalorder %s234, %s235
      %p244 = scmp.eq.s32.totalorder %s51, 0
      %p245 = por %p243, %p244
      %p246 = scmp.ne.s32.totalorder %s234, %s235
      %p247 = scmp.eq.s32.totalorder %s52, 7
      %p248 = por %p246, %p247
      %p250 = scmp.ne.s32.totalorder %s235, %s249
      %p251 = scmp.eq.s32.totalorder %s52, 0
      %p252 = por %p250, %p251
      %s254 = sadd.s32 %s253, 1
      %p257 = scmp.eq.s32.totalorder %s46, 7
      %p258 = scmp.ne.s32.totalorder %s253, %s255
      %p259 = scmp.eq.s32.totalorder %s46, 0
      %p260 = por %p258, %p259
      %p261 = scmp.ne.s32.totalorder %s253, %s255
      %p262 = scmp.eq.s32.totalorder %s51, 7
      %p263 = por %p261, %p262
      %p264 = scmp.ne.s32.totalorder %s255, %s256
      %p265 = scmp.eq.s32.totalorder %s51, 0
      %p266 = por %p264, %p265
      %p267 = scmp.ne.s32.totalorder %s255, %s256
      %p268 = scmp.eq.s32.totalorder %s52, 7
      %p269 = por %p267, %p268
      %p271 = scmp.ne.s32.totalorder %s256, %s270
      %p272 = scmp.eq.s32.totalorder %s52, 0
      %p273 = por %p271, %p272
      %s275 = sadd.s32 %s274, 1
      %p278 = scmp.eq.s32.totalorder %s46, 7
      %p279 = scmp.ne.s32.totalorder %s274, %s276
      %p280 = scmp.eq.s32.totalorder %s46, 0
      %p281 = por %p279, %p280
      %p282 = scmp.ne.s32.totalorder %s274, %s276
      %p283 = scmp.eq.s32.totalorder %s51, 7
      %p284 = por %p282, %p283
      %p285 = scmp.ne.s32.totalorder %s276, %s277
      %p286 = scmp.eq.s32.totalorder %s51, 0
      %p287 = por %p285, %p286
      %p288 = scmp.ne.s32.totalorder %s276, %s277
      %p289 = scmp.eq.s32.totalorder %s52, 7
      %p290 = por %p288, %p289
      %p292 = scmp.ne.s32.totalorder %s277, %s291
      %p293 = scmp.eq.s32.totalorder %s52, 0
      %p294 = por %p292, %p293
      %s296 = sadd.s32 %s295, 1
      %p299 = scmp.eq.s32.totalorder %s46, 7
      %p300 = scmp.ne.s32.totalorder %s295, %s297
      %p301 = scmp.eq.s32.totalorder %s46, 0
      %p302 = por %p300, %p301
      %p303 = scmp.ne.s32.totalorder %s295, %s297
      %p304 = scmp.eq.s32.totalorder %s51, 7
      %p305 = por %p303, %p304
      %p306 = scmp.ne.s32.totalorder %s297, %s298
      %p307 = scmp.eq.s32.totalorder %s51, 0
      %p308 = por %p306, %p307
      %p309 = scmp.ne.s32.totalorder %s297, %s298
      %p310 = scmp.eq.s32.totalorder %s52, 7
      %p311 = por %p309, %p310
      %p313 = scmp.ne.s32.totalorder %s298, %s312
      %p314 = scmp.eq.s32.totalorder %s52, 0
      %p315 = por %p313, %p314
      %s317 = sadd.s32 %s316, 1
      %p320 = scmp.eq.s32.totalorder %s46, 7
      %p321 = scmp.ne.s32.totalorder %s316, %s318
      %p322 = scmp.eq.s32.totalorder %s46, 0
      %p323 = por %p321, %p322
      %p324 = scmp.ne.s32.totalorder %s316, %s318
      %p325 = scmp.eq.s32.totalorder %s51, 7
      %p326 = por %p324, %p325
      %p327 = scmp.ne.s32.totalorder %s318, %s319
      %p328 = scmp.eq.s32.totalorder %s51, 0
      %p329 = por %p327, %p328
      %p330 = scmp.ne.s32.totalorder %s318, %s319
      %p331 = scmp.eq.s32.totalorder %s52, 7
      %p332 = por %p330, %p331
      %p334 = scmp.ne.s32.totalorder %s319, %s333
      %p335 = scmp.eq.s32.totalorder %s52, 0
      %p336 = por %p334, %p335
      %s338 = sadd.s32 %s337, 1
      %p341 = scmp.eq.s32.totalorder %s46, 7
      %p342 = scmp.ne.s32.totalorder %s337, %s339
      %p343 = scmp.eq.s32.totalorder %s46, 0
      %p344 = por %p342, %p343
      %p345 = scmp.ne.s32.totalorder %s337, %s339
      %p346 = scmp.eq.s32.totalorder %s51, 7
      %p347 = por %p345, %p346
      %p348 = scmp.ne.s32.totalorder %s339, %s340
      %p349 = scmp.eq.s32.totalorder %s51, 0
      %p350 = por %p348, %p349
      %p351 = scmp.ne.s32.totalorder %s339, %s340
      %p352 = scmp.eq.s32.totalorder %s52, 7
      %p353 = por %p351, %p352
      %p355 = scmp.ne.s32.totalorder %s340, %s354
      %p356 = scmp.eq.s32.totalorder %s52, 0
      %p357 = por %p355, %p356
      %s359 = sadd.s32 %s358, 1
      %p362 = scmp.eq.s32.totalorder %s46, 7
      %p363 = scmp.ne.s32.totalorder %s358, %s360
      %p364 = scmp.eq.s32.totalorder %s46, 0
      %p365 = por %p363, %p364
      %p366 = scmp.ne.s32.totalorder %s358, %s360
      %p367 = scmp.eq.s32.totalorder %s51, 7
      %p368 = por %p366, %p367
      %p369 = scmp.ne.s32.totalorder %s360, %s361
      %p370 = scmp.eq.s32.totalorder %s51, 0
      %p371 = por %p369, %p370
      %p372 = scmp.ne.s32.totalorder %s360, %s361
      %p373 = scmp.eq.s32.totalorder %s52, 7
      %p374 = por %p372, %p373
      %p376 = scmp.ne.s32.totalorder %s361, %s375
      %p377 = scmp.eq.s32.totalorder %s52, 0
      %p378 = por %p376, %p377
      %s380 = sadd.s32 %s379, 1
      %p383 = scmp.eq.s32.totalorder %s46, 7
      %p384 = scmp.ne.s32.totalorder %s379, %s381
      %p385 = scmp.eq.s32.totalorder %s46, 0
      %p386 = por %p384, %p385
      %p387 = scmp.ne.s32.totalorder %s379, %s381
      %p388 = scmp.eq.s32.totalorder %s51, 7
      %p389 = por %p387, %p388
      %p390 = scmp.ne.s32.totalorder %s381, %s382
      %p391 = scmp.eq.s32.totalorder %s51, 0
      %p392 = por %p390, %p391
      %p393 = scmp.ne.s32.totalorder %s381, %s382
      %p394 = scmp.eq.s32.totalorder %s52, 7
      %p395 = por %p393, %p394
      %p397 = scmp.ne.s32.totalorder %s382, %s396
      %p398 = scmp.eq.s32.totalorder %s52, 0
      %p399 = por %p397, %p398
      %s401 = sadd.s32 %s400, 1
      %p404 = scmp.eq.s32.totalorder %s46, 7
      %p405 = scmp.ne.s32.totalorder %s400, %s402
      %p406 = scmp.eq.s32.totalorder %s46, 0
      %p407 = por %p405, %p406
      %p408 = scmp.ne.s32.totalorder %s400, %s402
      %p409 = scmp.eq.s32.totalorder %s51, 7
      %p410 = por %p408, %p409
      %p411 = scmp.ne.s32.totalorder %s402, %s403
      %p412 = scmp.eq.s32.totalorder %s51, 0
      %p413 = por %p411, %p412
      %p414 = scmp.ne.s32.totalorder %s402, %s403
      %p415 = scmp.eq.s32.totalorder %s52, 7
      %p416 = por %p414, %p415
      %p418 = scmp.ne.s32.totalorder %s403, %s417
      %p419 = scmp.eq.s32.totalorder %s52, 0
      %p420 = por %p418, %p419
      %s422 = sadd.s32 %s421, 1
      %p425 = scmp.eq.s32.totalorder %s46, 7
      %p426 = scmp.ne.s32.totalorder %s421, %s423
      %p427 = scmp.eq.s32.totalorder %s46, 0
      %p428 = por %p426, %p427
      %p429 = scmp.ne.s32.totalorder %s421, %s423
      %p430 = scmp.eq.s32.totalorder %s51, 7
      %p431 = por %p429, %p430
      %p432 = scmp.ne.s32.totalorder %s423, %s424
      %p433 = scmp.eq.s32.totalorder %s51, 0
      %p434 = por %p432, %p433
      %p435 = scmp.ne.s32.totalorder %s423, %s424
      %p436 = scmp.eq.s32.totalorder %s52, 7
      %p437 = por %p435, %p436
      %p439 = scmp.ne.s32.totalorder %s424, %s438
      %p440 = scmp.eq.s32.totalorder %s52, 0
      %p441 = por %p439, %p440
      %s443 = sadd.s32 %s442, 1
      %p446 = scmp.eq.s32.totalorder %s46, 7
      %p447 = scmp.ne.s32.totalorder %s442, %s444
      %p448 = scmp.eq.s32.totalorder %s46, 0
      %p449 = por %p447, %p448
      %p450 = scmp.ne.s32.totalorder %s442, %s444
      %p451 = scmp.eq.s32.totalorder %s51, 7
      %p452 = por %p450, %p451
      %p453 = scmp.ne.s32.totalorder %s444, %s445
      %p454 = scmp.eq.s32.totalorder %s51, 0
      %p455 = por %p453, %p454
      %p456 = scmp.ne.s32.totalorder %s444, %s445
      %p457 = scmp.eq.s32.totalorder %s52, 7
      %p458 = por %p456, %p457
      %p460 = scmp.ne.s32.totalorder %s445, %s459
      %p461 = scmp.eq.s32.totalorder %s52, 0
      %p462 = por %p460, %p461
      %s464 = sadd.s32 %s463, 1
      %p467 = scmp.eq.s32.totalorder %s46, 7
      %p468 = scmp.ne.s32.totalorder %s463, %s465
      %p469 = scmp.eq.s32.totalorder %s46, 0
      %p470 = por %p468, %p469
      %p471 = scmp.ne.s32.totalorder %s463, %s465
      %p472 = scmp.eq.s32.totalorder %s51, 7
      %p473 = por %p471, %p472
      %p474 = scmp.ne.s32.totalorder %s465, %s466
      %p475 = scmp.eq.s32.totalorder %s51, 0
      %p476 = por %p474, %p475
      %p477 = scmp.ne.s32.totalorder %s465, %s466
      %p478 = scmp.eq.s32.totalorder %s52, 7
      %p479 = por %p477, %p478
      %p481 = scmp.ne.s32.totalorder %s466, %s480
      %p482 = scmp.eq.s32.totalorder %s52, 0
      %p483 = por %p481, %p482
      %s485 = sadd.s32 %s484, 1
      %p488 = scmp.eq.s32.totalorder %s46, 7
      %p489 = scmp.ne.s32.totalorder %s484, %s486
      %p490 = scmp.eq.s32.totalorder %s46, 0
      %p491 = por %p489, %p490
      %p492 = scmp.ne.s32.totalorder %s484, %s486
      %p493 = scmp.eq.s32.totalorder %s51, 7
      %p494 = por %p492, %p493
      %p495 = scmp.ne.s32.totalorder %s486, %s487
      %p496 = scmp.eq.s32.totalorder %s51, 0
      %p497 = por %p495, %p496
      %p498 = scmp.ne.s32.totalorder %s486, %s487
      %p499 = scmp.eq.s32.totalorder %s52, 7
      %p500 = por %p498, %p499
      %p502 = scmp.ne.s32.totalorder %s487, %s501
      %p503 = scmp.eq.s32.totalorder %s52, 0
      %p504 = por %p502, %p503
      %s506 = sadd.s32 %s505, 1
      %p509 = scmp.eq.s32.totalorder %s46, 7
      %p510 = scmp.ne.s32.totalorder %s505, %s507
      %p511 = scmp.eq.s32.totalorder %s46, 0
      %p512 = por %p510, %p511
      %p513 = scmp.ne.s32.totalorder %s505, %s507
      %p514 = scmp.eq.s32.totalorder %s51, 7
      %p515 = por %p513, %p514
      %p516 = scmp.ne.s32.totalorder %s507, %s508
      %p517 = scmp.eq.s32.totalorder %s51, 0
      %p518 = por %p516, %p517
      %p519 = scmp.ne.s32.totalorder %s507, %s508
      %p520 = scmp.eq.s32.totalorder %s52, 7
      %p521 = por %p519, %p520
      %p523 = scmp.ne.s32.totalorder %s508, %s522
      %p524 = scmp.eq.s32.totalorder %s52, 0
      %p525 = por %p523, %p524
      %s527 = sadd.s32 %s526, 1
      %p530 = scmp.eq.s32.totalorder %s46, 7
      %p531 = scmp.ne.s32.totalorder %s526, %s528
      %p532 = scmp.eq.s32.totalorder %s46, 0
      %p533 = por %p531, %p532
      %p534 = scmp.ne.s32.totalorder %s526, %s528
      %p535 = scmp.eq.s32.totalorder %s51, 7
      %p536 = por %p534, %p535
      %p537 = scmp.ne.s32.totalorder %s528, %s529
      %p538 = scmp.eq.s32.totalorder %s51, 0
      %p539 = por %p537, %p538
      %p540 = scmp.ne.s32.totalorder %s528, %s529
      %p541 = scmp.eq.s32.totalorder %s52, 7
      %p542 = por %p540, %p541
      %p544 = scmp.ne.s32.totalorder %s529, %s543
      %p545 = scmp.eq.s32.totalorder %s52, 0
      %p546 = por %p544, %p545
      %s548 = sadd.s32 %s547, 1
      %p551 = scmp.eq.s32.totalorder %s46, 7
      %p552 = scmp.ne.s32.totalorder %s547, %s549
      %p553 = scmp.eq.s32.totalorder %s46, 0
      %p554 = por %p552, %p553
      %p555 = scmp.ne.s32.totalorder %s547, %s549
      %p556 = scmp.eq.s32.totalorder %s51, 7
      %p557 = por %p555, %p556
      %p558 = scmp.ne.s32.totalorder %s549, %s550
      %p559 = scmp.eq.s32.totalorder %s51, 0
      %p560 = por %p558, %p559
      %p561 = scmp.ne.s32.totalorder %s549, %s550
      %p562 = scmp.eq.s32.totalorder %s52, 7
      %p563 = por %p561, %p562
      %p565 = scmp.ne.s32.totalorder %s550, %s564
      %p566 = scmp.eq.s32.totalorder %s52, 0
      %p567 = por %p565, %p566
      %s569 = sadd.s32 %s568, 1
      %p572 = scmp.eq.s32.totalorder %s46, 7
      %p573 = scmp.ne.s32.totalorder %s568, %s570
      %p574 = scmp.eq.s32.totalorder %s46, 0
      %p575 = por %p573, %p574
      %p576 = scmp.ne.s32.totalorder %s568, %s570
      %p577 = scmp.eq.s32.totalorder %s51, 7
      %p578 = por %p576, %p577
      %p579 = scmp.ne.s32.totalorder %s570, %s571
      %p580 = scmp.eq.s32.totalorder %s51, 0
      %p581 = por %p579, %p580
      %p582 = scmp.ne.s32.totalorder %s570, %s571
      %p583 = scmp.eq.s32.totalorder %s52, 7
      %p584 = por %p582, %p583
      %p586 = scmp.ne.s32.totalorder %s571, %s585
      %p587 = scmp.eq.s32.totalorder %s52, 0
      %p588 = por %p586, %p587
      %s589 = ssub.s32 %s46, %s53
      %p590 = scmp.eq.s32.totalorder %s589, 0
      %s592 = sadd.s32 %s591, 1
      %s593 = scalar_select %p590, %s591, %s592
      %p596 = pneg %p590
      %p597 = scmp.eq.s32.totalorder %s46, 7
      %p598 = por %p596, %p597
      %p599 = scmp.ne.s32.totalorder %s591, %s594
      %p600 = scmp.eq.s32.totalorder %s46, 0
      %p601 = por %p599, %p600
      %p602 = scmp.ne.s32.totalorder %s591, %s594
      %p603 = scmp.eq.s32.totalorder %s51, 7
      %p604 = por %p602, %p603
      %p605 = scmp.ne.s32.totalorder %s594, %s595
      %p606 = scmp.eq.s32.totalorder %s51, 0
      %p607 = por %p605, %p606
      %p608 = scmp.ne.s32.totalorder %s594, %s595
      %p609 = scmp.eq.s32.totalorder %s52, 7
      %p610 = por %p608, %p609
      %p612 = scmp.ne.s32.totalorder %s595, %s611
      %p613 = scmp.eq.s32.totalorder %s52, 0
      %p614 = por %p612, %p613
      %s615 = ssub.s32 %s46, %s53
      %p616 = scmp.eq.s32.totalorder %s615, 0
      %s618 = sadd.s32 %s617, 1
      %s619 = scalar_select %p616, %s617, %s618
      %p622 = pneg %p616
      %p623 = scmp.eq.s32.totalorder %s46, 7
      %p624 = por %p622, %p623
      %p625 = scmp.ne.s32.totalorder %s617, %s620
      %p626 = scmp.eq.s32.totalorder %s46, 0
      %p627 = por %p625, %p626
      %p628 = scmp.ne.s32.totalorder %s617, %s620
      %p629 = scmp.eq.s32.totalorder %s51, 7
      %p630 = por %p628, %p629
      %p631 = scmp.ne.s32.totalorder %s620, %s621
      %p632 = scmp.eq.s32.totalorder %s51, 0
      %p633 = por %p631, %p632
      %p634 = scmp.ne.s32.totalorder %s620, %s621
      %p635 = scmp.eq.s32.totalorder %s52, 7
      %p636 = por %p634, %p635
      %p638 = scmp.ne.s32.totalorder %s621, %s637
      %p639 = scmp.eq.s32.totalorder %s52, 0
      %p640 = por %p638, %p639
      %s641 = ssub.s32 %s46, %s53
      %p642 = scmp.eq.s32.totalorder %s641, 0
      %s644 = sadd.s32 %s643, 1
      %s645 = scalar_select %p642, %s643, %s644
      %p648 = pneg %p642
      %p649 = scmp.eq.s32.totalorder %s46, 7
      %p650 = por %p648, %p649
      %p651 = scmp.ne.s32.totalorder %s643, %s646
      %p652 = scmp.eq.s32.totalorder %s46, 0
      %p653 = por %p651, %p652
      %p654 = scmp.ne.s32.totalorder %s643, %s646
      %p655 = scmp.eq.s32.totalorder %s51, 7
      %p656 = por %p654, %p655
      %p657 = scmp.ne.s32.totalorder %s646, %s647
      %p658 = scmp.eq.s32.totalorder %s51, 0
      %p659 = por %p657, %p658
      %p660 = scmp.ne.s32.totalorder %s646, %s647
      %p661 = scmp.eq.s32.totalorder %s52, 7
      %p662 = por %p660, %p661
      %p664 = scmp.ne.s32.totalorder %s647, %s663
      %p665 = scmp.eq.s32.totalorder %s52, 0
      %p666 = por %p664, %p665
      %p667 = scmp.le.s32.totalorder 1, %s46
      %p668 = scmp.lt.s32.totalorder %s46, 9
      %p669 = pnand %p667, %p668
      %p670 = pneg %p669
      // Predicated region
      $region9: #{tpu_custom_call.1} parent=5 // pred_check
        _
      $region10: #{tpu_custom_call.1} parent=5 // pred_check_branch
        %672 = sbr.rel (%p669) target = $region12
      $region11: #{tpu_custom_call.1} parent=5 // pred_region
        %s673 = ssub.s32 %s46, 1
        // Predicated region
        $region13: #{tpu_custom_call.1} parent=11 // pred_check
          %p674 = pneg %p119
        $region14: #{tpu_custom_call.1} parent=11 // pred_check_branch
          %676 = sbr.rel (%p674) target = $region16
        $region15: #{tpu_custom_call.1} parent=11 // pred_region
          _
        $region16: #{tpu_custom_call.1} parent=11 // pred_fallthru
          _
        // Predicated region
        $region17: #{tpu_custom_call.1} parent=11 // pred_check
          %p677 = pneg %p140
        $region18: #{tpu_custom_call.1} parent=11 // pred_check_branch
          %679 = sbr.rel (%p677) target = $region20
        $region19: #{tpu_custom_call.1} parent=11 // pred_region
          _
        $region20: #{tpu_custom_call.1} parent=11 // pred_fallthru
          _
        // Predicated region
        $region21: #{tpu_custom_call.1} parent=11 // pred_check
          %p680 = pneg %p161
        $region22: #{tpu_custom_call.1} parent=11 // pred_check_branch
          %682 = sbr.rel (%p680) target = $region24
        $region23: #{tpu_custom_call.1} parent=11 // pred_region
          _
        $region24: #{tpu_custom_call.1} parent=11 // pred_fallthru
          _
        // Predicated region
        $region25: #{tpu_custom_call.1} parent=11 // pred_check
          %p683 = pneg %p182
        $region26: #{tpu_custom_call.1} parent=11 // pred_check_branch
          %685 = sbr.rel (%p683) target = $region28
        $region27: #{tpu_custom_call.1} parent=11 // pred_region
          _
        $region28: #{tpu_custom_call.1} parent=11 // pred_fallthru
          _
        // Predicated region
        $region29: #{tpu_custom_call.1} parent=11 // pred_check
          %p686 = pneg %p203
        $region30: #{tpu_custom_call.1} parent=11 // pred_check_branch
          %688 = sbr.rel (%p686) target = $region32
        $region31: #{tpu_custom_call.1} parent=11 // pred_region
          _
        $region32: #{tpu_custom_call.1} parent=11 // pred_fallthru
          _
        // Predicated region
        $region33: #{tpu_custom_call.1} parent=11 // pred_check
          %p689 = pneg %p224
        $region34: #{tpu_custom_call.1} parent=11 // pred_check_branch
          %691 = sbr.rel (%p689) target = $region36
        $region35: #{tpu_custom_call.1} parent=11 // pred_region
          %s693 = ssub.s32 80, 80
          %694 = vsyncadd [#allocation15], %s693
          %s695 = sshll.u32 [#allocation14], 4
          %s696 = int_to_ptr.vmem [resolvable:$true] %s695
          %701 = dma.hbm_to_vmem [thread:$0]  %s7, 80, %s696, [#allocation15], 16, 16, 1
        $region36: #{tpu_custom_call.1} parent=11 // pred_fallthru
          _
        // Predicated region
        $region37: #{tpu_custom_call.1} parent=11 // pred_check
          %p702 = pneg %p245
        $region38: #{tpu_custom_call.1} parent=11 // pred_check_branch
          %704 = sbr.rel (%p702) target = $region40
        $region39: #{tpu_custom_call.1} parent=11 // pred_region
          %s706 = ssub.s32 80, 80
          %707 = vsyncadd [#allocation15], %s706
          %s708 = sshll.u32 [#allocation16], 4
          %s709 = int_to_ptr.vmem [resolvable:$true] %s708
          %714 = dma.hbm_to_vmem [thread:$0]  %s8, 80, %s709, [#allocation15], 16, 16, 1
        $region40: #{tpu_custom_call.1} parent=11 // pred_fallthru
          _
        // Predicated region
        $region41: #{tpu_custom_call.1} parent=11 // pred_check
          %p715 = pneg %p266
        $region42: #{tpu_custom_call.1} parent=11 // pred_check_branch
          %717 = sbr.rel (%p715) target = $region44
        $region43: #{tpu_custom_call.1} parent=11 // pred_region
          _
        $region44: #{tpu_custom_call.1} parent=11 // pred_fallthru
          _
        // Predicated region
        $region45: #{tpu_custom_call.1} parent=11 // pred_check
          %p718 = pneg %p287
        $region46: #{tpu_custom_call.1} parent=11 // pred_check_branch
          %720 = sbr.rel (%p718) target = $region48
        $region47: #{tpu_custom_call.1} parent=11 // pred_region
          _
        $region48: #{tpu_custom_call.1} parent=11 // pred_fallthru
          _
        // Predicated region
        $region49: #{tpu_custom_call.1} parent=11 // pred_check
          %p721 = pneg %p308
        $region50: #{tpu_custom_call.1} parent=11 // pred_check_branch
          %723 = sbr.rel (%p721) target = $region52
        $region51: #{tpu_custom_call.1} parent=11 // pred_region
          _
        $region52: #{tpu_custom_call.1} parent=11 // pred_fallthru
          _
        // Predicated region
        $region53: #{tpu_custom_call.1} parent=11 // pred_check
          %p724 = pneg %p329
        $region54: #{tpu_custom_call.1} parent=11 // pred_check_branch
          %726 = sbr.rel (%p724) target = $region56
        $region55: #{tpu_custom_call.1} parent=11 // pred_region
          %s728 = ssub.s32 16, 16
          %729 = vsyncadd [#allocation18], %s728
          %s731 = sshll.u32 [#allocation17], 4
          %s732 = int_to_ptr.vmem [resolvable:$true] %s731
          %734 = dma.hbm_to_vmem [thread:$0]  %s12, 16, %s732, [#allocation18]
        $region56: #{tpu_custom_call.1} parent=11 // pred_fallthru
          _
        // Predicated region
        $region57: #{tpu_custom_call.1} parent=11 // pred_check
          %p735 = pneg %p350
        $region58: #{tpu_custom_call.1} parent=11 // pred_check_branch
          %737 = sbr.rel (%p735) target = $region60
        $region59: #{tpu_custom_call.1} parent=11 // pred_region
          %s739 = ssub.s32 256, 256
          %740 = vsyncadd [#allocation18], %s739
          %s741 = sshll.u32 [#allocation19], 4
          %s742 = int_to_ptr.vmem [resolvable:$true] %s741
          %747 = dma.hbm_to_vmem [thread:$0]  %s13, 256, %s742, [#allocation18], 128, 128, 8
        $region60: #{tpu_custom_call.1} parent=11 // pred_fallthru
          _
        // Predicated region
        $region61: #{tpu_custom_call.1} parent=11 // pred_check
          %p748 = pneg %p371
        $region62: #{tpu_custom_call.1} parent=11 // pred_check_branch
          %750 = sbr.rel (%p748) target = $region64
        $region63: #{tpu_custom_call.1} parent=11 // pred_region
          _
        $region64: #{tpu_custom_call.1} parent=11 // pred_fallthru
          _
        // Predicated region
        $region65: #{tpu_custom_call.1} parent=11 // pred_check
          %p751 = pneg %p392
        $region66: #{tpu_custom_call.1} parent=11 // pred_check_branch
          %753 = sbr.rel (%p751) target = $region68
        $region67: #{tpu_custom_call.1} parent=11 // pred_region
          _
        $region68: #{tpu_custom_call.1} parent=11 // pred_fallthru
          _
        // Predicated region
        $region69: #{tpu_custom_call.1} parent=11 // pred_check
          %p754 = pneg %p413
        $region70: #{tpu_custom_call.1} parent=11 // pred_check_branch
          %756 = sbr.rel (%p754) target = $region72
        $region71: #{tpu_custom_call.1} parent=11 // pred_region
          %s758 = ssub.s32 512, 512
          %759 = vsyncadd [#allocation21], %s758
          %s760 = sshll.u32 [#allocation20], 4
          %s761 = int_to_ptr.vmem [resolvable:$true] %s760
          %766 = dma.hbm_to_vmem [thread:$0]  %s16, 512, %s761, [#allocation21], 128, 128, 8
        $region72: #{tpu_custom_call.1} parent=11 // pred_fallthru
          _
        // Predicated region
        $region73: #{tpu_custom_call.1} parent=11 // pred_check
          %p767 = pneg %p434
        $region74: #{tpu_custom_call.1} parent=11 // pred_check_branch
          %769 = sbr.rel (%p767) target = $region76
        $region75: #{tpu_custom_call.1} parent=11 // pred_region
          %s771 = ssub.s32 512, 512
          %772 = vsyncadd [#allocation21], %s771
          %s773 = sshll.u32 [#allocation22], 4
          %s774 = int_to_ptr.vmem [resolvable:$true] %s773
          %779 = dma.hbm_to_vmem [thread:$0]  %s17, 512, %s774, [#allocation21], 128, 128, 8
        $region76: #{tpu_custom_call.1} parent=11 // pred_fallthru
          _
        // Predicated region
        $region77: #{tpu_custom_call.1} parent=11 // pred_check
          %p780 = pneg %p455
        $region78: #{tpu_custom_call.1} parent=11 // pred_check_branch
          %782 = sbr.rel (%p780) target = $region80
        $region79: #{tpu_custom_call.1} parent=11 // pred_region
          %s784 = ssub.s32 16, 16
          %785 = vsyncadd [#allocation24], %s784
          %s787 = sshll.u32 [#allocation23], 4
          %s788 = int_to_ptr.vmem [resolvable:$true] %s787
          %790 = dma.hbm_to_vmem [thread:$0]  %s18, 16, %s788, [#allocation24]
        $region80: #{tpu_custom_call.1} parent=11 // pred_fallthru
          _
        // Predicated region
        $region81: #{tpu_custom_call.1} parent=11 // pred_check
          %p791 = pneg %p476
        $region82: #{tpu_custom_call.1} parent=11 // pred_check_branch
          %793 = sbr.rel (%p791) target = $region84
        $region83: #{tpu_custom_call.1} parent=11 // pred_region
          _
        $region84: #{tpu_custom_call.1} parent=11 // pred_fallthru
          _
        // Predicated region
        $region85: #{tpu_custom_call.1} parent=11 // pred_check
          %p794 = pneg %p497
        $region86: #{tpu_custom_call.1} parent=11 // pred_check_branch
          %796 = sbr.rel (%p794) target = $region88
        $region87: #{tpu_custom_call.1} parent=11 // pred_region
          _
        $region88: #{tpu_custom_call.1} parent=11 // pred_fallthru
          _
        // Predicated region
        $region89: #{tpu_custom_call.1} parent=11 // pred_check
          %p797 = pneg %p518
        $region90: #{tpu_custom_call.1} parent=11 // pred_check_branch
          %799 = sbr.rel (%p797) target = $region92
        $region91: #{tpu_custom_call.1} parent=11 // pred_region
          _
        $region92: #{tpu_custom_call.1} parent=11 // pred_fallthru
          _
        // Predicated region
        $region93: #{tpu_custom_call.1} parent=11 // pred_check
          %p800 = pneg %p539
        $region94: #{tpu_custom_call.1} parent=11 // pred_check_branch
          %802 = sbr.rel (%p800) target = $region96
        $region95: #{tpu_custom_call.1} parent=11 // pred_region
          _
        $region96: #{tpu_custom_call.1} parent=11 // pred_fallthru
          _
        // Predicated region
        $region97: #{tpu_custom_call.1} parent=11 // pred_check
          %p803 = pneg %p560
        $region98: #{tpu_custom_call.1} parent=11 // pred_check_branch
          %805 = sbr.rel (%p803) target = $region100
        $region99: #{tpu_custom_call.1} parent=11 // pred_region
          _
        $region100: #{tpu_custom_call.1} parent=11 // pred_fallthru
          _
        // Predicated region
        $region101: #{tpu_custom_call.1} parent=11 // pred_check
          %p806 = pneg %p581
        $region102: #{tpu_custom_call.1} parent=11 // pred_check_branch
          %808 = sbr.rel (%p806) target = $region104
        $region103: #{tpu_custom_call.1} parent=11 // pred_region
          _
        $region104: #{tpu_custom_call.1} parent=11 // pred_fallthru
          _
      $region12: #{tpu_custom_call.1} parent=5 // pred_fallthru
        _
      %p809 = scmp.lt.s32.totalorder %s46, 8
      // Predicated region
      $region105: #{tpu_custom_call.1} parent=5 // pred_check
        %p810 = pneg %p809
      $region106: #{tpu_custom_call.1} parent=5 // pred_check_branch
        %812 = sbr.rel (%p810) target = $region108
      $region107: #{tpu_custom_call.1} parent=5 // pred_region
        // Predicated region
        $region109: #{tpu_custom_call.1} parent=107 // pred_check
          %p813 = pneg %p66
        $region110: #{tpu_custom_call.1} parent=107 // pred_check_branch
          %815 = sbr.rel (%p813) target = $region112
        $region111: #{tpu_custom_call.1} parent=107 // pred_region
          %s816 = sand.u32 %s56, 1
          %s817 = scalar_lea.sflag [#allocation12], %s816
          %s818 = sand.u32 %s56, 1
          %s819 = smul.addr %s818, 2
          %s820 = scalar_lea.vmem [#allocation11], %s819
          %s822 = ssub.s32 32, 32
          %823 = vsyncadd %s817, %s822
          %s824 = smul.addr %s46, 32
          %s825 = scalar_lea.hbm %s0, %s824
          %s827 = sshll.u32 %s820, 4
          %s828 = int_to_ptr.vmem [resolvable:$true] %s827
          %830 = dma.hbm_to_vmem [thread:$0]  %s825, 32, %s828, %s817
        $region112: #{tpu_custom_call.1} parent=107 // pred_fallthru
          _
        // Predicated region
        $region113: #{tpu_custom_call.1} parent=107 // pred_check
          %p831 = pneg %p92
        $region114: #{tpu_custom_call.1} parent=107 // pred_check_branch
          %833 = sbr.rel (%p831) target = $region116
        $region115: #{tpu_custom_call.1} parent=107 // pred_region
          %p834 = scmp.lt.s32.totalorder %s46, 7
          %s835 = scalar_select %p834, %s46, 7
          %s836 = smul.addr %s835, 2
          %s837 = smul.addr %s836, 2
          %s838 = scalar_lea.vmem %s1, %s837
        $region116: #{tpu_custom_call.1} parent=107 // pred_fallthru
          _
      $region108: #{tpu_custom_call.1} parent=5 // pred_fallthru
        _
      %p839 = scmp.le.s32.totalorder 1, %s46
      %p840 = scmp.lt.s32.totalorder %s46, 9
      %p841 = pnand %p839, %p840
      %p842 = pneg %p841
      // Predicated region
      $region117: #{tpu_custom_call.1} parent=5 // pred_check
        _
      $region118: #{tpu_custom_call.1} parent=5 // pred_check_branch
        %844 = sbr.rel (%p841) target = $region120
      $region119: #{tpu_custom_call.1} parent=5 // pred_region
        %s845 = ssub.s32 %s46, 1
        %s846 = sand.u32 %s59, 1
        %s847 = scalar_lea.sflag [#allocation12], %s846
        %s848 = sand.u32 %s59, 1
        %s849 = smul.addr %s848, 2
        %s850 = scalar_lea.vmem [#allocation11], %s849
        // Predicated region
        $region121: #{tpu_custom_call.1} parent=119 // pred_check
          %p851 = pneg %p72
        $region122: #{tpu_custom_call.1} parent=119 // pred_check_branch
          %853 = sbr.rel (%p851) target = $region124
        $region123: #{tpu_custom_call.1} parent=119 // pred_region
          %854 = dma.done %s847, 32
        $region124: #{tpu_custom_call.1} parent=119 // pred_fallthru
          _
        // Predicated region
        $region125: #{tpu_custom_call.1} parent=119 // pred_check
          %p855 = pneg %p224
        $region126: #{tpu_custom_call.1} parent=119 // pred_check_branch
          %857 = sbr.rel (%p855) target = $region128
        $region127: #{tpu_custom_call.1} parent=119 // pred_region
          %858 = dma.done [#allocation15], 80
        $region128: #{tpu_custom_call.1} parent=119 // pred_fallthru
          _
        // Predicated region
        $region129: #{tpu_custom_call.1} parent=119 // pred_check
          %p859 = pneg %p245
        $region130: #{tpu_custom_call.1} parent=119 // pred_check_branch
          %861 = sbr.rel (%p859) target = $region132
        $region131: #{tpu_custom_call.1} parent=119 // pred_region
          %862 = dma.done [#allocation15], 80
        $region132: #{tpu_custom_call.1} parent=119 // pred_fallthru
          _
        // Predicated region
        $region133: #{tpu_custom_call.1} parent=119 // pred_check
          %p863 = pneg %p329
        $region134: #{tpu_custom_call.1} parent=119 // pred_check_branch
          %865 = sbr.rel (%p863) target = $region136
        $region135: #{tpu_custom_call.1} parent=119 // pred_region
          %866 = dma.done [#allocation18], 16
        $region136: #{tpu_custom_call.1} parent=119 // pred_fallthru
          _
        // Predicated region
        $region137: #{tpu_custom_call.1} parent=119 // pred_check
          %p867 = pneg %p350
        $region138: #{tpu_custom_call.1} parent=119 // pred_check_branch
          %869 = sbr.rel (%p867) target = $region140
        $region139: #{tpu_custom_call.1} parent=119 // pred_region
          %870 = dma.done [#allocation18], 256
        $region140: #{tpu_custom_call.1} parent=119 // pred_fallthru
          _
        // Predicated region
        $region141: #{tpu_custom_call.1} parent=119 // pred_check
          %p871 = pneg %p413
        $region142: #{tpu_custom_call.1} parent=119 // pred_check_branch
          %873 = sbr.rel (%p871) target = $region144
        $region143: #{tpu_custom_call.1} parent=119 // pred_region
          %874 = dma.done [#allocation21], 512
        $region144: #{tpu_custom_call.1} parent=119 // pred_fallthru
          _
        // Predicated region
        $region145: #{tpu_custom_call.1} parent=119 // pred_check
          %p875 = pneg %p434
        $region146: #{tpu_custom_call.1} parent=119 // pred_check_branch
          %877 = sbr.rel (%p875) target = $region148
        $region147: #{tpu_custom_call.1} parent=119 // pred_region
          %878 = dma.done [#allocation21], 512
        $region148: #{tpu_custom_call.1} parent=119 // pred_fallthru
          _
        // Predicated region
        $region149: #{tpu_custom_call.1} parent=119 // pred_check
          %p879 = pneg %p455
        $region150: #{tpu_custom_call.1} parent=119 // pred_check_branch
          %881 = sbr.rel (%p879) target = $region152
        $region151: #{tpu_custom_call.1} parent=119 // pred_region
          %882 = dma.done [#allocation24], 16
        $region152: #{tpu_custom_call.1} parent=119 // pred_fallthru
          _
        %s883 = sand.u32 %s59, 1
        %s884 = scalar_lea.sflag [#allocation12], %s883
        %s885 = sand.u32 %s59, 1
        %s886 = smul.addr %s885, 2
        %s887 = scalar_lea.vmem [#allocation11], %s886
        %p888 = pneg %p72
        %p889 = pneg %p69
        %p890 = scmp.lt.s32.totalorder %s51, 7
        %s891 = scalar_select %p890, %s51, 7
        %s892 = smul.addr %s891, 2
        %s893 = smul.addr %s892, 2
        %s894 = scalar_lea.vmem %s1, %s893
        %p895 = pneg %p98
        %p896 = pneg %p95
        %p897 = pneg %p119
        %p898 = pneg %p116
        %p899 = pneg %p140
        %p900 = pneg %p137
        %p901 = pneg %p161
        %p902 = pneg %p158
        %p903 = pneg %p182
        %p904 = pneg %p179
        %p905 = pneg %p203
        %p906 = pneg %p200
        %p907 = pneg %p224
        %p908 = pneg %p221
        %p909 = pneg %p245
        %p910 = pneg %p242
        %p911 = pneg %p266
        %p912 = pneg %p263
        %p913 = pneg %p287
        %p914 = pneg %p284
        %p915 = pneg %p308
        %p916 = pneg %p305
        %p917 = pneg %p329
        %p918 = pneg %p326
        %p919 = pneg %p350
        %p920 = pneg %p347
        %p921 = pneg %p371
        %p922 = pneg %p368
        %p923 = pneg %p392
        %p924 = pneg %p389
        %p925 = pneg %p413
        %p926 = pneg %p410
        %p927 = pneg %p434
        %p928 = pneg %p431
        %p929 = pneg %p455
        %p930 = pneg %p452
        %p931 = pneg %p476
        %p932 = pneg %p473
        %p933 = pneg %p497
        %p934 = pneg %p494
        %p935 = pneg %p518
        %p936 = pneg %p515
        %p937 = pneg %p539
        %p938 = pneg %p536
        %p939 = pneg %p560
        %p940 = pneg %p557
        %p941 = pneg %p581
        %p942 = pneg %p578
        %p943 = pneg %p607
        %p944 = pneg %p604
        %s945 = sand.u32 %s594, 1
        %s946 = scalar_lea.sflag [#allocation13], %s945
        %s947 = sand.u32 %s594, 1
        %s948 = smul.addr %s947, 2
        %s949 = scalar_lea.vmem [#allocation25], %s948
        %p950 = pneg %p633
        %p951 = pneg %p630
        %p952 = scmp.lt.s32.totalorder %s51, 7
        %s953 = scalar_select %p952, %s51, 7
        %s954 = smul.addr %s953, 2
        %s955 = scalar_lea.vmem %s26, %s954
        %p956 = pneg %p659
        %p957 = pneg %p656
        %p958 = scmp.lt.s32.totalorder %s51, 7
        %s959 = scalar_select %p958, %s51, 7
        %s960 = smul.addr %s959, 4
        %s961 = smul.addr %s960, 8
        %s962 = scalar_lea.vmem %s27, %s961
        %p963 = scmp.lt.s32.totalorder %s51, 7
        %s964 = scalar_select %p963, %s51, 7
        %s965 = smul.addr %s964, 2
        %s966 = smul.addr %s965, 2
        %s967 = scalar_lea.vmem %s1, %s966
        %p968 = scmp.lt.s32.totalorder %s51, 7
        %s969 = scalar_select %p968, %s51, 7
        %s970 = smul.addr %s969, 2
        %s971 = scalar_lea.vmem %s26, %s970
        %p972 = scmp.lt.s32.totalorder %s51, 7
        %s973 = scalar_select %p972, %s51, 7
        %s974 = smul.addr %s973, 4
        %s975 = smul.addr %s974, 8
        %s976 = scalar_lea.vmem %s27, %s975
        %p977 = scmp.eq.s32.totalorder %s51, 0
        // Predicated region
        $region153: #{tpu_custom_call.1} parent=119 // pred_check
          %p978 = pneg %p977
        $region154: #{tpu_custom_call.1} parent=119 // pred_check_branch
          %980 = sbr.rel (%p978) target = $region156
        $region155: #{tpu_custom_call.1} parent=119 // pred_region
          %vm981 = vcmask 254976
          %982 = vst.msk [vmem:[#allocation2] sm:$0x3] %vm981, 0.0
          %983 = vst.msk [vmem:[#allocation3] sm:$0x3] %vm981, 0.0
          %984 = vst.msk [vmem:[#allocation4] sm:$0x3] %vm981, 0.0
          %985 = vst.msk [vmem:[#allocation5] sm:$0x3] %vm981, 0.0
          %986 = vst.msk [vmem:[#allocation6] sm:$0x3] %vm981, 0.0
          %vm987 = vcmask 7168
          %988 = vst.msk [vmem:[#allocation7] sm:$0xff] %vm987, 0.0
          %989 = vst.msk [vmem:[#allocation7 + $0x8] sm:$0xff] %vm987, 0.0
          %990 = vst.msk [vmem:[#allocation7 + $0x10] sm:$0xff] %vm987, 0.0
          %991 = vst.msk [vmem:[#allocation7 + $0x18] sm:$0xff] %vm987, 0.0
          %992 = vst.msk [vmem:[#allocation7 + $0x20] sm:$0xff] %vm987, 0.0
          %993 = vst.msk [vmem:[#allocation7 + $0x28] sm:$0xff] %vm987, 0.0
          %994 = vst.msk [vmem:[#allocation7 + $0x30] sm:$0xff] %vm987, 0.0
          %995 = vst.msk [vmem:[#allocation7 + $0x38] sm:$0xff] %vm987, 0.0
          %996 = vst.msk [vmem:[#allocation8] sm:$0xff] %vm987, 0.0
          %997 = vst.msk [vmem:[#allocation8 + $0x8] sm:$0xff] %vm987, 0.0
          %998 = vst.msk [vmem:[#allocation8 + $0x10] sm:$0xff] %vm987, 0.0
          %999 = vst.msk [vmem:[#allocation8 + $0x18] sm:$0xff] %vm987, 0.0
          %1000 = vst.msk [vmem:[#allocation8 + $0x20] sm:$0xff] %vm987, 0.0
          %1001 = vst.msk [vmem:[#allocation8 + $0x28] sm:$0xff] %vm987, 0.0
          %1002 = vst.msk [vmem:[#allocation8 + $0x30] sm:$0xff] %vm987, 0.0
          %1003 = vst.msk [vmem:[#allocation8 + $0x38] sm:$0xff] %vm987, 0.0
          %v1004 = vld [vmem:[%s2] sm:$0xff]
          %v1005 = vld [vmem:[%s2 + $0x8] sm:$0xff]
          %v1006 = vld [vmem:[%s2 + $0x10] sm:$0xff]
          %v1007 = vld [vmem:[%s2 + $0x18] sm:$0xff]
          %v1008 = vld [vmem:[%s4] sm:$0xff]
          %v1009 = vld [vmem:[%s4 + $0x8] sm:$0xff]
          %v1010 = vld [vmem:[%s4 + $0x10] sm:$0xff]
          %v1011 = vld [vmem:[%s4 + $0x18] sm:$0xff]
          %vm1012 = vcmask 261120
          %v1014 = vsel %vm1012, %v1004, 0
          %v1017 = vsel %vm1012, %v1005, 0
          %v1020 = vsel %vm1012, %v1006, 0
          %v1023 = vsel %vm1012, %v1007, 0
          %1025 = vmatprep.subr.mxu0 0.0
          %1026 = vmatpush1.msra.mxu0 %v1008
          %1027 = vmatprep.subr.mxu0 0.0
          %1028 = vmatpush1.msra.mxu0 %v1009
          %1029 = vmatprep.subr.mxu0 0.0
          %1030 = vmatpush1.msra.mxu0 %v1010
          %1031 = vmatprep.subr.mxu0 0.0
          %1032 = vmatpush1.msra.mxu0 %v1011
          %1033 = vmatprep.subr.mxu0 0.0
          %1034 = vmatpush1.msra.mxu0 0.0
          %1035 = vmatprep.subr.mxu0 0.0
          %1036 = vmatpush1.msra.mxu0 0.0
          %1037 = vmatprep.subr.mxu0 0.0
          %1038 = vmatpush1.msra.mxu0 0.0
          %1039 = vmatprep.subr.mxu0 0.0
          %1040 = vmatpush1.msra.mxu0 0.0
          %1041 = vmatprep.subr.mxu0 0.0
          %1042 = vmatpush1.msra.mxu0 0.0
          %1043 = vmatprep.subr.mxu0 0.0
          %1044 = vmatpush1.msra.mxu0 0.0
          %1045 = vmatprep.subr.mxu0 0.0
          %1046 = vmatpush1.msra.mxu0 0.0
          %1047 = vmatprep.subr.mxu0 0.0
          %1048 = vmatpush1.msra.mxu0 0.0
          %1049 = vmatprep.subr.mxu0 0.0
          %1050 = vmatpush1.msra.mxu0 0.0
          %1051 = vmatprep.subr.mxu0 0.0
          %1052 = vmatpush1.msra.mxu0 0.0
          %1053 = vmatprep.subr.mxu0 0.0
          %1054 = vmatpush1.msra.mxu0 0.0
          %1055 = vmatprep.subr.mxu0 0.0
          %1056 = vmatpush1.msra.mxu0 0.0
          %1057 = vmatprep.subr.mxu0 0.0
          %1058 = vmatpush1.msra.mxu0 0.0
          %1059 = vmatprep.subr.mxu0 0.0
          %1060 = vmatpush1.msra.mxu0 0.0
          %1061 = vmatprep.subr.mxu0 0.0
          %1062 = vmatpush1.msra.mxu0 0.0
          %1063 = vmatprep.subr.mxu0 0.0
          %1064 = vmatpush1.msra.mxu0 0.0
          %1065 = vmatprep.subr.mxu0 0.0
          %1066 = vmatpush1.msra.mxu0 0.0
          %1067 = vmatprep.subr.mxu0 0.0
          %1068 = vmatpush1.msra.mxu0 0.0
          %1069 = vmatprep.subr.mxu0 0.0
          %1070 = vmatpush1.msra.mxu0 0.0
          %1071 = vmatprep.subr.mxu0 0.0
          %1072 = vmatpush1.msra.mxu0 0.0
          %1073 = vmatprep.subr.mxu0 0.0
          %1074 = vmatpush1.msra.mxu0 0.0
          %1075 = vmatprep.subr.mxu0 0.0
          %1076 = vmatpush1.msra.mxu0 0.0
          %1077 = vmatprep.subr.mxu0 0.0
          %1078 = vmatpush1.msra.mxu0 0.0
          %1079 = vmatprep.subr.mxu0 0.0
          %1080 = vmatpush1.msra.mxu0 0.0
          %1081 = vmatprep.subr.mxu0 0.0
          %1082 = vmatpush1.msra.mxu0 0.0
          %1083 = vmatprep.subr.mxu0 0.0
          %1084 = vmatpush1.msra.mxu0 0.0
          %1085 = vmatprep.subr.mxu0 0.0
          %1086 = vmatpush1.msra.mxu0 0.0
          %1087 = vmatprep.subr.mxu0 0.0
          %1088 = vmatpush1.msra.mxu0 0.0
          %1089 = vmatprep.mubr.f32.mxu0 0.0
          %1090 = vmatmul.mubr.f32.gmra.mrb[0].mxu0 %v1014
          %v1091 = vpop.f32.mrb[0].mxu0
          %v1092 = vadd.f32 0.0, %v1091
          %v1093 = vpop.f32.mrb[0].mxu0
          %1094 = vmatprep.mubr.f32.mxu0 0.0
          %1095 = vmatmul.mubr.f32.gmra.mrb[0].mxu0 %v1017
          %v1096 = vpop.f32.mrb[0].mxu0
          %v1097 = vadd.f32 0.0, %v1096
          %v1098 = vpop.f32.mrb[0].mxu0
          %1099 = vmatprep.mubr.f32.mxu0 0.0
          %1100 = vmatmul.mubr.f32.gmra.mrb[0].mxu0 %v1020
          %v1101 = vpop.f32.mrb[0].mxu0
          %v1102 = vadd.f32 0.0, %v1101
          %v1103 = vpop.f32.mrb[0].mxu0
          %1104 = vmatprep.mubr.f32.mxu0 0.0
          %1105 = vmatmul.mubr.f32.gmra.mrb[0].mxu0 %v1023
          %v1106 = vpop.f32.mrb[0].mxu0
          %v1107 = vadd.f32 0.0, %v1106
          %v1108 = vpop.f32.mrb[0].mxu0
          %1109 = vdwg.mxu0
          %1110 = vst.msk [vmem:[#allocation9] sm:$0xff] %vm1012, %v1092
          %1111 = vst.msk [vmem:[#allocation9 + $0x8] sm:$0xff] %vm1012, %v1097
          %1112 = vst.msk [vmem:[#allocation9 + $0x10] sm:$0xff] %vm1012, %v1102
          %1113 = vst.msk [vmem:[#allocation9 + $0x18] sm:$0xff] %vm1012, %v1107
        $region156: #{tpu_custom_call.1} parent=119 // pred_fallthru
          _
        %v1114 = vld [vmem:[#allocation4] sm:$0x3]
        %v1115 = vld [vmem:[#allocation5] sm:$0x3]
        %v1116 = vld [vmem:[#allocation2] sm:$0x3]
        %v1117 = vld [vmem:[#allocation3] sm:$0x3]
        %v1118 = vld [vmem:[#allocation6] sm:$0x3]
        %v1119 = vld [vmem:[%s9] sm:$0xff]
        %v1120 = vld [vmem:[%s9 + $0x8] sm:$0xff]
        %v1121 = vld [vmem:[%s9 + $0x10] sm:$0xff]
        %v1122 = vld [vmem:[%s9 + $0x18] sm:$0xff]
        %v1123 = vld [vmem:[%s10] sm:$0xff]
        %v1124 = vld [vmem:[%s10 + $0x8] sm:$0xff]
        %v1125 = vld [vmem:[%s10 + $0x10] sm:$0xff]
        %v1126 = vld [vmem:[%s10 + $0x18] sm:$0xff]
        %vm1127 = vcmask 261120
        %v1129 = vsel %vm1127, %v1118, 0
        %1131 = vmatprep.subr.mxu0 0.0
        %1132 = vmatpush1.msra.mxu0 %v1123
        %1133 = vmatprep.subr.mxu0 0.0
        %1134 = vmatpush1.msra.mxu0 %v1124
        %1135 = vmatprep.subr.mxu0 0.0
        %1136 = vmatpush1.msra.mxu0 %v1125
        %1137 = vmatprep.subr.mxu0 0.0
        %1138 = vmatpush1.msra.mxu0 %v1126
        %1139 = vmatprep.subr.mxu0 0.0
        %1140 = vmatpush1.msra.mxu0 0.0
        %1141 = vmatprep.subr.mxu0 0.0
        %1142 = vmatpush1.msra.mxu0 0.0
        %1143 = vmatprep.subr.mxu0 0.0
        %1144 = vmatpush1.msra.mxu0 0.0
        %1145 = vmatprep.subr.mxu0 0.0
        %1146 = vmatpush1.msra.mxu0 0.0
        %1147 = vmatprep.subr.mxu0 0.0
        %1148 = vmatpush1.msra.mxu0 0.0
        %1149 = vmatprep.subr.mxu0 0.0
        %1150 = vmatpush1.msra.mxu0 0.0
        %1151 = vmatprep.subr.mxu0 0.0
        %1152 = vmatpush1.msra.mxu0 0.0
        %1153 = vmatprep.subr.mxu0 0.0
        %1154 = vmatpush1.msra.mxu0 0.0
        %1155 = vmatprep.subr.mxu0 0.0
        %1156 = vmatpush1.msra.mxu0 0.0
        %1157 = vmatprep.subr.mxu0 0.0
        %1158 = vmatpush1.msra.mxu0 0.0
        %1159 = vmatprep.subr.mxu0 0.0
        %1160 = vmatpush1.msra.mxu0 0.0
        %1161 = vmatprep.subr.mxu0 0.0
        %1162 = vmatpush1.msra.mxu0 0.0
        %1163 = vmatprep.subr.mxu0 0.0
        %1164 = vmatpush1.msra.mxu0 0.0
        %1165 = vmatprep.subr.mxu0 0.0
        %1166 = vmatpush1.msra.mxu0 0.0
        %1167 = vmatprep.subr.mxu0 0.0
        %1168 = vmatpush1.msra.mxu0 0.0
        %1169 = vmatprep.subr.mxu0 0.0
        %1170 = vmatpush1.msra.mxu0 0.0
        %1171 = vmatprep.subr.mxu0 0.0
        %1172 = vmatpush1.msra.mxu0 0.0
        %1173 = vmatprep.subr.mxu0 0.0
        %1174 = vmatpush1.msra.mxu0 0.0
        %1175 = vmatprep.subr.mxu0 0.0
        %1176 = vmatpush1.msra.mxu0 0.0
        %1177 = vmatprep.subr.mxu0 0.0
        %1178 = vmatpush1.msra.mxu0 0.0
        %1179 = vmatprep.subr.mxu0 0.0
        %1180 = vmatpush1.msra.mxu0 0.0
        %1181 = vmatprep.subr.mxu0 0.0
        %1182 = vmatpush1.msra.mxu0 0.0
        %1183 = vmatprep.subr.mxu0 0.0
        %1184 = vmatpush1.msra.mxu0 0.0
        %1185 = vmatprep.subr.mxu0 0.0
        %1186 = vmatpush1.msra.mxu0 0.0
        %1187 = vmatprep.subr.mxu0 0.0
        %1188 = vmatpush1.msra.mxu0 0.0
        %1189 = vmatprep.subr.mxu0 0.0
        %1190 = vmatpush1.msra.mxu0 0.0
        %1191 = vmatprep.subr.mxu0 0.0
        %1192 = vmatpush1.msra.mxu0 0.0
        %1193 = vmatprep.subr.mxu0 0.0
        %1194 = vmatpush1.msra.mxu0 0.0
        %1195 = vmatprep.mubr.f32.mxu0 0.0
        %1196 = vmatmul.mubr.f32.gmra.mrb[0].mxu0 %v1129
        %v1197 = vpop.f32.mrb[0].mxu0
        %v1198 = vadd.f32 0.0, %v1197
        %v1199 = vpop.f32.mrb[0].mxu0
        %1200 = vdwg.mxu0
        %v1202 = vsel %vm1127, %v1114, 0
        %1204 = vmatprep.subr.mxu0 0.0
        %1205 = vmatpush1.msra.mxu0 %v1119
        %1206 = vmatprep.subr.mxu0 0.0
        %1207 = vmatpush1.msra.mxu0 %v1120
        %1208 = vmatprep.subr.mxu0 0.0
        %1209 = vmatpush1.msra.mxu0 %v1121
        %1210 = vmatprep.subr.mxu0 0.0
        %1211 = vmatpush1.msra.mxu0 %v1122
        %1212 = vmatprep.subr.mxu0 0.0
        %1213 = vmatpush1.msra.mxu0 0.0
        %1214 = vmatprep.subr.mxu0 0.0
        %1215 = vmatpush1.msra.mxu0 0.0
        %1216 = vmatprep.subr.mxu0 0.0
        %1217 = vmatpush1.msra.mxu0 0.0
        %1218 = vmatprep.subr.mxu0 0.0
        %1219 = vmatpush1.msra.mxu0 0.0
        %1220 = vmatprep.subr.mxu0 0.0
        %1221 = vmatpush1.msra.mxu0 0.0
        %1222 = vmatprep.subr.mxu0 0.0
        %1223 = vmatpush1.msra.mxu0 0.0
        %1224 = vmatprep.subr.mxu0 0.0
        %1225 = vmatpush1.msra.mxu0 0.0
        %1226 = vmatprep.subr.mxu0 0.0
        %1227 = vmatpush1.msra.mxu0 0.0
        %1228 = vmatprep.subr.mxu0 0.0
        %1229 = vmatpush1.msra.mxu0 0.0
        %1230 = vmatprep.subr.mxu0 0.0
        %1231 = vmatpush1.msra.mxu0 0.0
        %1232 = vmatprep.subr.mxu0 0.0
        %1233 = vmatpush1.msra.mxu0 0.0
        %1234 = vmatprep.subr.mxu0 0.0
        %1235 = vmatpush1.msra.mxu0 0.0
        %1236 = vmatprep.subr.mxu0 0.0
        %1237 = vmatpush1.msra.mxu0 0.0
        %1238 = vmatprep.subr.mxu0 0.0
        %1239 = vmatpush1.msra.mxu0 0.0
        %1240 = vmatprep.subr.mxu0 0.0
        %1241 = vmatpush1.msra.mxu0 0.0
        %1242 = vmatprep.subr.mxu0 0.0
        %1243 = vmatpush1.msra.mxu0 0.0
        %1244 = vmatprep.subr.mxu0 0.0
        %1245 = vmatpush1.msra.mxu0 0.0
        %1246 = vmatprep.subr.mxu0 0.0
        %1247 = vmatpush1.msra.mxu0 0.0
        %1248 = vmatprep.subr.mxu0 0.0
        %1249 = vmatpush1.msra.mxu0 0.0
        %1250 = vmatprep.subr.mxu0 0.0
        %1251 = vmatpush1.msra.mxu0 0.0
        %1252 = vmatprep.subr.mxu0 0.0
        %1253 = vmatpush1.msra.mxu0 0.0
        %1254 = vmatprep.subr.mxu0 0.0
        %1255 = vmatpush1.msra.mxu0 0.0
        %1256 = vmatprep.subr.mxu0 0.0
        %1257 = vmatpush1.msra.mxu0 0.0
        %1258 = vmatprep.subr.mxu0 0.0
        %1259 = vmatpush1.msra.mxu0 0.0
        %1260 = vmatprep.subr.mxu0 0.0
        %1261 = vmatpush1.msra.mxu0 0.0
        %1262 = vmatprep.subr.mxu0 0.0
        %1263 = vmatpush1.msra.mxu0 0.0
        %1264 = vmatprep.subr.mxu0 0.0
        %1265 = vmatpush1.msra.mxu0 0.0
        %1266 = vmatprep.subr.mxu0 0.0
        %1267 = vmatpush1.msra.mxu0 0.0
        %1268 = vmatprep.mubr.f32.mxu0 0.0
        %1269 = vmatmul.mubr.f32.gmra.mrb[0].mxu0 %v1202
        %v1270 = vpop.f32.mrb[0].mxu0
        %v1271 = vadd.f32 %v1198, %v1270
        %v1272 = vpop.f32.mrb[0].mxu0
        %1273 = vdwg.mxu0
        %v1274 = vld [vmem:[%s11] sm:$0xff]
        %v1275 = vld [vmem:[%s11 + $0x8] sm:$0xff]
        %v1276 = vld [vmem:[%s11 + $0x10] sm:$0xff]
        %v1277 = vld [vmem:[%s11 + $0x18] sm:$0xff]
        %v1279 = vsel %vm1127, %v1116, 0
        %1281 = vmatprep.subr.mxu0 0.0
        %1282 = vmatpush1.msra.mxu0 %v1274
        %1283 = vmatprep.subr.mxu0 0.0
        %1284 = vmatpush1.msra.mxu0 %v1275
        %1285 = vmatprep.subr.mxu0 0.0
        %1286 = vmatpush1.msra.mxu0 %v1276
        %1287 = vmatprep.subr.mxu0 0.0
        %1288 = vmatpush1.msra.mxu0 %v1277
        %1289 = vmatprep.subr.mxu0 0.0
        %1290 = vmatpush1.msra.mxu0 0.0
        %1291 = vmatprep.subr.mxu0 0.0
        %1292 = vmatpush1.msra.mxu0 0.0
        %1293 = vmatprep.subr.mxu0 0.0
        %1294 = vmatpush1.msra.mxu0 0.0
        %1295 = vmatprep.subr.mxu0 0.0
        %1296 = vmatpush1.msra.mxu0 0.0
        %1297 = vmatprep.subr.mxu0 0.0
        %1298 = vmatpush1.msra.mxu0 0.0
        %1299 = vmatprep.subr.mxu0 0.0
        %1300 = vmatpush1.msra.mxu0 0.0
        %1301 = vmatprep.subr.mxu0 0.0
        %1302 = vmatpush1.msra.mxu0 0.0
        %1303 = vmatprep.subr.mxu0 0.0
        %1304 = vmatpush1.msra.mxu0 0.0
        %1305 = vmatprep.subr.mxu0 0.0
        %1306 = vmatpush1.msra.mxu0 0.0
        %1307 = vmatprep.subr.mxu0 0.0
        %1308 = vmatpush1.msra.mxu0 0.0
        %1309 = vmatprep.subr.mxu0 0.0
        %1310 = vmatpush1.msra.mxu0 0.0
        %1311 = vmatprep.subr.mxu0 0.0
        %1312 = vmatpush1.msra.mxu0 0.0
        %1313 = vmatprep.subr.mxu0 0.0
        %1314 = vmatpush1.msra.mxu0 0.0
        %1315 = vmatprep.subr.mxu0 0.0
        %1316 = vmatpush1.msra.mxu0 0.0
        %1317 = vmatprep.subr.mxu0 0.0
        %1318 = vmatpush1.msra.mxu0 0.0
        %1319 = vmatprep.subr.mxu0 0.0
        %1320 = vmatpush1.msra.mxu0 0.0
        %1321 = vmatprep.subr.mxu0 0.0
        %1322 = vmatpush1.msra.mxu0 0.0
        %1323 = vmatprep.subr.mxu0 0.0
        %1324 = vmatpush1.msra.mxu0 0.0
        %1325 = vmatprep.subr.mxu0 0.0
        %1326 = vmatpush1.msra.mxu0 0.0
        %1327 = vmatprep.subr.mxu0 0.0
        %1328 = vmatpush1.msra.mxu0 0.0
        %1329 = vmatprep.subr.mxu0 0.0
        %1330 = vmatpush1.msra.mxu0 0.0
        %1331 = vmatprep.subr.mxu0 0.0
        %1332 = vmatpush1.msra.mxu0 0.0
        %1333 = vmatprep.subr.mxu0 0.0
        %1334 = vmatpush1.msra.mxu0 0.0
        %1335 = vmatprep.subr.mxu0 0.0
        %1336 = vmatpush1.msra.mxu0 0.0
        %1337 = vmatprep.subr.mxu0 0.0
        %1338 = vmatpush1.msra.mxu0 0.0
        %1339 = vmatprep.subr.mxu0 0.0
        %1340 = vmatpush1.msra.mxu0 0.0
        %1341 = vmatprep.subr.mxu0 0.0
        %1342 = vmatpush1.msra.mxu0 0.0
        %1343 = vmatprep.subr.mxu0 0.0
        %1344 = vmatpush1.msra.mxu0 0.0
        %1345 = vmatprep.mubr.f32.mxu0 0.0
        %1346 = vmatmul.mubr.f32.gmra.mrb[0].mxu0 %v1279
        %v1347 = vpop.f32.mrb[0].mxu0
        %v1348 = vadd.f32 0.0, %v1347
        %v1349 = vpop.f32.mrb[0].mxu0
        %1350 = vdwg.mxu0
        %v1351 = vadd.f32 %v1271, %v1348
        %v1352 = vld [vmem:[#allocation17] sm:$0x1]
        %v1354 = vlaneseq
        %v1355 = vshrl.u32 %v1354, 7
        %v1356 = vsub.s32 0, %v1355
        %v1357 = vrot.slane %v1352, %v1356
        %v1359 = vadd.f32 %v1351, %v1357
        %v1360 = vxor.u32 %v1359, 2147483648
        %v1361 = vmul.f32 %v1360, 1.442695
        %v1362 = vpow.pop %v1361
        %v1363 = vadd.f32 %v1362, 1.0
        %v1364 = vrcp.pop %v1363
        %v1365 = vmul.f32 1.0, %v1364
        %v1366 = vtanh.pop %v1359
        %1368 = vrot.lane.b32.xlu0 %v1117, 32
        %v1369 = vpop.permute.xlu0 %1368
        %v1371 = vmul.f32 %v1365, %v1369
        %1373 = vrot.lane.b32.xlu0 %v1366, 64
        %v1374 = vpop.permute.xlu0 %1373
        %v1376 = vmul.f32 %v1365, %v1374
        %1378 = vrot.lane.b32.xlu0 %v1376, 32
        %v1379 = vpop.permute.xlu0 %1378
        %v1381 = vadd.f32 %v1371, %v1379
        %v1382 = vtanh.pop %v1381
        %1384 = vrot.lane.b32.xlu0 %v1382, 64
        %v1385 = vpop.permute.xlu0 %1384
        %v1387 = vmul.f32 %v1365, %v1385
        %1389 = vrot.lane.b32.xlu0 %v1387, 32
        %v1390 = vpop.permute.xlu0 %1389
        %vm1392 = vcmask 254976
        %1393 = vst.msk [vmem:[#allocation2] sm:$0x3] %vm1392, %v1390
        %1395 = vrot.lane.b32.xlu0 %v1381, 96
        %v1396 = vpop.permute.xlu0 %1395
        %1398 = vst.msk [vmem:[#allocation3] sm:$0x3] %vm1392, %v1396
        %v1399 = vld [vmem:[%s5] sm:$0xff]
        %v1400 = vld [vmem:[%s5 + $0x8] sm:$0xff]
        %v1401 = vld [vmem:[%s5 + $0x10] sm:$0xff]
        %v1402 = vld [vmem:[%s5 + $0x18] sm:$0xff]
        %v1403 = vsel %vm1127, %v1390, 0
        %1405 = vmatprep.subr.mxu0 0.0
        %1406 = vmatpush1.msra.mxu0 %v1399
        %1407 = vmatprep.subr.mxu0 0.0
        %1408 = vmatpush1.msra.mxu0 %v1400
        %1409 = vmatprep.subr.mxu0 0.0
        %1410 = vmatpush1.msra.mxu0 %v1401
        %1411 = vmatprep.subr.mxu0 0.0
        %1412 = vmatpush1.msra.mxu0 %v1402
        %1413 = vmatprep.subr.mxu0 0.0
        %1414 = vmatpush1.msra.mxu0 0.0
        %1415 = vmatprep.subr.mxu0 0.0
        %1416 = vmatpush1.msra.mxu0 0.0
        %1417 = vmatprep.subr.mxu0 0.0
        %1418 = vmatpush1.msra.mxu0 0.0
        %1419 = vmatprep.subr.mxu0 0.0
        %1420 = vmatpush1.msra.mxu0 0.0
        %1421 = vmatprep.subr.mxu0 0.0
        %1422 = vmatpush1.msra.mxu0 0.0
        %1423 = vmatprep.subr.mxu0 0.0
        %1424 = vmatpush1.msra.mxu0 0.0
        %1425 = vmatprep.subr.mxu0 0.0
        %1426 = vmatpush1.msra.mxu0 0.0
        %1427 = vmatprep.subr.mxu0 0.0
        %1428 = vmatpush1.msra.mxu0 0.0
        %1429 = vmatprep.subr.mxu0 0.0
        %1430 = vmatpush1.msra.mxu0 0.0
        %1431 = vmatprep.subr.mxu0 0.0
        %1432 = vmatpush1.msra.mxu0 0.0
        %1433 = vmatprep.subr.mxu0 0.0
        %1434 = vmatpush1.msra.mxu0 0.0
        %1435 = vmatprep.subr.mxu0 0.0
        %1436 = vmatpush1.msra.mxu0 0.0
        %1437 = vmatprep.subr.mxu0 0.0
        %1438 = vmatpush1.msra.mxu0 0.0
        %1439 = vmatprep.subr.mxu0 0.0
        %1440 = vmatpush1.msra.mxu0 0.0
        %1441 = vmatprep.subr.mxu0 0.0
        %1442 = vmatpush1.msra.mxu0 0.0
        %1443 = vmatprep.subr.mxu0 0.0
        %1444 = vmatpush1.msra.mxu0 0.0
        %1445 = vmatprep.subr.mxu0 0.0
        %1446 = vmatpush1.msra.mxu0 0.0
        %1447 = vmatprep.subr.mxu0 0.0
        %1448 = vmatpush1.msra.mxu0 0.0
        %1449 = vmatprep.subr.mxu0 0.0
        %1450 = vmatpush1.msra.mxu0 0.0
        %1451 = vmatprep.subr.mxu0 0.0
        %1452 = vmatpush1.msra.mxu0 0.0
        %1453 = vmatprep.subr.mxu0 0.0
        %1454 = vmatpush1.msra.mxu0 0.0
        %1455 = vmatprep.subr.mxu0 0.0
        %1456 = vmatpush1.msra.mxu0 0.0
        %1457 = vmatprep.subr.mxu0 0.0
        %1458 = vmatpush1.msra.mxu0 0.0
        %1459 = vmatprep.subr.mxu0 0.0
        %1460 = vmatpush1.msra.mxu0 0.0
        %1461 = vmatprep.subr.mxu0 0.0
        %1462 = vmatpush1.msra.mxu0 0.0
        %1463 = vmatprep.subr.mxu0 0.0
        %1464 = vmatpush1.msra.mxu0 0.0
        %1465 = vmatprep.subr.mxu0 0.0
        %1466 = vmatpush1.msra.mxu0 0.0
        %1467 = vmatprep.subr.mxu0 0.0
        %1468 = vmatpush1.msra.mxu0 0.0
        %1469 = vmatprep.mubr.f32.mxu0 0.0
        %1470 = vmatmul.mubr.f32.gmra.mrb[0].mxu0 %v1403
        %v1471 = vpop.f32.mrb[0].mxu0
        %v1472 = vadd.f32 0.0, %v1471
        %v1473 = vpop.f32.mrb[0].mxu0
        %1474 = vdwg.mxu0
        %v1475 = vld [vmem:[#allocation7 + $0x6] sm:$0xff]
        %v1476 = vld [vmem:[#allocation7 + $0xe] sm:$0xff]
        %v1477 = vld [vmem:[#allocation7 + $0x26] sm:$0xff]
        %v1478 = vld [vmem:[#allocation7 + $0x2e] sm:$0xff]
        %v1479 = vld [vmem:[#allocation14] sm:$0x1]
        %1481 = vset.pattern.permute.xlu0 0
        %1482 = vperm.xlu0 %1481, %v1475
        %v1483 = vpop.permute.xlu0 %1482
        %1486 = vset.pattern.permute.xlu0 0
        %1487 = vperm.xlu0 %1486, %v1476
        %v1488 = vpop.permute.xlu0 %1487
        %1491 = vset.pattern.permute.xlu0 0
        %1492 = vperm.xlu0 %1491, %v1477
        %v1493 = vpop.permute.xlu0 %1492
        %1496 = vset.pattern.permute.xlu0 0
        %1497 = vperm.xlu0 %1496, %v1478
        %v1498 = vpop.permute.xlu0 %1497
        %v1501 = vlaneseq
        %v1502 = vshrl.u32 %v1501, 7
        %v1503 = vsub.s32 0, %v1502
        %v1504 = vrot.slane %v1479, %v1503
        %v1506 = vmul.f32 %v1483, %v1504
        %v1507 = vmul.f32 %v1488, %v1504
        %v1508 = vmul.f32 %v1493, %v1504
        %v1509 = vmul.f32 %v1498, %v1504
        %v1510 = vadd.f32 %v1506, 0.0
        %v1511 = vadd.f32 %v1507, 0.0
        %v1512 = vadd.f32 %v1508, 0.0
        %v1513 = vadd.f32 %v1509, 0.0
        %v1514 = vld [vmem:[#allocation8 + $0x6] sm:$0xff]
        %v1515 = vld [vmem:[#allocation8 + $0xe] sm:$0xff]
        %v1516 = vld [vmem:[#allocation8 + $0x26] sm:$0xff]
        %v1517 = vld [vmem:[#allocation8 + $0x2e] sm:$0xff]
        %v1518 = vld [vmem:[#allocation16] sm:$0x1]
        %1520 = vset.pattern.permute.xlu0 0
        %1521 = vperm.xlu0 %1520, %v1514
        %v1522 = vpop.permute.xlu0 %1521
        %1525 = vset.pattern.permute.xlu0 0
        %1526 = vperm.xlu0 %1525, %v1515
        %v1527 = vpop.permute.xlu0 %1526
        %1530 = vset.pattern.permute.xlu0 0
        %1531 = vperm.xlu0 %1530, %v1516
        %v1532 = vpop.permute.xlu0 %1531
        %1535 = vset.pattern.permute.xlu0 0
        %1536 = vperm.xlu0 %1535, %v1517
        %v1537 = vpop.permute.xlu0 %1536
        %v1540 = vlaneseq
        %v1541 = vshrl.u32 %v1540, 7
        %v1542 = vsub.s32 0, %v1541
        %v1543 = vrot.slane %v1518, %v1542
        %v1545 = vmul.f32 %v1522, %v1543
        %v1546 = vmul.f32 %v1527, %v1543
        %v1547 = vmul.f32 %v1532, %v1543
        %v1548 = vmul.f32 %v1537, %v1543
        %v1549 = vadd.f32 %v1510, %v1545
        %v1550 = vadd.f32 %v1511, %v1546
        %v1551 = vadd.f32 %v1512, %v1547
        %v1552 = vadd.f32 %v1513, %v1548
        %v1553 = vld [vmem:[#allocation7 + $0x7] sm:$0xff]
        %v1554 = vld [vmem:[#allocation7 + $0xf] sm:$0xff]
        %v1555 = vld [vmem:[#allocation7 + $0x27] sm:$0xff]
        %v1556 = vld [vmem:[#allocation7 + $0x2f] sm:$0xff]
        %s1557 = scalar_lea.vmem [#allocation14], 1
        %v1558 = vld [vmem:[%s1557] sm:$0x1]
        %1560 = vset.pattern.permute.xlu0 0
        %1561 = vperm.xlu0 %1560, %v1553
        %v1562 = vpop.permute.xlu0 %1561
        %1565 = vset.pattern.permute.xlu0 0
        %1566 = vperm.xlu0 %1565, %v1554
        %v1567 = vpop.permute.xlu0 %1566
        %1570 = vset.pattern.permute.xlu0 0
        %1571 = vperm.xlu0 %1570, %v1555
        %v1572 = vpop.permute.xlu0 %1571
        %1575 = vset.pattern.permute.xlu0 0
        %1576 = vperm.xlu0 %1575, %v1556
        %v1577 = vpop.permute.xlu0 %1576
        %v1580 = vlaneseq
        %v1581 = vshrl.u32 %v1580, 7
        %v1582 = vsub.s32 0, %v1581
        %v1583 = vrot.slane %v1558, %v1582
        %v1585 = vmul.f32 %v1562, %v1583
        %v1586 = vmul.f32 %v1567, %v1583
        %v1587 = vmul.f32 %v1572, %v1583
        %v1588 = vmul.f32 %v1577, %v1583
        %v1589 = vadd.f32 %v1549, %v1585
        %v1590 = vadd.f32 %v1550, %v1586
        %v1591 = vadd.f32 %v1551, %v1587
        %v1592 = vadd.f32 %v1552, %v1588
        %v1593 = vld [vmem:[#allocation8 + $0x7] sm:$0xff]
        %v1594 = vld [vmem:[#allocation8 + $0xf] sm:$0xff]
        %v1595 = vld [vmem:[#allocation8 + $0x27] sm:$0xff]
        %v1596 = vld [vmem:[#allocation8 + $0x2f] sm:$0xff]
        %s1597 = scalar_lea.vmem [#allocation16], 1
        %v1598 = vld [vmem:[%s1597] sm:$0x1]
        %1600 = vset.pattern.permute.xlu0 0
        %1601 = vperm.xlu0 %1600, %v1593
        %v1602 = vpop.permute.xlu0 %1601
        %1605 = vset.pattern.permute.xlu0 0
        %1606 = vperm.xlu0 %1605, %v1594
        %v1607 = vpop.permute.xlu0 %1606
        %1610 = vset.pattern.permute.xlu0 0
        %1611 = vperm.xlu0 %1610, %v1595
        %v1612 = vpop.permute.xlu0 %1611
        %1615 = vset.pattern.permute.xlu0 0
        %1616 = vperm.xlu0 %1615, %v1596
        %v1617 = vpop.permute.xlu0 %1616
        %v1620 = vlaneseq
        %v1621 = vshrl.u32 %v1620, 7
        %v1622 = vsub.s32 0, %v1621
        %v1623 = vrot.slane %v1598, %v1622
        %v1625 = vmul.f32 %v1602, %v1623
        %v1626 = vmul.f32 %v1607, %v1623
        %v1627 = vmul.f32 %v1612, %v1623
        %v1628 = vmul.f32 %v1617, %v1623
        %v1629 = vadd.f32 %v1589, %v1625
        %v1630 = vadd.f32 %v1590, %v1626
        %v1631 = vadd.f32 %v1591, %v1627
        %v1632 = vadd.f32 %v1592, %v1628
        %v1633 = vld [vmem:[#allocation7 + $0x8] sm:$0xff]
        %v1634 = vld [vmem:[#allocation7 + $0x10] sm:$0xff]
        %v1635 = vld [vmem:[#allocation7 + $0x28] sm:$0xff]
        %v1636 = vld [vmem:[#allocation7 + $0x30] sm:$0xff]
        %s1637 = scalar_lea.vmem [#allocation14], 2
        %v1638 = vld [vmem:[%s1637] sm:$0x1]
        %1640 = vset.pattern.permute.xlu0 0
        %1641 = vperm.xlu0 %1640, %v1633
        %v1642 = vpop.permute.xlu0 %1641
        %1645 = vset.pattern.permute.xlu0 0
        %1646 = vperm.xlu0 %1645, %v1634
        %v1647 = vpop.permute.xlu0 %1646
        %1650 = vset.pattern.permute.xlu0 0
        %1651 = vperm.xlu0 %1650, %v1635
        %v1652 = vpop.permute.xlu0 %1651
        %1655 = vset.pattern.permute.xlu0 0
        %1656 = vperm.xlu0 %1655, %v1636
        %v1657 = vpop.permute.xlu0 %1656
        %v1660 = vlaneseq
        %v1661 = vshrl.u32 %v1660, 7
        %v1662 = vsub.s32 0, %v1661
        %v1663 = vrot.slane %v1638, %v1662
        %v1665 = vmul.f32 %v1642, %v1663
        %v1666 = vmul.f32 %v1647, %v1663
        %v1667 = vmul.f32 %v1652, %v1663
        %v1668 = vmul.f32 %v1657, %v1663
        %v1669 = vadd.f32 %v1629, %v1665
        %v1670 = vadd.f32 %v1630, %v1666
        %v1671 = vadd.f32 %v1631, %v1667
        %v1672 = vadd.f32 %v1632, %v1668
        %v1673 = vld [vmem:[#allocation8 + $0x8] sm:$0xff]
        %v1674 = vld [vmem:[#allocation8 + $0x10] sm:$0xff]
        %v1675 = vld [vmem:[#allocation8 + $0x28] sm:$0xff]
        %v1676 = vld [vmem:[#allocation8 + $0x30] sm:$0xff]
        %s1677 = scalar_lea.vmem [#allocation16], 2
        %v1678 = vld [vmem:[%s1677] sm:$0x1]
        %1680 = vset.pattern.permute.xlu0 0
        %1681 = vperm.xlu0 %1680, %v1673
        %v1682 = vpop.permute.xlu0 %1681
        %1685 = vset.pattern.permute.xlu0 0
        %1686 = vperm.xlu0 %1685, %v1674
        %v1687 = vpop.permute.xlu0 %1686
        %1690 = vset.pattern.permute.xlu0 0
        %1691 = vperm.xlu0 %1690, %v1675
        %v1692 = vpop.permute.xlu0 %1691
        %1695 = vset.pattern.permute.xlu0 0
        %1696 = vperm.xlu0 %1695, %v1676
        %v1697 = vpop.permute.xlu0 %1696
        %v1700 = vlaneseq
        %v1701 = vshrl.u32 %v1700, 7
        %v1702 = vsub.s32 0, %v1701
        %v1703 = vrot.slane %v1678, %v1702
        %v1705 = vmul.f32 %v1682, %v1703
        %v1706 = vmul.f32 %v1687, %v1703
        %v1707 = vmul.f32 %v1692, %v1703
        %v1708 = vmul.f32 %v1697, %v1703
        %v1709 = vadd.f32 %v1669, %v1705
        %v1710 = vadd.f32 %v1670, %v1706
        %v1711 = vadd.f32 %v1671, %v1707
        %v1712 = vadd.f32 %v1672, %v1708
        %v1713 = vld [vmem:[#allocation7 + $0x9] sm:$0xff]
        %v1714 = vld [vmem:[#allocation7 + $0x11] sm:$0xff]
        %v1715 = vld [vmem:[#allocation7 + $0x29] sm:$0xff]
        %v1716 = vld [vmem:[#allocation7 + $0x31] sm:$0xff]
        %s1717 = scalar_lea.vmem [#allocation14], 3
        %v1718 = vld [vmem:[%s1717] sm:$0x1]
        %1720 = vset.pattern.permute.xlu0 0
        %1721 = vperm.xlu0 %1720, %v1713
        %v1722 = vpop.permute.xlu0 %1721
        %1725 = vset.pattern.permute.xlu0 0
        %1726 = vperm.xlu0 %1725, %v1714
        %v1727 = vpop.permute.xlu0 %1726
        %1730 = vset.pattern.permute.xlu0 0
        %1731 = vperm.xlu0 %1730, %v1715
        %v1732 = vpop.permute.xlu0 %1731
        %1735 = vset.pattern.permute.xlu0 0
        %1736 = vperm.xlu0 %1735, %v1716
        %v1737 = vpop.permute.xlu0 %1736
        %v1740 = vlaneseq
        %v1741 = vshrl.u32 %v1740, 7
        %v1742 = vsub.s32 0, %v1741
        %v1743 = vrot.slane %v1718, %v1742
        %v1745 = vmul.f32 %v1722, %v1743
        %v1746 = vmul.f32 %v1727, %v1743
        %v1747 = vmul.f32 %v1732, %v1743
        %v1748 = vmul.f32 %v1737, %v1743
        %v1749 = vadd.f32 %v1709, %v1745
        %v1750 = vadd.f32 %v1710, %v1746
        %v1751 = vadd.f32 %v1711, %v1747
        %v1752 = vadd.f32 %v1712, %v1748
        %v1753 = vld [vmem:[#allocation8 + $0x9] sm:$0xff]
        %v1754 = vld [vmem:[#allocation8 + $0x11] sm:$0xff]
        %v1755 = vld [vmem:[#allocation8 + $0x29] sm:$0xff]
        %v1756 = vld [vmem:[#allocation8 + $0x31] sm:$0xff]
        %s1757 = scalar_lea.vmem [#allocation16], 3
        %v1758 = vld [vmem:[%s1757] sm:$0x1]
        %1760 = vset.pattern.permute.xlu0 0
        %1761 = vperm.xlu0 %1760, %v1753
        %v1762 = vpop.permute.xlu0 %1761
        %1765 = vset.pattern.permute.xlu0 0
        %1766 = vperm.xlu0 %1765, %v1754
        %v1767 = vpop.permute.xlu0 %1766
        %1770 = vset.pattern.permute.xlu0 0
        %1771 = vperm.xlu0 %1770, %v1755
        %v1772 = vpop.permute.xlu0 %1771
        %1775 = vset.pattern.permute.xlu0 0
        %1776 = vperm.xlu0 %1775, %v1756
        %v1777 = vpop.permute.xlu0 %1776
        %v1780 = vlaneseq
        %v1781 = vshrl.u32 %v1780, 7
        %v1782 = vsub.s32 0, %v1781
        %v1783 = vrot.slane %v1758, %v1782
        %v1785 = vmul.f32 %v1762, %v1783
        %v1786 = vmul.f32 %v1767, %v1783
        %v1787 = vmul.f32 %v1772, %v1783
        %v1788 = vmul.f32 %v1777, %v1783
        %v1789 = vadd.f32 %v1749, %v1785
        %v1790 = vadd.f32 %v1750, %v1786
        %v1791 = vadd.f32 %v1751, %v1787
        %v1792 = vadd.f32 %v1752, %v1788
        %v1793 = vld [vmem:[#allocation7 + $0xa] sm:$0xff]
        %v1794 = vld [vmem:[#allocation7 + $0x12] sm:$0xff]
        %v1795 = vld [vmem:[#allocation7 + $0x2a] sm:$0xff]
        %v1796 = vld [vmem:[#allocation7 + $0x32] sm:$0xff]
        %s1797 = scalar_lea.vmem [#allocation14], 4
        %v1798 = vld [vmem:[%s1797] sm:$0x1]
        %1800 = vset.pattern.permute.xlu0 0
        %1801 = vperm.xlu0 %1800, %v1793
        %v1802 = vpop.permute.xlu0 %1801
        %1805 = vset.pattern.permute.xlu0 0
        %1806 = vperm.xlu0 %1805, %v1794
        %v1807 = vpop.permute.xlu0 %1806
        %1810 = vset.pattern.permute.xlu0 0
        %1811 = vperm.xlu0 %1810, %v1795
        %v1812 = vpop.permute.xlu0 %1811
        %1815 = vset.pattern.permute.xlu0 0
        %1816 = vperm.xlu0 %1815, %v1796
        %v1817 = vpop.permute.xlu0 %1816
        %v1820 = vlaneseq
        %v1821 = vshrl.u32 %v1820, 7
        %v1822 = vsub.s32 0, %v1821
        %v1823 = vrot.slane %v1798, %v1822
        %v1825 = vmul.f32 %v1802, %v1823
        %v1826 = vmul.f32 %v1807, %v1823
        %v1827 = vmul.f32 %v1812, %v1823
        %v1828 = vmul.f32 %v1817, %v1823
        %v1829 = vadd.f32 %v1789, %v1825
        %v1830 = vadd.f32 %v1790, %v1826
        %v1831 = vadd.f32 %v1791, %v1827
        %v1832 = vadd.f32 %v1792, %v1828
        %v1833 = vld [vmem:[#allocation8 + $0xa] sm:$0xff]
        %v1834 = vld [vmem:[#allocation8 + $0x12] sm:$0xff]
        %v1835 = vld [vmem:[#allocation8 + $0x2a] sm:$0xff]
        %v1836 = vld [vmem:[#allocation8 + $0x32] sm:$0xff]
        %s1837 = scalar_lea.vmem [#allocation16], 4
        %v1838 = vld [vmem:[%s1837] sm:$0x1]
        %1840 = vset.pattern.permute.xlu0 0
        %1841 = vperm.xlu0 %1840, %v1833
        %v1842 = vpop.permute.xlu0 %1841
        %1845 = vset.pattern.permute.xlu0 0
        %1846 = vperm.xlu0 %1845, %v1834
        %v1847 = vpop.permute.xlu0 %1846
        %1850 = vset.pattern.permute.xlu0 0
        %1851 = vperm.xlu0 %1850, %v1835
        %v1852 = vpop.permute.xlu0 %1851
        %1855 = vset.pattern.permute.xlu0 0
        %1856 = vperm.xlu0 %1855, %v1836
        %v1857 = vpop.permute.xlu0 %1856
        %v1860 = vlaneseq
        %v1861 = vshrl.u32 %v1860, 7
        %v1862 = vsub.s32 0, %v1861
        %v1863 = vrot.slane %v1838, %v1862
        %v1865 = vmul.f32 %v1842, %v1863
        %v1866 = vmul.f32 %v1847, %v1863
        %v1867 = vmul.f32 %v1852, %v1863
        %v1868 = vmul.f32 %v1857, %v1863
        %v1869 = vadd.f32 %v1829, %v1865
        %v1870 = vadd.f32 %v1830, %v1866
        %v1871 = vadd.f32 %v1831, %v1867
        %v1872 = vadd.f32 %v1832, %v1868
        %v1875 = vunpack.c.l.s4 1966171168
        %v1876 = vunpack.c.0.s8 %v1875
        %v1877 = vlaneseq
        %v1878 = vshrl.u32 %v1877, 7
        %v1879 = vsub.s32 %v1876, %v1878
        %v1880 = vrot.slane %v1472, %v1879
        %v1881 = vcombine.high %v1880, %v1880
        %v1883 = vunpack.c.l.s4 1966171168
        %v1884 = vunpack.c.0.s8 %v1883
        %v1885 = vlaneseq
        %v1886 = vshrl.u32 %v1885, 7
        %v1887 = vsub.s32 %v1884, %v1886
        %v1888 = vrot.slane %v1880, %v1887
        %v1890 = vunpack.c.l.s4 1966171168
        %v1891 = vunpack.c.0.s8 %v1890
        %v1892 = vlaneseq
        %v1893 = vshrl.u32 %v1892, 7
        %v1894 = vsub.s32 %v1891, %v1893
        %v1895 = vrot.slane %v1881, %v1894
        %v1896 = vlaneseq
        %v1897 = vshrl.u32 %v1896, 7
        %v1898 = vsub.s32 0, %v1897
        %v1899 = vrot.slane %v1888, %v1898
        %v1900 = vlaneseq
        %v1901 = vshrl.u32 %v1900, 7
        %v1902 = vsub.s32 0, %v1901
        %v1903 = vrot.slane %v1895, %v1902
        %v1906 = vadd.f32 %v1899, %v1869
        %v1907 = vadd.f32 %v1899, %v1870
        %v1908 = vadd.f32 %v1903, %v1871
        %v1909 = vadd.f32 %v1903, %v1872
        %v1910 = vld [vmem:[#allocation9] sm:$0xff]
        %v1911 = vld [vmem:[#allocation9 + $0x8] sm:$0xff]
        %v1912 = vld [vmem:[#allocation9 + $0x10] sm:$0xff]
        %v1913 = vld [vmem:[#allocation9 + $0x18] sm:$0xff]
        %v1914 = vadd.f32 %v1906, %v1910
        %v1915 = vadd.f32 %v1907, %v1911
        %v1916 = vadd.f32 %v1908, %v1912
        %v1917 = vadd.f32 %v1909, %v1913
        %v1918 = vtanh.pop %v1914
        %v1919 = vtanh.pop %v1915
        %v1920 = vtanh.pop %v1916
        %v1921 = vtanh.pop %v1917
        %v1922 = vld [vmem:[%s6] sm:$0xff]
        %v1923 = vld [vmem:[%s6 + $0x8] sm:$0xff]
        %v1924 = vld [vmem:[%s6 + $0x10] sm:$0xff]
        %v1925 = vld [vmem:[%s6 + $0x18] sm:$0xff]
        %v1927 = vsel %vm1127, %v1918, 0
        %v1930 = vsel %vm1127, %v1919, 0
        %v1933 = vsel %vm1127, %v1920, 0
        %v1936 = vsel %vm1127, %v1921, 0
        %1938 = vmatprep.subr.mxu0 0.0
        %1939 = vmatpush1.msra.mxu0 %v1922
        %1940 = vmatprep.subr.mxu0 0.0
        %1941 = vmatpush1.msra.mxu0 %v1923
        %1942 = vmatprep.subr.mxu0 0.0
        %1943 = vmatpush1.msra.mxu0 %v1924
        %1944 = vmatprep.subr.mxu0 0.0
        %1945 = vmatpush1.msra.mxu0 %v1925
        %1946 = vmatprep.subr.mxu0 0.0
        %1947 = vmatpush1.msra.mxu0 0.0
        %1948 = vmatprep.subr.mxu0 0.0
        %1949 = vmatpush1.msra.mxu0 0.0
        %1950 = vmatprep.subr.mxu0 0.0
        %1951 = vmatpush1.msra.mxu0 0.0
        %1952 = vmatprep.subr.mxu0 0.0
        %1953 = vmatpush1.msra.mxu0 0.0
        %1954 = vmatprep.subr.mxu0 0.0
        %1955 = vmatpush1.msra.mxu0 0.0
        %1956 = vmatprep.subr.mxu0 0.0
        %1957 = vmatpush1.msra.mxu0 0.0
        %1958 = vmatprep.subr.mxu0 0.0
        %1959 = vmatpush1.msra.mxu0 0.0
        %1960 = vmatprep.subr.mxu0 0.0
        %1961 = vmatpush1.msra.mxu0 0.0
        %1962 = vmatprep.subr.mxu0 0.0
        %1963 = vmatpush1.msra.mxu0 0.0
        %1964 = vmatprep.subr.mxu0 0.0
        %1965 = vmatpush1.msra.mxu0 0.0
        %1966 = vmatprep.subr.mxu0 0.0
        %1967 = vmatpush1.msra.mxu0 0.0
        %1968 = vmatprep.subr.mxu0 0.0
        %1969 = vmatpush1.msra.mxu0 0.0
        %1970 = vmatprep.subr.mxu0 0.0
        %1971 = vmatpush1.msra.mxu0 0.0
        %1972 = vmatprep.subr.mxu0 0.0
        %1973 = vmatpush1.msra.mxu0 0.0
        %1974 = vmatprep.subr.mxu0 0.0
        %1975 = vmatpush1.msra.mxu0 0.0
        %1976 = vmatprep.subr.mxu0 0.0
        %1977 = vmatpush1.msra.mxu0 0.0
        %1978 = vmatprep.subr.mxu0 0.0
        %1979 = vmatpush1.msra.mxu0 0.0
        %1980 = vmatprep.subr.mxu0 0.0
        %1981 = vmatpush1.msra.mxu0 0.0
        %1982 = vmatprep.subr.mxu0 0.0
        %1983 = vmatpush1.msra.mxu0 0.0
        %1984 = vmatprep.subr.mxu0 0.0
        %1985 = vmatpush1.msra.mxu0 0.0
        %1986 = vmatprep.subr.mxu0 0.0
        %1987 = vmatpush1.msra.mxu0 0.0
        %1988 = vmatprep.subr.mxu0 0.0
        %1989 = vmatpush1.msra.mxu0 0.0
        %1990 = vmatprep.subr.mxu0 0.0
        %1991 = vmatpush1.msra.mxu0 0.0
        %1992 = vmatprep.subr.mxu0 0.0
        %1993 = vmatpush1.msra.mxu0 0.0
        %1994 = vmatprep.subr.mxu0 0.0
        %1995 = vmatpush1.msra.mxu0 0.0
        %1996 = vmatprep.subr.mxu0 0.0
        %1997 = vmatpush1.msra.mxu0 0.0
        %1998 = vmatprep.subr.mxu0 0.0
        %1999 = vmatpush1.msra.mxu0 0.0
        %2000 = vmatprep.subr.mxu0 0.0
        %2001 = vmatpush1.msra.mxu0 0.0
        %2002 = vmatprep.mubr.f32.mxu0 0.0
        %2003 = vmatmul.mubr.f32.gmra.mrb[0].mxu0 %v1927
        %v2004 = vpop.f32.mrb[0].mxu0
        %v2005 = vadd.f32 0.0, %v2004
        %v2006 = vpop.f32.mrb[0].mxu0
        %2007 = vmatprep.mubr.f32.mxu0 0.0
        %2008 = vmatmul.mubr.f32.gmra.mrb[0].mxu0 %v1930
        %v2009 = vpop.f32.mrb[0].mxu0
        %v2010 = vadd.f32 0.0, %v2009
        %v2011 = vpop.f32.mrb[0].mxu0
        %2012 = vmatprep.mubr.f32.mxu0 0.0
        %2013 = vmatmul.mubr.f32.gmra.mrb[0].mxu0 %v1933
        %v2014 = vpop.f32.mrb[0].mxu0
        %v2015 = vadd.f32 0.0, %v2014
        %v2016 = vpop.f32.mrb[0].mxu0
        %2017 = vmatprep.mubr.f32.mxu0 0.0
        %2018 = vmatmul.mubr.f32.gmra.mrb[0].mxu0 %v1936
        %v2019 = vpop.f32.mrb[0].mxu0
        %v2020 = vadd.f32 0.0, %v2019
        %v2021 = vpop.f32.mrb[0].mxu0
        %2022 = vdwg.mxu0
        %v2023 = vld [vmem:[%s3] sm:$0xff]
        %v2024 = vld [vmem:[%s3 + $0x8] sm:$0xff]
        %v2025 = vld [vmem:[%s3 + $0x10] sm:$0xff]
        %v2026 = vld [vmem:[%s3 + $0x18] sm:$0xff]
        %vm2027 = vcmp.gt.f32.partialorder %v2023, 0.5
        %vm2028 = vcmp.gt.f32.partialorder %v2024, 0.5
        %vm2029 = vcmp.gt.f32.partialorder %v2025, 0.5
        %vm2030 = vcmp.gt.f32.partialorder %v2026, 0.5
        %v2031 = vsel %vm2027, %v2005, -1e+30
        %v2032 = vsel %vm2028, %v2010, -1e+30
        %v2033 = vsel %vm2029, %v2015, -1e+30
        %v2034 = vsel %vm2030, %v2020, -1e+30
        %vm2035 = vcmask 7168
        %v2036 = vsel %vm2035, %v2031, -inf
        %v2037 = vsel %vm2035, %v2032, -inf
        %v2038 = vmax.f32 %v2036, %v2037
        %v2039 = vrot.slane %v2038, 4
        %v2040 = vmax.f32 %v2038, %v2039
        %v2041 = vrot.slane %v2040, 2
        %v2042 = vmax.f32 %v2040, %v2041
        %v2043 = vrot.slane %v2042, 1
        %v2044 = vmax.f32 %v2042, %v2043
        %v2045 = vsel %vm2035, %v2033, -inf
        %v2046 = vsel %vm2035, %v2034, -inf
        %v2047 = vmax.f32 %v2045, %v2046
        %v2048 = vrot.slane %v2047, 4
        %v2049 = vmax.f32 %v2047, %v2048
        %v2050 = vrot.slane %v2049, 2
        %v2051 = vmax.f32 %v2049, %v2050
        %v2052 = vrot.slane %v2051, 1
        %v2053 = vmax.f32 %v2051, %v2052
        %v2054 = vsub.f32 %v2031, %v2044
        %v2055 = vsub.f32 %v2032, %v2044
        %v2056 = vsub.f32 %v2033, %v2053
        %v2057 = vsub.f32 %v2034, %v2053
        %v2058 = vmul.f32 %v2054, 1.442695
        %v2059 = vpow.pop %v2058
        %v2060 = vmul.f32 %v2055, 1.442695
        %v2061 = vpow.pop %v2060
        %v2062 = vmul.f32 %v2056, 1.442695
        %v2063 = vpow.pop %v2062
        %v2064 = vmul.f32 %v2057, 1.442695
        %v2065 = vpow.pop %v2064
        %v2066 = vsel %vm2035, %v2059, 0.0
        %v2067 = vsel %vm2035, %v2061, 0.0
        %v2068 = vadd.f32 %v2066, %v2067
        %v2069 = vrot.slane %v2068, 4
        %v2070 = vadd.f32 %v2068, %v2069
        %v2071 = vrot.slane %v2070, 2
        %v2072 = vadd.f32 %v2070, %v2071
        %v2073 = vrot.slane %v2072, 1
        %v2074 = vadd.f32 %v2072, %v2073
        %v2075 = vsel %vm2035, %v2063, 0.0
        %v2076 = vsel %vm2035, %v2065, 0.0
        %v2077 = vadd.f32 %v2075, %v2076
        %v2078 = vrot.slane %v2077, 4
        %v2079 = vadd.f32 %v2077, %v2078
        %v2080 = vrot.slane %v2079, 2
        %v2081 = vadd.f32 %v2079, %v2080
        %v2082 = vrot.slane %v2081, 1
        %v2083 = vadd.f32 %v2081, %v2082
        %v2084 = vrcp.pop %v2074
        %v2085 = vmul.f32 %v2059, %v2084
        %v2086 = vmul.f32 %v2061, %v2084
        %v2087 = vrcp.pop %v2083
        %v2088 = vmul.f32 %v2063, %v2087
        %v2089 = vmul.f32 %v2065, %v2087
        %v2090 = vld [vmem:[%s2] sm:$0xff]
        %v2091 = vld [vmem:[%s2 + $0x8] sm:$0xff]
        %v2092 = vld [vmem:[%s2 + $0x10] sm:$0xff]
        %v2093 = vld [vmem:[%s2 + $0x18] sm:$0xff]
        %2095 = vset.pattern.permute.xlu0 0
        %2096 = vperm.xlu0 %2095, %v2085
        %v2097 = vpop.permute.xlu0 %2096
        %2100 = vset.pattern.permute.xlu0 0
        %2101 = vperm.xlu0 %2100, %v2086
        %v2102 = vpop.permute.xlu0 %2101
        %2105 = vset.pattern.permute.xlu0 0
        %2106 = vperm.xlu0 %2105, %v2088
        %v2107 = vpop.permute.xlu0 %2106
        %2110 = vset.pattern.permute.xlu0 0
        %2111 = vperm.xlu0 %2110, %v2089
        %v2112 = vpop.permute.xlu0 %2111
        %v2114 = vmul.f32 %v2097, %v2090
        %v2115 = vmul.f32 %v2102, %v2091
        %v2116 = vmul.f32 %v2107, %v2092
        %v2117 = vmul.f32 %v2112, %v2093
        %v2118 = vsel %vm1127, %v2114, 0.0
        %v2119 = vsel %vm1127, %v2115, 0.0
        %v2120 = vadd.f32 %v2118, %v2119
        %v2121 = vrot.slane %v2120, 4
        %v2122 = vadd.f32 %v2120, %v2121
        %v2123 = vrot.slane %v2122, 2
        %v2124 = vadd.f32 %v2122, %v2123
        %v2125 = vrot.slane %v2124, 1
        %v2126 = vadd.f32 %v2124, %v2125
        %v2127 = vsel %vm1127, %v2116, 0.0
        %v2128 = vsel %vm1127, %v2117, 0.0
        %v2129 = vadd.f32 %v2127, %v2128
        %v2130 = vrot.slane %v2129, 4
        %v2131 = vadd.f32 %v2129, %v2130
        %v2132 = vrot.slane %v2131, 2
        %v2133 = vadd.f32 %v2131, %v2132
        %v2134 = vrot.slane %v2133, 1
        %v2135 = vadd.f32 %v2133, %v2134
        %vm2138 = vcmask 1041409
        %v2139 = vsel %vm2138, %v2135, %v2126
        %2141 = vst.msk [vmem:[#allocation6] sm:$0x3] %vm1392, %v2139
        %2142 = vst.msk [vmem:[#allocation7 + $0x8] sm:$0xff] %vm2035, %v2085
        %2143 = vst.msk [vmem:[#allocation7 + $0x10] sm:$0xff] %vm2035, %v2086
        %2144 = vst.msk [vmem:[#allocation7 + $0x28] sm:$0xff] %vm2035, %v2088
        %2145 = vst.msk [vmem:[#allocation7 + $0x30] sm:$0xff] %vm2035, %v2089
        %v2146 = vld [vmem:[#allocation8 + $0x8] sm:$0xff]
        %v2147 = vld [vmem:[#allocation8 + $0x10] sm:$0xff]
        %v2148 = vld [vmem:[#allocation8 + $0x28] sm:$0xff]
        %v2149 = vld [vmem:[#allocation8 + $0x30] sm:$0xff]
        %v2150 = vadd.f32 %v2146, %v2085
        %v2151 = vadd.f32 %v2147, %v2086
        %v2152 = vadd.f32 %v2148, %v2088
        %v2153 = vadd.f32 %v2149, %v2089
        %2154 = vst.msk [vmem:[#allocation8 + $0x8] sm:$0xff] %vm2035, %v2150
        %2155 = vst.msk [vmem:[#allocation8 + $0x10] sm:$0xff] %vm2035, %v2151
        %2156 = vst.msk [vmem:[#allocation8 + $0x28] sm:$0xff] %vm2035, %v2152
        %2157 = vst.msk [vmem:[#allocation8 + $0x30] sm:$0xff] %vm2035, %v2153
        %v2158 = vld [vmem:[%s850] sm:$0x3]
        %v2159 = vld [vmem:[#allocation19] sm:$0xff]
        %v2160 = vld [vmem:[#allocation19 + $0x8] sm:$0xff]
        %vm2161 = vcmask 130048
        %v2163 = vsel %vm2161, %v2158, 0
        %2165 = vmatprep.subr.mxu0 0.0
        %2166 = vmatpush1.msra.mxu0 %v2159
        %2167 = vmatprep.subr.mxu0 0.0
        %2168 = vmatpush1.msra.mxu0 %v2160
        %2169 = vmatprep.subr.mxu0 0.0
        %2170 = vmatpush1.msra.mxu0 0.0
        %2171 = vmatprep.subr.mxu0 0.0
        %2172 = vmatpush1.msra.mxu0 0.0
        %2173 = vmatprep.subr.mxu0 0.0
        %2174 = vmatpush1.msra.mxu0 0.0
        %2175 = vmatprep.subr.mxu0 0.0
        %2176 = vmatpush1.msra.mxu0 0.0
        %2177 = vmatprep.subr.mxu0 0.0
        %2178 = vmatpush1.msra.mxu0 0.0
        %2179 = vmatprep.subr.mxu0 0.0
        %2180 = vmatpush1.msra.mxu0 0.0
        %2181 = vmatprep.subr.mxu0 0.0
        %2182 = vmatpush1.msra.mxu0 0.0
        %2183 = vmatprep.subr.mxu0 0.0
        %2184 = vmatpush1.msra.mxu0 0.0
        %2185 = vmatprep.subr.mxu0 0.0
        %2186 = vmatpush1.msra.mxu0 0.0
        %2187 = vmatprep.subr.mxu0 0.0
        %2188 = vmatpush1.msra.mxu0 0.0
        %2189 = vmatprep.subr.mxu0 0.0
        %2190 = vmatpush1.msra.mxu0 0.0
        %2191 = vmatprep.subr.mxu0 0.0
        %2192 = vmatpush1.msra.mxu0 0.0
        %2193 = vmatprep.subr.mxu0 0.0
        %2194 = vmatpush1.msra.mxu0 0.0
        %2195 = vmatprep.subr.mxu0 0.0
        %2196 = vmatpush1.msra.mxu0 0.0
        %2197 = vmatprep.subr.mxu0 0.0
        %2198 = vmatpush1.msra.mxu0 0.0
        %2199 = vmatprep.subr.mxu0 0.0
        %2200 = vmatpush1.msra.mxu0 0.0
        %2201 = vmatprep.subr.mxu0 0.0
        %2202 = vmatpush1.msra.mxu0 0.0
        %2203 = vmatprep.subr.mxu0 0.0
        %2204 = vmatpush1.msra.mxu0 0.0
        %2205 = vmatprep.subr.mxu0 0.0
        %2206 = vmatpush1.msra.mxu0 0.0
        %2207 = vmatprep.subr.mxu0 0.0
        %2208 = vmatpush1.msra.mxu0 0.0
        %2209 = vmatprep.subr.mxu0 0.0
        %2210 = vmatpush1.msra.mxu0 0.0
        %2211 = vmatprep.subr.mxu0 0.0
        %2212 = vmatpush1.msra.mxu0 0.0
        %2213 = vmatprep.subr.mxu0 0.0
        %2214 = vmatpush1.msra.mxu0 0.0
        %2215 = vmatprep.subr.mxu0 0.0
        %2216 = vmatpush1.msra.mxu0 0.0
        %2217 = vmatprep.subr.mxu0 0.0
        %2218 = vmatpush1.msra.mxu0 0.0
        %2219 = vmatprep.subr.mxu0 0.0
        %2220 = vmatpush1.msra.mxu0 0.0
        %2221 = vmatprep.subr.mxu0 0.0
        %2222 = vmatpush1.msra.mxu0 0.0
        %2223 = vmatprep.subr.mxu0 0.0
        %2224 = vmatpush1.msra.mxu0 0.0
        %2225 = vmatprep.subr.mxu0 0.0
        %2226 = vmatpush1.msra.mxu0 0.0
        %2227 = vmatprep.subr.mxu0 0.0
        %2228 = vmatpush1.msra.mxu0 0.0
        %2229 = vmatprep.mubr.f32.mxu0 0.0
        %2230 = vmatmul.mubr.f32.gmra.mrb[0].mxu0 %v2163
        %v2231 = vpop.f32.mrb[0].mxu0
        %v2232 = vadd.f32 0.0, %v2231
        %v2233 = vpop.f32.mrb[0].mxu0
        %2234 = vdwg.mxu0
        %v2235 = vmax.f32 %v2232, 0.0
        %v2236 = vld [vmem:[%s967] sm:$0x3]
        %v2237 = vmul.f32 %v2235, %v2236
        %v2238 = vld [vmem:[%s14] sm:$0xff]
        %v2239 = vld [vmem:[%s14 + $0x8] sm:$0xff]
        %v2240 = vld [vmem:[%s14 + $0x10] sm:$0xff]
        %v2241 = vld [vmem:[%s14 + $0x18] sm:$0xff]
        %v2243 = vsel %vm1127, %v2237, 0
        %2245 = vmatprep.subr.mxu0 0.0
        %2246 = vmatpush1.msra.mxu0 %v2238
        %2247 = vmatprep.subr.mxu0 0.0
        %2248 = vmatpush1.msra.mxu0 %v2239
        %2249 = vmatprep.subr.mxu0 0.0
        %2250 = vmatpush1.msra.mxu0 %v2240
        %2251 = vmatprep.subr.mxu0 0.0
        %2252 = vmatpush1.msra.mxu0 %v2241
        %2253 = vmatprep.subr.mxu0 0.0
        %2254 = vmatpush1.msra.mxu0 0.0
        %2255 = vmatprep.subr.mxu0 0.0
        %2256 = vmatpush1.msra.mxu0 0.0
        %2257 = vmatprep.subr.mxu0 0.0
        %2258 = vmatpush1.msra.mxu0 0.0
        %2259 = vmatprep.subr.mxu0 0.0
        %2260 = vmatpush1.msra.mxu0 0.0
        %2261 = vmatprep.subr.mxu0 0.0
        %2262 = vmatpush1.msra.mxu0 0.0
        %2263 = vmatprep.subr.mxu0 0.0
        %2264 = vmatpush1.msra.mxu0 0.0
        %2265 = vmatprep.subr.mxu0 0.0
        %2266 = vmatpush1.msra.mxu0 0.0
        %2267 = vmatprep.subr.mxu0 0.0
        %2268 = vmatpush1.msra.mxu0 0.0
        %2269 = vmatprep.subr.mxu0 0.0
        %2270 = vmatpush1.msra.mxu0 0.0
        %2271 = vmatprep.subr.mxu0 0.0
        %2272 = vmatpush1.msra.mxu0 0.0
        %2273 = vmatprep.subr.mxu0 0.0
        %2274 = vmatpush1.msra.mxu0 0.0
        %2275 = vmatprep.subr.mxu0 0.0
        %2276 = vmatpush1.msra.mxu0 0.0
        %2277 = vmatprep.subr.mxu0 0.0
        %2278 = vmatpush1.msra.mxu0 0.0
        %2279 = vmatprep.subr.mxu0 0.0
        %2280 = vmatpush1.msra.mxu0 0.0
        %2281 = vmatprep.subr.mxu0 0.0
        %2282 = vmatpush1.msra.mxu0 0.0
        %2283 = vmatprep.subr.mxu0 0.0
        %2284 = vmatpush1.msra.mxu0 0.0
        %2285 = vmatprep.subr.mxu0 0.0
        %2286 = vmatpush1.msra.mxu0 0.0
        %2287 = vmatprep.subr.mxu0 0.0
        %2288 = vmatpush1.msra.mxu0 0.0
        %2289 = vmatprep.subr.mxu0 0.0
        %2290 = vmatpush1.msra.mxu0 0.0
        %2291 = vmatprep.subr.mxu0 0.0
        %2292 = vmatpush1.msra.mxu0 0.0
        %2293 = vmatprep.subr.mxu0 0.0
        %2294 = vmatpush1.msra.mxu0 0.0
        %2295 = vmatprep.subr.mxu0 0.0
        %2296 = vmatpush1.msra.mxu0 0.0
        %2297 = vmatprep.subr.mxu0 0.0
        %2298 = vmatpush1.msra.mxu0 0.0
        %2299 = vmatprep.subr.mxu0 0.0
        %2300 = vmatpush1.msra.mxu0 0.0
        %2301 = vmatprep.subr.mxu0 0.0
        %2302 = vmatpush1.msra.mxu0 0.0
        %2303 = vmatprep.subr.mxu0 0.0
        %2304 = vmatpush1.msra.mxu0 0.0
        %2305 = vmatprep.subr.mxu0 0.0
        %2306 = vmatpush1.msra.mxu0 0.0
        %2307 = vmatprep.subr.mxu0 0.0
        %2308 = vmatpush1.msra.mxu0 0.0
        %2309 = vmatprep.mubr.f32.mxu0 0.0
        %2310 = vmatmul.mubr.f32.gmra.mrb[0].mxu0 %v2243
        %v2311 = vpop.f32.mrb[0].mxu0
        %v2312 = vadd.f32 0.0, %v2311
        %v2313 = vpop.f32.mrb[0].mxu0
        %2314 = vdwg.mxu0
        %v2315 = vmax.f32 %v2312, 0.0
        %s2316 = scalar_lea.vmem %s967, 2
        %v2317 = vld [vmem:[%s2316] sm:$0x3]
        %v2318 = vmul.f32 %v2315, %v2317
        %v2319 = vld [vmem:[%s15] sm:$0xff]
        %v2320 = vld [vmem:[%s15 + $0x8] sm:$0xff]
        %v2321 = vld [vmem:[%s15 + $0x10] sm:$0xff]
        %v2322 = vld [vmem:[%s15 + $0x18] sm:$0xff]
        %v2323 = vld [vmem:[#allocation20] sm:$0xff]
        %v2324 = vld [vmem:[#allocation20 + $0x8] sm:$0xff]
        %v2325 = vld [vmem:[#allocation20 + $0x10] sm:$0xff]
        %v2326 = vld [vmem:[#allocation20 + $0x18] sm:$0xff]
        %v2327 = vsel %vm1127, %v2139, 0
        %2329 = vmatprep.subr.mxu0 0.0
        %2330 = vmatpush1.msra.mxu0 %v2323
        %2331 = vmatprep.subr.mxu0 0.0
        %2332 = vmatpush1.msra.mxu0 %v2324
        %2333 = vmatprep.subr.mxu0 0.0
        %2334 = vmatpush1.msra.mxu0 %v2325
        %2335 = vmatprep.subr.mxu0 0.0
        %2336 = vmatpush1.msra.mxu0 %v2326
        %2337 = vmatprep.subr.mxu0 0.0
        %2338 = vmatpush1.msra.mxu0 0.0
        %2339 = vmatprep.subr.mxu0 0.0
        %2340 = vmatpush1.msra.mxu0 0.0
        %2341 = vmatprep.subr.mxu0 0.0
        %2342 = vmatpush1.msra.mxu0 0.0
        %2343 = vmatprep.subr.mxu0 0.0
        %2344 = vmatpush1.msra.mxu0 0.0
        %2345 = vmatprep.subr.mxu0 0.0
        %2346 = vmatpush1.msra.mxu0 0.0
        %2347 = vmatprep.subr.mxu0 0.0
        %2348 = vmatpush1.msra.mxu0 0.0
        %2349 = vmatprep.subr.mxu0 0.0
        %2350 = vmatpush1.msra.mxu0 0.0
        %2351 = vmatprep.subr.mxu0 0.0
        %2352 = vmatpush1.msra.mxu0 0.0
        %2353 = vmatprep.subr.mxu0 0.0
        %2354 = vmatpush1.msra.mxu0 0.0
        %2355 = vmatprep.subr.mxu0 0.0
        %2356 = vmatpush1.msra.mxu0 0.0
        %2357 = vmatprep.subr.mxu0 0.0
        %2358 = vmatpush1.msra.mxu0 0.0
        %2359 = vmatprep.subr.mxu0 0.0
        %2360 = vmatpush1.msra.mxu0 0.0
        %2361 = vmatprep.subr.mxu0 0.0
        %2362 = vmatpush1.msra.mxu0 0.0
        %2363 = vmatprep.subr.mxu0 0.0
        %2364 = vmatpush1.msra.mxu0 0.0
        %2365 = vmatprep.subr.mxu0 0.0
        %2366 = vmatpush1.msra.mxu0 0.0
        %2367 = vmatprep.subr.mxu0 0.0
        %2368 = vmatpush1.msra.mxu0 0.0
        %2369 = vmatprep.subr.mxu0 0.0
        %2370 = vmatpush1.msra.mxu0 0.0
        %2371 = vmatprep.subr.mxu0 0.0
        %2372 = vmatpush1.msra.mxu0 0.0
        %2373 = vmatprep.subr.mxu0 0.0
        %2374 = vmatpush1.msra.mxu0 0.0
        %2375 = vmatprep.subr.mxu0 0.0
        %2376 = vmatpush1.msra.mxu0 0.0
        %2377 = vmatprep.subr.mxu0 0.0
        %2378 = vmatpush1.msra.mxu0 0.0
        %2379 = vmatprep.subr.mxu0 0.0
        %2380 = vmatpush1.msra.mxu0 0.0
        %2381 = vmatprep.subr.mxu0 0.0
        %2382 = vmatpush1.msra.mxu0 0.0
        %2383 = vmatprep.subr.mxu0 0.0
        %2384 = vmatpush1.msra.mxu0 0.0
        %2385 = vmatprep.subr.mxu0 0.0
        %2386 = vmatpush1.msra.mxu0 0.0
        %2387 = vmatprep.subr.mxu0 0.0
        %2388 = vmatpush1.msra.mxu0 0.0
        %2389 = vmatprep.subr.mxu0 0.0
        %2390 = vmatpush1.msra.mxu0 0.0
        %2391 = vmatprep.subr.mxu0 0.0
        %2392 = vmatpush1.msra.mxu0 0.0
        %2393 = vmatprep.mubr.f32.mxu0 0.0
        %2394 = vmatmul.mubr.f32.gmra.mrb[0].mxu0 %v2327
        %v2395 = vpop.f32.mrb[0].mxu0
        %v2396 = vadd.f32 0.0, %v2395
        %v2397 = vpop.f32.mrb[0].mxu0
        %2398 = vdwg.mxu0
        %v2400 = vsel %vm1127, %v2318, 0
        %2402 = vmatprep.subr.mxu0 0.0
        %2403 = vmatpush1.msra.mxu0 %v2319
        %2404 = vmatprep.subr.mxu0 0.0
        %2405 = vmatpush1.msra.mxu0 %v2320
        %2406 = vmatprep.subr.mxu0 0.0
        %2407 = vmatpush1.msra.mxu0 %v2321
        %2408 = vmatprep.subr.mxu0 0.0
        %2409 = vmatpush1.msra.mxu0 %v2322
        %2410 = vmatprep.subr.mxu0 0.0
        %2411 = vmatpush1.msra.mxu0 0.0
        %2412 = vmatprep.subr.mxu0 0.0
        %2413 = vmatpush1.msra.mxu0 0.0
        %2414 = vmatprep.subr.mxu0 0.0
        %2415 = vmatpush1.msra.mxu0 0.0
        %2416 = vmatprep.subr.mxu0 0.0
        %2417 = vmatpush1.msra.mxu0 0.0
        %2418 = vmatprep.subr.mxu0 0.0
        %2419 = vmatpush1.msra.mxu0 0.0
        %2420 = vmatprep.subr.mxu0 0.0
        %2421 = vmatpush1.msra.mxu0 0.0
        %2422 = vmatprep.subr.mxu0 0.0
        %2423 = vmatpush1.msra.mxu0 0.0
        %2424 = vmatprep.subr.mxu0 0.0
        %2425 = vmatpush1.msra.mxu0 0.0
        %2426 = vmatprep.subr.mxu0 0.0
        %2427 = vmatpush1.msra.mxu0 0.0
        %2428 = vmatprep.subr.mxu0 0.0
        %2429 = vmatpush1.msra.mxu0 0.0
        %2430 = vmatprep.subr.mxu0 0.0
        %2431 = vmatpush1.msra.mxu0 0.0
        %2432 = vmatprep.subr.mxu0 0.0
        %2433 = vmatpush1.msra.mxu0 0.0
        %2434 = vmatprep.subr.mxu0 0.0
        %2435 = vmatpush1.msra.mxu0 0.0
        %2436 = vmatprep.subr.mxu0 0.0
        %2437 = vmatpush1.msra.mxu0 0.0
        %2438 = vmatprep.subr.mxu0 0.0
        %2439 = vmatpush1.msra.mxu0 0.0
        %2440 = vmatprep.subr.mxu0 0.0
        %2441 = vmatpush1.msra.mxu0 0.0
        %2442 = vmatprep.subr.mxu0 0.0
        %2443 = vmatpush1.msra.mxu0 0.0
        %2444 = vmatprep.subr.mxu0 0.0
        %2445 = vmatpush1.msra.mxu0 0.0
        %2446 = vmatprep.subr.mxu0 0.0
        %2447 = vmatpush1.msra.mxu0 0.0
        %2448 = vmatprep.subr.mxu0 0.0
        %2449 = vmatpush1.msra.mxu0 0.0
        %2450 = vmatprep.subr.mxu0 0.0
        %2451 = vmatpush1.msra.mxu0 0.0
        %2452 = vmatprep.subr.mxu0 0.0
        %2453 = vmatpush1.msra.mxu0 0.0
        %2454 = vmatprep.subr.mxu0 0.0
        %2455 = vmatpush1.msra.mxu0 0.0
        %2456 = vmatprep.subr.mxu0 0.0
        %2457 = vmatpush1.msra.mxu0 0.0
        %2458 = vmatprep.subr.mxu0 0.0
        %2459 = vmatpush1.msra.mxu0 0.0
        %2460 = vmatprep.subr.mxu0 0.0
        %2461 = vmatpush1.msra.mxu0 0.0
        %2462 = vmatprep.subr.mxu0 0.0
        %2463 = vmatpush1.msra.mxu0 0.0
        %2464 = vmatprep.subr.mxu0 0.0
        %2465 = vmatpush1.msra.mxu0 0.0
        %2466 = vmatprep.mubr.f32.mxu0 0.0
        %2467 = vmatmul.mubr.f32.gmra.mrb[0].mxu0 %v2400
        %v2468 = vpop.f32.mrb[0].mxu0
        %v2469 = vadd.f32 %v2396, %v2468
        %v2470 = vpop.f32.mrb[0].mxu0
        %2471 = vdwg.mxu0
        %v2472 = vld [vmem:[#allocation22] sm:$0xff]
        %v2473 = vld [vmem:[#allocation22 + $0x8] sm:$0xff]
        %v2474 = vld [vmem:[#allocation22 + $0x10] sm:$0xff]
        %v2475 = vld [vmem:[#allocation22 + $0x18] sm:$0xff]
        %2476 = vmatprep.subr.mxu0 0.0
        %2477 = vmatpush1.msra.mxu0 %v2472
        %2478 = vmatprep.subr.mxu0 0.0
        %2479 = vmatpush1.msra.mxu0 %v2473
        %2480 = vmatprep.subr.mxu0 0.0
        %2481 = vmatpush1.msra.mxu0 %v2474
        %2482 = vmatprep.subr.mxu0 0.0
        %2483 = vmatpush1.msra.mxu0 %v2475
        %2484 = vmatprep.subr.mxu0 0.0
        %2485 = vmatpush1.msra.mxu0 0.0
        %2486 = vmatprep.subr.mxu0 0.0
        %2487 = vmatpush1.msra.mxu0 0.0
        %2488 = vmatprep.subr.mxu0 0.0
        %2489 = vmatpush1.msra.mxu0 0.0
        %2490 = vmatprep.subr.mxu0 0.0
        %2491 = vmatpush1.msra.mxu0 0.0
        %2492 = vmatprep.subr.mxu0 0.0
        %2493 = vmatpush1.msra.mxu0 0.0
        %2494 = vmatprep.subr.mxu0 0.0
        %2495 = vmatpush1.msra.mxu0 0.0
        %2496 = vmatprep.subr.mxu0 0.0
        %2497 = vmatpush1.msra.mxu0 0.0
        %2498 = vmatprep.subr.mxu0 0.0
        %2499 = vmatpush1.msra.mxu0 0.0
        %2500 = vmatprep.subr.mxu0 0.0
        %2501 = vmatpush1.msra.mxu0 0.0
        %2502 = vmatprep.subr.mxu0 0.0
        %2503 = vmatpush1.msra.mxu0 0.0
        %2504 = vmatprep.subr.mxu0 0.0
        %2505 = vmatpush1.msra.mxu0 0.0
        %2506 = vmatprep.subr.mxu0 0.0
        %2507 = vmatpush1.msra.mxu0 0.0
        %2508 = vmatprep.subr.mxu0 0.0
        %2509 = vmatpush1.msra.mxu0 0.0
        %2510 = vmatprep.subr.mxu0 0.0
        %2511 = vmatpush1.msra.mxu0 0.0
        %2512 = vmatprep.subr.mxu0 0.0
        %2513 = vmatpush1.msra.mxu0 0.0
        %2514 = vmatprep.subr.mxu0 0.0
        %2515 = vmatpush1.msra.mxu0 0.0
        %2516 = vmatprep.subr.mxu0 0.0
        %2517 = vmatpush1.msra.mxu0 0.0
        %2518 = vmatprep.subr.mxu0 0.0
        %2519 = vmatpush1.msra.mxu0 0.0
        %2520 = vmatprep.subr.mxu0 0.0
        %2521 = vmatpush1.msra.mxu0 0.0
        %2522 = vmatprep.subr.mxu0 0.0
        %2523 = vmatpush1.msra.mxu0 0.0
        %2524 = vmatprep.subr.mxu0 0.0
        %2525 = vmatpush1.msra.mxu0 0.0
        %2526 = vmatprep.subr.mxu0 0.0
        %2527 = vmatpush1.msra.mxu0 0.0
        %2528 = vmatprep.subr.mxu0 0.0
        %2529 = vmatpush1.msra.mxu0 0.0
        %2530 = vmatprep.subr.mxu0 0.0
        %2531 = vmatpush1.msra.mxu0 0.0
        %2532 = vmatprep.subr.mxu0 0.0
        %2533 = vmatpush1.msra.mxu0 0.0
        %2534 = vmatprep.subr.mxu0 0.0
        %2535 = vmatpush1.msra.mxu0 0.0
        %2536 = vmatprep.subr.mxu0 0.0
        %2537 = vmatpush1.msra.mxu0 0.0
        %2538 = vmatprep.subr.mxu0 0.0
        %2539 = vmatpush1.msra.mxu0 0.0
        %2540 = vmatprep.mubr.f32.mxu0 0.0
        %2541 = vmatmul.mubr.f32.gmra.mrb[0].mxu0 %v1202
        %v2542 = vpop.f32.mrb[0].mxu0
        %v2543 = vadd.f32 0.0, %v2542
        %v2544 = vpop.f32.mrb[0].mxu0
        %2545 = vdwg.mxu0
        %v2546 = vadd.f32 %v2469, %v2543
        %v2547 = vld [vmem:[#allocation23] sm:$0x1]
        %v2549 = vlaneseq
        %v2550 = vshrl.u32 %v2549, 7
        %v2551 = vsub.s32 0, %v2550
        %v2552 = vrot.slane %v2547, %v2551
        %v2554 = vadd.f32 %v2546, %v2552
        %v2555 = vxor.u32 %v2554, 2147483648
        %v2556 = vmul.f32 %v2555, 1.442695
        %v2557 = vpow.pop %v2556
        %v2558 = vadd.f32 %v2557, 1.0
        %v2559 = vrcp.pop %v2558
        %v2560 = vmul.f32 1.0, %v2559
        %v2561 = vtanh.pop %v2554
        %2563 = vrot.lane.b32.xlu0 %v1115, 32
        %v2564 = vpop.permute.xlu0 %2563
        %v2566 = vmul.f32 %v2560, %v2564
        %2568 = vrot.lane.b32.xlu0 %v2561, 64
        %v2569 = vpop.permute.xlu0 %2568
        %v2571 = vmul.f32 %v2560, %v2569
        %2573 = vrot.lane.b32.xlu0 %v2571, 32
        %v2574 = vpop.permute.xlu0 %2573
        %v2576 = vadd.f32 %v2566, %v2574
        %v2577 = vtanh.pop %v2576
        %2579 = vrot.lane.b32.xlu0 %v2577, 64
        %v2580 = vpop.permute.xlu0 %2579
        %v2582 = vmul.f32 %v2560, %v2580
        %2584 = vrot.lane.b32.xlu0 %v2582, 32
        %v2585 = vpop.permute.xlu0 %2584
        %2587 = vst.msk [vmem:[#allocation4] sm:$0x3] %vm1392, %v2585
        %2589 = vrot.lane.b32.xlu0 %v2576, 96
        %v2590 = vpop.permute.xlu0 %2589
        %2592 = vst.msk [vmem:[#allocation5] sm:$0x3] %vm1392, %v2590
        %v2593 = vld [vmem:[%s19] sm:$0xff]
        %v2594 = vld [vmem:[%s19 + $0x8] sm:$0xff]
        %v2595 = vld [vmem:[%s19 + $0x10] sm:$0xff]
        %v2596 = vld [vmem:[%s19 + $0x18] sm:$0xff]
        %v2597 = vld [vmem:[%s20] sm:$0xff]
        %v2598 = vld [vmem:[%s20 + $0x8] sm:$0xff]
        %v2599 = vld [vmem:[%s20 + $0x10] sm:$0xff]
        %v2600 = vld [vmem:[%s20 + $0x18] sm:$0xff]
        %2601 = vmatprep.subr.mxu0 0.0
        %2602 = vmatpush1.msra.mxu0 %v2597
        %2603 = vmatprep.subr.mxu0 0.0
        %2604 = vmatpush1.msra.mxu0 %v2598
        %2605 = vmatprep.subr.mxu0 0.0
        %2606 = vmatpush1.msra.mxu0 %v2599
        %2607 = vmatprep.subr.mxu0 0.0
        %2608 = vmatpush1.msra.mxu0 %v2600
        %2609 = vmatprep.subr.mxu0 0.0
        %2610 = vmatpush1.msra.mxu0 0.0
        %2611 = vmatprep.subr.mxu0 0.0
        %2612 = vmatpush1.msra.mxu0 0.0
        %2613 = vmatprep.subr.mxu0 0.0
        %2614 = vmatpush1.msra.mxu0 0.0
        %2615 = vmatprep.subr.mxu0 0.0
        %2616 = vmatpush1.msra.mxu0 0.0
        %2617 = vmatprep.subr.mxu0 0.0
        %2618 = vmatpush1.msra.mxu0 0.0
        %2619 = vmatprep.subr.mxu0 0.0
        %2620 = vmatpush1.msra.mxu0 0.0
        %2621 = vmatprep.subr.mxu0 0.0
        %2622 = vmatpush1.msra.mxu0 0.0
        %2623 = vmatprep.subr.mxu0 0.0
        %2624 = vmatpush1.msra.mxu0 0.0
        %2625 = vmatprep.subr.mxu0 0.0
        %2626 = vmatpush1.msra.mxu0 0.0
        %2627 = vmatprep.subr.mxu0 0.0
        %2628 = vmatpush1.msra.mxu0 0.0
        %2629 = vmatprep.subr.mxu0 0.0
        %2630 = vmatpush1.msra.mxu0 0.0
        %2631 = vmatprep.subr.mxu0 0.0
        %2632 = vmatpush1.msra.mxu0 0.0
        %2633 = vmatprep.subr.mxu0 0.0
        %2634 = vmatpush1.msra.mxu0 0.0
        %2635 = vmatprep.subr.mxu0 0.0
        %2636 = vmatpush1.msra.mxu0 0.0
        %2637 = vmatprep.subr.mxu0 0.0
        %2638 = vmatpush1.msra.mxu0 0.0
        %2639 = vmatprep.subr.mxu0 0.0
        %2640 = vmatpush1.msra.mxu0 0.0
        %2641 = vmatprep.subr.mxu0 0.0
        %2642 = vmatpush1.msra.mxu0 0.0
        %2643 = vmatprep.subr.mxu0 0.0
        %2644 = vmatpush1.msra.mxu0 0.0
        %2645 = vmatprep.subr.mxu0 0.0
        %2646 = vmatpush1.msra.mxu0 0.0
        %2647 = vmatprep.subr.mxu0 0.0
        %2648 = vmatpush1.msra.mxu0 0.0
        %2649 = vmatprep.subr.mxu0 0.0
        %2650 = vmatpush1.msra.mxu0 0.0
        %2651 = vmatprep.subr.mxu0 0.0
        %2652 = vmatpush1.msra.mxu0 0.0
        %2653 = vmatprep.subr.mxu0 0.0
        %2654 = vmatpush1.msra.mxu0 0.0
        %2655 = vmatprep.subr.mxu0 0.0
        %2656 = vmatpush1.msra.mxu0 0.0
        %2657 = vmatprep.subr.mxu0 0.0
        %2658 = vmatpush1.msra.mxu0 0.0
        %2659 = vmatprep.subr.mxu0 0.0
        %2660 = vmatpush1.msra.mxu0 0.0
        %2661 = vmatprep.subr.mxu0 0.0
        %2662 = vmatpush1.msra.mxu0 0.0
        %2663 = vmatprep.subr.mxu0 0.0
        %2664 = vmatpush1.msra.mxu0 0.0
        %2665 = vmatprep.mubr.f32.mxu0 0.0
        %2666 = vmatmul.mubr.f32.gmra.mrb[0].mxu0 %v2327
        %v2667 = vpop.f32.mrb[0].mxu0
        %v2668 = vadd.f32 0.0, %v2667
        %v2669 = vpop.f32.mrb[0].mxu0
        %2670 = vdwg.mxu0
        %v2671 = vsel %vm1127, %v2585, 0
        %2673 = vmatprep.subr.mxu0 0.0
        %2674 = vmatpush1.msra.mxu0 %v2593
        %2675 = vmatprep.subr.mxu0 0.0
        %2676 = vmatpush1.msra.mxu0 %v2594
        %2677 = vmatprep.subr.mxu0 0.0
        %2678 = vmatpush1.msra.mxu0 %v2595
        %2679 = vmatprep.subr.mxu0 0.0
        %2680 = vmatpush1.msra.mxu0 %v2596
        %2681 = vmatprep.subr.mxu0 0.0
        %2682 = vmatpush1.msra.mxu0 0.0
        %2683 = vmatprep.subr.mxu0 0.0
        %2684 = vmatpush1.msra.mxu0 0.0
        %2685 = vmatprep.subr.mxu0 0.0
        %2686 = vmatpush1.msra.mxu0 0.0
        %2687 = vmatprep.subr.mxu0 0.0
        %2688 = vmatpush1.msra.mxu0 0.0
        %2689 = vmatprep.subr.mxu0 0.0
        %2690 = vmatpush1.msra.mxu0 0.0
        %2691 = vmatprep.subr.mxu0 0.0
        %2692 = vmatpush1.msra.mxu0 0.0
        %2693 = vmatprep.subr.mxu0 0.0
        %2694 = vmatpush1.msra.mxu0 0.0
        %2695 = vmatprep.subr.mxu0 0.0
        %2696 = vmatpush1.msra.mxu0 0.0
        %2697 = vmatprep.subr.mxu0 0.0
        %2698 = vmatpush1.msra.mxu0 0.0
        %2699 = vmatprep.subr.mxu0 0.0
        %2700 = vmatpush1.msra.mxu0 0.0
        %2701 = vmatprep.subr.mxu0 0.0
        %2702 = vmatpush1.msra.mxu0 0.0
        %2703 = vmatprep.subr.mxu0 0.0
        %2704 = vmatpush1.msra.mxu0 0.0
        %2705 = vmatprep.subr.mxu0 0.0
        %2706 = vmatpush1.msra.mxu0 0.0
        %2707 = vmatprep.subr.mxu0 0.0
        %2708 = vmatpush1.msra.mxu0 0.0
        %2709 = vmatprep.subr.mxu0 0.0
        %2710 = vmatpush1.msra.mxu0 0.0
        %2711 = vmatprep.subr.mxu0 0.0
        %2712 = vmatpush1.msra.mxu0 0.0
        %2713 = vmatprep.subr.mxu0 0.0
        %2714 = vmatpush1.msra.mxu0 0.0
        %2715 = vmatprep.subr.mxu0 0.0
        %2716 = vmatpush1.msra.mxu0 0.0
        %2717 = vmatprep.subr.mxu0 0.0
        %2718 = vmatpush1.msra.mxu0 0.0
        %2719 = vmatprep.subr.mxu0 0.0
        %2720 = vmatpush1.msra.mxu0 0.0
        %2721 = vmatprep.subr.mxu0 0.0
        %2722 = vmatpush1.msra.mxu0 0.0
        %2723 = vmatprep.subr.mxu0 0.0
        %2724 = vmatpush1.msra.mxu0 0.0
        %2725 = vmatprep.subr.mxu0 0.0
        %2726 = vmatpush1.msra.mxu0 0.0
        %2727 = vmatprep.subr.mxu0 0.0
        %2728 = vmatpush1.msra.mxu0 0.0
        %2729 = vmatprep.subr.mxu0 0.0
        %2730 = vmatpush1.msra.mxu0 0.0
        %2731 = vmatprep.subr.mxu0 0.0
        %2732 = vmatpush1.msra.mxu0 0.0
        %2733 = vmatprep.subr.mxu0 0.0
        %2734 = vmatpush1.msra.mxu0 0.0
        %2735 = vmatprep.subr.mxu0 0.0
        %2736 = vmatpush1.msra.mxu0 0.0
        %2737 = vmatprep.mubr.f32.mxu0 0.0
        %2738 = vmatmul.mubr.f32.gmra.mrb[0].mxu0 %v2671
        %v2739 = vpop.f32.mrb[0].mxu0
        %v2740 = vadd.f32 %v2668, %v2739
        %v2741 = vpop.f32.mrb[0].mxu0
        %2742 = vdwg.mxu0
        %v2743 = vld [vmem:[%s21] sm:$0x1]
        %v2745 = vlaneseq
        %v2746 = vshrl.u32 %v2745, 7
        %v2747 = vsub.s32 0, %v2746
        %v2748 = vrot.slane %v2743, %v2747
        %v2750 = vadd.f32 %v2740, %v2748
        %v2751 = vld [vmem:[%s22] sm:$0xff]
        %v2752 = vld [vmem:[%s22 + $0x8] sm:$0xff]
        %v2753 = vld [vmem:[%s22 + $0x10] sm:$0xff]
        %v2754 = vld [vmem:[%s22 + $0x18] sm:$0xff]
        %v2755 = vld [vmem:[%s23] sm:$0xff]
        %v2756 = vld [vmem:[%s23 + $0x8] sm:$0xff]
        %v2757 = vld [vmem:[%s23 + $0x10] sm:$0xff]
        %v2758 = vld [vmem:[%s23 + $0x18] sm:$0xff]
        %2759 = vmatprep.subr.mxu0 0.0
        %2760 = vmatpush1.msra.mxu0 %v2755
        %2761 = vmatprep.subr.mxu0 0.0
        %2762 = vmatpush1.msra.mxu0 %v2756
        %2763 = vmatprep.subr.mxu0 0.0
        %2764 = vmatpush1.msra.mxu0 %v2757
        %2765 = vmatprep.subr.mxu0 0.0
        %2766 = vmatpush1.msra.mxu0 %v2758
        %2767 = vmatprep.subr.mxu0 0.0
        %2768 = vmatpush1.msra.mxu0 0.0
        %2769 = vmatprep.subr.mxu0 0.0
        %2770 = vmatpush1.msra.mxu0 0.0
        %2771 = vmatprep.subr.mxu0 0.0
        %2772 = vmatpush1.msra.mxu0 0.0
        %2773 = vmatprep.subr.mxu0 0.0
        %2774 = vmatpush1.msra.mxu0 0.0
        %2775 = vmatprep.subr.mxu0 0.0
        %2776 = vmatpush1.msra.mxu0 0.0
        %2777 = vmatprep.subr.mxu0 0.0
        %2778 = vmatpush1.msra.mxu0 0.0
        %2779 = vmatprep.subr.mxu0 0.0
        %2780 = vmatpush1.msra.mxu0 0.0
        %2781 = vmatprep.subr.mxu0 0.0
        %2782 = vmatpush1.msra.mxu0 0.0
        %2783 = vmatprep.subr.mxu0 0.0
        %2784 = vmatpush1.msra.mxu0 0.0
        %2785 = vmatprep.subr.mxu0 0.0
        %2786 = vmatpush1.msra.mxu0 0.0
        %2787 = vmatprep.subr.mxu0 0.0
        %2788 = vmatpush1.msra.mxu0 0.0
        %2789 = vmatprep.subr.mxu0 0.0
        %2790 = vmatpush1.msra.mxu0 0.0
        %2791 = vmatprep.subr.mxu0 0.0
        %2792 = vmatpush1.msra.mxu0 0.0
        %2793 = vmatprep.subr.mxu0 0.0
        %2794 = vmatpush1.msra.mxu0 0.0
        %2795 = vmatprep.subr.mxu0 0.0
        %2796 = vmatpush1.msra.mxu0 0.0
        %2797 = vmatprep.subr.mxu0 0.0
        %2798 = vmatpush1.msra.mxu0 0.0
        %2799 = vmatprep.subr.mxu0 0.0
        %2800 = vmatpush1.msra.mxu0 0.0
        %2801 = vmatprep.subr.mxu0 0.0
        %2802 = vmatpush1.msra.mxu0 0.0
        %2803 = vmatprep.subr.mxu0 0.0
        %2804 = vmatpush1.msra.mxu0 0.0
        %2805 = vmatprep.subr.mxu0 0.0
        %2806 = vmatpush1.msra.mxu0 0.0
        %2807 = vmatprep.subr.mxu0 0.0
        %2808 = vmatpush1.msra.mxu0 0.0
        %2809 = vmatprep.subr.mxu0 0.0
        %2810 = vmatpush1.msra.mxu0 0.0
        %2811 = vmatprep.subr.mxu0 0.0
        %2812 = vmatpush1.msra.mxu0 0.0
        %2813 = vmatprep.subr.mxu0 0.0
        %2814 = vmatpush1.msra.mxu0 0.0
        %2815 = vmatprep.subr.mxu0 0.0
        %2816 = vmatpush1.msra.mxu0 0.0
        %2817 = vmatprep.subr.mxu0 0.0
        %2818 = vmatpush1.msra.mxu0 0.0
        %2819 = vmatprep.subr.mxu0 0.0
        %2820 = vmatpush1.msra.mxu0 0.0
        %2821 = vmatprep.subr.mxu0 0.0
        %2822 = vmatpush1.msra.mxu0 0.0
        %2823 = vmatprep.mubr.f32.mxu0 0.0
        %2824 = vmatmul.mubr.f32.gmra.mrb[0].mxu0 %v2327
        %v2825 = vpop.f32.mrb[0].mxu0
        %v2826 = vadd.f32 0.0, %v2825
        %v2827 = vpop.f32.mrb[0].mxu0
        %2828 = vdwg.mxu0
        %2829 = vmatprep.subr.mxu0 0.0
        %2830 = vmatpush1.msra.mxu0 %v2751
        %2831 = vmatprep.subr.mxu0 0.0
        %2832 = vmatpush1.msra.mxu0 %v2752
        %2833 = vmatprep.subr.mxu0 0.0
        %2834 = vmatpush1.msra.mxu0 %v2753
        %2835 = vmatprep.subr.mxu0 0.0
        %2836 = vmatpush1.msra.mxu0 %v2754
        %2837 = vmatprep.subr.mxu0 0.0
        %2838 = vmatpush1.msra.mxu0 0.0
        %2839 = vmatprep.subr.mxu0 0.0
        %2840 = vmatpush1.msra.mxu0 0.0
        %2841 = vmatprep.subr.mxu0 0.0
        %2842 = vmatpush1.msra.mxu0 0.0
        %2843 = vmatprep.subr.mxu0 0.0
        %2844 = vmatpush1.msra.mxu0 0.0
        %2845 = vmatprep.subr.mxu0 0.0
        %2846 = vmatpush1.msra.mxu0 0.0
        %2847 = vmatprep.subr.mxu0 0.0
        %2848 = vmatpush1.msra.mxu0 0.0
        %2849 = vmatprep.subr.mxu0 0.0
        %2850 = vmatpush1.msra.mxu0 0.0
        %2851 = vmatprep.subr.mxu0 0.0
        %2852 = vmatpush1.msra.mxu0 0.0
        %2853 = vmatprep.subr.mxu0 0.0
        %2854 = vmatpush1.msra.mxu0 0.0
        %2855 = vmatprep.subr.mxu0 0.0
        %2856 = vmatpush1.msra.mxu0 0.0
        %2857 = vmatprep.subr.mxu0 0.0
        %2858 = vmatpush1.msra.mxu0 0.0
        %2859 = vmatprep.subr.mxu0 0.0
        %2860 = vmatpush1.msra.mxu0 0.0
        %2861 = vmatprep.subr.mxu0 0.0
        %2862 = vmatpush1.msra.mxu0 0.0
        %2863 = vmatprep.subr.mxu0 0.0
        %2864 = vmatpush1.msra.mxu0 0.0
        %2865 = vmatprep.subr.mxu0 0.0
        %2866 = vmatpush1.msra.mxu0 0.0
        %2867 = vmatprep.subr.mxu0 0.0
        %2868 = vmatpush1.msra.mxu0 0.0
        %2869 = vmatprep.subr.mxu0 0.0
        %2870 = vmatpush1.msra.mxu0 0.0
        %2871 = vmatprep.subr.mxu0 0.0
        %2872 = vmatpush1.msra.mxu0 0.0
        %2873 = vmatprep.subr.mxu0 0.0
        %2874 = vmatpush1.msra.mxu0 0.0
        %2875 = vmatprep.subr.mxu0 0.0
        %2876 = vmatpush1.msra.mxu0 0.0
        %2877 = vmatprep.subr.mxu0 0.0
        %2878 = vmatpush1.msra.mxu0 0.0
        %2879 = vmatprep.subr.mxu0 0.0
        %2880 = vmatpush1.msra.mxu0 0.0
        %2881 = vmatprep.subr.mxu0 0.0
        %2882 = vmatpush1.msra.mxu0 0.0
        %2883 = vmatprep.subr.mxu0 0.0
        %2884 = vmatpush1.msra.mxu0 0.0
        %2885 = vmatprep.subr.mxu0 0.0
        %2886 = vmatpush1.msra.mxu0 0.0
        %2887 = vmatprep.subr.mxu0 0.0
        %2888 = vmatpush1.msra.mxu0 0.0
        %2889 = vmatprep.subr.mxu0 0.0
        %2890 = vmatpush1.msra.mxu0 0.0
        %2891 = vmatprep.subr.mxu0 0.0
        %2892 = vmatpush1.msra.mxu0 0.0
        %2893 = vmatprep.mubr.f32.mxu0 0.0
        %2894 = vmatmul.mubr.f32.gmra.mrb[0].mxu0 %v2671
        %v2895 = vpop.f32.mrb[0].mxu0
        %v2896 = vadd.f32 %v2826, %v2895
        %v2897 = vpop.f32.mrb[0].mxu0
        %2898 = vdwg.mxu0
        %v2899 = vld [vmem:[#allocation10] sm:$0x1]
        %v2901 = vlaneseq
        %v2902 = vshrl.u32 %v2901, 7
        %v2903 = vsub.s32 0, %v2902
        %v2904 = vrot.slane %v2899, %v2903
        %v2906 = vadd.f32 %v2896, %v2904
        %vm2907 = vcmask 123904
        %2908 = vst.msk [vmem:[%s949] sm:$0x3] %vm2907, %v2750
        %vm2909 = vcmask 1024
        %2910 = vst.msk [vmem:[%s971] sm:$0x3] %vm2909, %v2906
        %2911 = vst.msk [vmem:[%s976] sm:$0xff] %vm2035, %v2085
        %2912 = vst.msk [vmem:[%s976 + $0x8] sm:$0xff] %vm2035, %v2086
        %2913 = vst.msk [vmem:[%s976 + $0x10] sm:$0xff] %vm2035, %v2088
        %2914 = vst.msk [vmem:[%s976 + $0x18] sm:$0xff] %vm2035, %v2089
        %s2915 = sand.u32 %s594, 1
        %s2916 = scalar_lea.sflag [#allocation13], %s2915
        %s2917 = sand.u32 %s594, 1
        %s2918 = smul.addr %s2917, 2
        %s2919 = scalar_lea.vmem [#allocation25], %s2918
        %p2920 = scmp.lt.s32.totalorder %s51, 7
        %s2921 = scalar_select %p2920, %s51, 7
        %s2922 = smul.addr %s2921, 2
        %s2923 = scalar_lea.vmem %s26, %s2922
        %p2924 = scmp.lt.s32.totalorder %s51, 7
        %s2925 = scalar_select %p2924, %s51, 7
        %s2926 = smul.addr %s2925, 4
        %s2927 = smul.addr %s2926, 8
        %s2928 = scalar_lea.vmem %s27, %s2927
        // Predicated region
        $region157: #{tpu_custom_call.1} parent=119 // pred_check
          %p2929 = pneg %p604
        $region158: #{tpu_custom_call.1} parent=119 // pred_check_branch
          %2931 = sbr.rel (%p2929) target = $region160
        $region159: #{tpu_custom_call.1} parent=119 // pred_region
          %s2933 = ssub.s32 32, 32
          %2934 = vsyncadd %s2916, %s2933
          %s2935 = smul.addr %s51, 32
          %s2936 = scalar_lea.hbm %s25, %s2935
          %s2938 = sshll.u32 %s2919, 4
          %s2939 = int_to_ptr.vmem [resolvable:$true] %s2938
          %2941 = dma.vmem_to_hbm [thread:$0]  %s2939, 32, %s2936, %s2916
        $region160: #{tpu_custom_call.1} parent=119 // pred_fallthru
          _
        // Predicated region
        $region161: #{tpu_custom_call.1} parent=119 // pred_check
          %p2942 = pneg %p630
        $region162: #{tpu_custom_call.1} parent=119 // pred_check_branch
          %2944 = sbr.rel (%p2942) target = $region164
        $region163: #{tpu_custom_call.1} parent=119 // pred_region
          _
        $region164: #{tpu_custom_call.1} parent=119 // pred_fallthru
          _
        // Predicated region
        $region165: #{tpu_custom_call.1} parent=119 // pred_check
          %p2945 = pneg %p656
        $region166: #{tpu_custom_call.1} parent=119 // pred_check_branch
          %2947 = sbr.rel (%p2945) target = $region168
        $region167: #{tpu_custom_call.1} parent=119 // pred_region
          _
        $region168: #{tpu_custom_call.1} parent=119 // pred_fallthru
          _
      $region120: #{tpu_custom_call.1} parent=5 // pred_fallthru
        _
      %p2948 = scmp.le.s32.totalorder 2, %s46
      // Predicated region
      $region169: #{tpu_custom_call.1} parent=5 // pred_check
        %p2949 = pneg %p2948
      $region170: #{tpu_custom_call.1} parent=5 // pred_check_branch
        %2951 = sbr.rel (%p2949) target = $region172
      $region171: #{tpu_custom_call.1} parent=5 // pred_region
        %s2952 = ssub.s32 %s46, 2
        // Predicated region
        $region173: #{tpu_custom_call.1} parent=171 // pred_check
          %p2953 = pneg %p610
        $region174: #{tpu_custom_call.1} parent=171 // pred_check_branch
          %2955 = sbr.rel (%p2953) target = $region176
        $region175: #{tpu_custom_call.1} parent=171 // pred_region
          %s2956 = sand.u32 %s595, 1
          %s2957 = scalar_lea.sflag [#allocation13], %s2956
          %s2958 = sand.u32 %s595, 1
          %s2959 = smul.addr %s2958, 2
          %s2960 = scalar_lea.vmem [#allocation25], %s2959
          %2961 = dma.done %s2957, 32
        $region176: #{tpu_custom_call.1} parent=171 // pred_fallthru
          _
        // Predicated region
        $region177: #{tpu_custom_call.1} parent=171 // pred_check
          %p2962 = pneg %p636
        $region178: #{tpu_custom_call.1} parent=171 // pred_check_branch
          %2964 = sbr.rel (%p2962) target = $region180
        $region179: #{tpu_custom_call.1} parent=171 // pred_region
          %p2965 = scmp.lt.s32.totalorder %s52, 7
          %s2966 = scalar_select %p2965, %s52, 7
          %s2967 = smul.addr %s2966, 2
          %s2968 = scalar_lea.vmem %s26, %s2967
        $region180: #{tpu_custom_call.1} parent=171 // pred_fallthru
          _
        // Predicated region
        $region181: #{tpu_custom_call.1} parent=171 // pred_check
          %p2969 = pneg %p662
        $region182: #{tpu_custom_call.1} parent=171 // pred_check_branch
          %2971 = sbr.rel (%p2969) target = $region184
        $region183: #{tpu_custom_call.1} parent=171 // pred_region
          %p2972 = scmp.lt.s32.totalorder %s52, 7
          %s2973 = scalar_select %p2972, %s52, 7
          %s2974 = smul.addr %s2973, 4
          %s2975 = smul.addr %s2974, 8
          %s2976 = scalar_lea.vmem %s27, %s2975
        $region184: #{tpu_custom_call.1} parent=171 // pred_fallthru
          _
      $region172: #{tpu_custom_call.1} parent=5 // pred_fallthru
        _
    $region6: #{tpu_custom_call.1} parent=1 // loop_footer
      %s50 = sadd.s32 1, %s46
    $region7: #{tpu_custom_call.1} parent=1 // loop_footer_branch
      %45 = sbr.rel target = $region3
    $region8: #{tpu_custom_call.1} parent=1 // loop_exit
      _
    %2977 = vsyncpa [#allocation12], 1
    %s2978 = scalar_lea.sflag [#allocation12], 1
    %2979 = vsyncpa %s2978, 1
    %2980 = vsyncpa [#allocation15], 1
    %2981 = vsyncpa [#allocation18], 1
    %2982 = vsyncpa [#allocation21], 1
    %2983 = vsyncpa [#allocation24], 1
    %2984 = vsyncpa [#allocation13], 1
    %s2985 = scalar_lea.sflag [#allocation13], 1
    %2986 = vsyncpa %s2985, 1

</llo_original>
